<compile_context>
chip_gen: v5e
topology: v5e:2x2
jax: 0.10.0
libtpu: 0.0.40
codegen_flags: <defaults>
</compile_context>

<pallas_src>
import math
from functools import partial

import jax
import jax.numpy as jnp
from jax import lax
from jax.experimental import pallas as pl
from jax.experimental.pallas import tpu as pltpu


def _round_up(x, m):
    return (x + m - 1) // m * m


def _cdiv(a, b):
    return -(-a // b)


def _conv3d_kernel(xm_ref, xh_ref, w_ref, b_ref, o_ref, win_ref, *col_scratch,
                   tap_offsets, l_tile, pack_taps):
    # xm_ref : (1, C_in_p, L_TILE)   main lane tile of the flat padded input
    # xh_ref : (1, C_in_p, HALO)     next HALO lanes of the same flat input
    # w_ref  : (C_out_t, K^3*C_in_p) if pack_taps else (K^3, C_out_t, C_in_p)
    # b_ref  : (C_out_t, 1) float32
    # o_ref  : (1, C_out_t, L_TILE)  lane-dense flat output tile
    # win_ref: (C_in_p, L_TILE + HALO) VMEM scratch holding the contiguous window
    c_in_p = win_ref.shape[0]
    c_out_t = o_ref.shape[1]

    # Assemble the contiguous window (both stores are lane-aligned).
    win_ref[:, :l_tile] = xm_ref[0]
    win_ref[:, l_tile:] = xh_ref[0]

    if pack_taps:
        # Small C_in: pack the K^3 taps into the contraction (im2col in VMEM),
        # then a single deep MXU matmul and one accumulator write.
        col_ref, = col_scratch                                  # (K^3*C_in_p, L_TILE)
        for t, off in enumerate(tap_offsets):
            col_ref[t * c_in_p:(t + 1) * c_in_p, :] = win_ref[:, off:off + l_tile]
        acc = jnp.dot(w_ref[...], col_ref[...], preferred_element_type=jnp.float32)
    else:
        # Large C_in: contraction already deep; one MXU matmul per tap,
        # f32 accumulation kept functional so Mosaic can hold it in vregs.
        acc = jnp.zeros((c_out_t, l_tile), jnp.float32)
        for t, off in enumerate(tap_offsets):
            acc = acc + jnp.dot(w_ref[t], win_ref[:, off:off + l_tile],
                                preferred_element_type=jnp.float32)

    acc = acc + b_ref[...]            # bias in f32; equalized-LR scale is folded in w
    o_ref[0] = acc.astype(o_ref.dtype)


def conv3d(x, weight, bias, *, stride, padding,
           compute_dtype=jnp.bfloat16, pack_taps=None,
           vmem_budget_bytes=20 << 20):
    """Forward of the PGGAN Conv3d module: conv3d(x, weight*scale, bias)."""
    n, c_in, d, h, w = x.shape
    c_out, c_in_w, k, k2, k3d = weight.shape
    assert c_in == c_in_w and k == k2 == k3d, "cubic kernel expected"
    s, p = int(stride), int(padding)
    scale = math.sqrt(2.0) / math.sqrt(c_in)      # module semantics (fan_in = C_in)

    dp, hp, wp = d + 2 * p, h + 2 * p, w + 2 * p
    d_out = (dp - k) // s + 1
    h_out = (hp - k) // s + 1
    w_out = (wp - k) // s + 1
    k3 = k * k * k

    # Flat-shift offsets: tap (kd,kh,kw) -> flat offset kd*Hp*Wp + kh*Wp + kw.
    tap_offsets = tuple(kd * hp * wp + kh * wp + kw
                        for kd in range(k) for kh in range(k) for kw in range(k))
    max_off = tap_offsets[-1]
    l_real = dp * hp * wp
    l_needed = l_real - max_off       # flat positions any valid output can occupy

    in_bytes = jnp.dtype(compute_dtype).itemsize
    out_bytes = jnp.dtype(x.dtype).itemsize
    # Pad C_in so sublane tiles stay aligned (bf16 packs 2 rows per sublane).
    c_mult = 16 if in_bytes < 4 else 8
    c_in_p = _round_up(c_in, c_mult)
    if pack_taps is None:
        pack_taps = c_in_p < 128      # shallow contraction -> pack taps into it

    halo = max(128, _round_up(max_off, 128))

    # C_out tiling only when it is large and cleanly divisible.
    c_out_t = c_out
    for cand in (256, 128):
        if c_out > cand and c_out % cand == 0:
            c_out_t = cand
            break
    num_co = c_out // c_out_t

    # --- VMEM-budgeted lane tile (multiple of HALO so Blocked indexing works) ---
    per_lane = (2 * c_in_p * in_bytes          # main input (double-buffered)
                + 2 * c_out_t * out_bytes      # output (double-buffered)
                + c_in_p * in_bytes            # window scratch
                + c_out_t * 4)                 # f32 accumulator
    if pack_taps:
        per_lane += k3 * c_in_p * in_bytes     # im2col scratch
    fixed = (3 * c_in_p * halo * in_bytes      # halo input (2x) + window halo part
             + 2 * k3 * c_out_t * c_in_p * in_bytes   # weights (double-buffered)
             + 4096)
    l_cap = max(halo, _round_up(l_needed, halo))
    hard_cap = max(halo, (32 * 1024 // halo) * halo)
    l_tile = max(halo, (max(vmem_budget_bytes - fixed, 0) // per_lane) // halo * halo)
    l_tile = min(l_tile, l_cap, hard_cap)
    num_lt = _cdiv(l_needed, l_tile)
    l_flat = num_lt * l_tile + halo            # >= l_real (l_real = l_needed + max_off)

    accounted = fixed + per_lane * l_tile
    vmem_limit = int(min(64 << 20, max(32 << 20, int(accounted * 1.5))))

    # --- pure data-layout prep in the wrapper (all conv FLOPs are in the kernel) ---
    xc = x.astype(compute_dtype)
    x_pad = jnp.pad(xc, ((0, 0), (0, 0), (p, p), (p, p), (p, p)))
    x_flat = x_pad.reshape(n, c_in, l_real)
    x_flat = jnp.pad(x_flat, ((0, 0), (0, c_in_p - c_in), (0, l_flat - l_real)))

    # Taps-major weights, equalized-LR scale folded in, channel-padded, compute dtype.
    w_taps = jnp.transpose(weight, (2, 3, 4, 0, 1)).reshape(k3, c_out, c_in) * scale
    w_taps = jnp.pad(w_taps, ((0, 0), (0, 0), (0, c_in_p - c_in))).astype(compute_dtype)
    if pack_taps:
        w_arg = jnp.transpose(w_taps, (1, 0, 2)).reshape(c_out, k3 * c_in_p)
        w_spec = pl.BlockSpec((c_out_t, k3 * c_in_p), lambda i, co, j: (co, 0))
    else:
        w_arg = w_taps
        w_spec = pl.BlockSpec((k3, c_out_t, c_in_p), lambda i, co, j: (0, co, 0))
    b_col = bias.reshape(c_out, 1).astype(jnp.float32)

    ratio = l_tile // halo            # halo view block index = (j+1)*ratio
    kernel = partial(_conv3d_kernel, tap_offsets=tap_offsets,
                     l_tile=l_tile, pack_taps=pack_taps)

    scratch = [pltpu.VMEM((c_in_p, l_tile + halo), compute_dtype)]
    if pack_taps:
        scratch.append(pltpu.VMEM((k3 * c_in_p, l_tile), compute_dtype))

    out_flat = pl.pallas_call(
        kernel,
        out_shape=jax.ShapeDtypeStruct((n, c_out, num_lt * l_tile), x.dtype),
        grid_spec=pltpu.PrefetchScalarGridSpec(
            num_scalar_prefetch=0,
            grid=(n, num_co, num_lt),
            in_specs=[
                pl.BlockSpec((1, c_in_p, l_tile), lambda i, co, j: (i, 0, j)),
                pl.BlockSpec((1, c_in_p, halo),
                             lambda i, co, j: (i, 0, (j + 1) * ratio)),
                w_spec,
                pl.BlockSpec((c_out_t, 1), lambda i, co, j: (co, 0)),
            ],
            out_specs=pl.BlockSpec((1, c_out_t, l_tile), lambda i, co, j: (i, co, j)),
            scratch_shapes=scratch,
        ),
        compiler_params=pltpu.CompilerParams(
            dimension_semantics=("parallel", "parallel", "parallel"),
            vmem_limit_bytes=vmem_limit),
    )(x_flat, x_flat, w_arg, b_col)

    # Crop junk columns and apply stride with a strided slice (layout only).
    total = num_lt * l_tile
    if total < l_real:
        out_flat = jnp.pad(out_flat, ((0, 0), (0, 0), (0, l_real - total)))
    out_dense = out_flat[:, :, :l_real].reshape(n, c_out, dp, hp, wp)
    out = out_dense[:, :,
                    0:(d_out - 1) * s + 1:s,
                    0:(h_out - 1) * s + 1:s,
                    0:(w_out - 1) * s + 1:s]
    return out


def _reference(x, weight, bias, stride, padding, compute_dtype):
    """XLA reference on the same bf16-quantized inputs with f32 accumulation."""
    c_in = x.shape[1]
    scale = math.sqrt(2.0) / math.sqrt(c_in)
    xr = x.astype(compute_dtype).astype(jnp.float32)
    wr = (weight * scale).astype(compute_dtype).astype(jnp.float32)
    out = lax.conv_general_dilated(
        xr, wr,
        window_strides=(stride,) * 3,
        padding=[(padding, padding)] * 3,
        dimension_numbers=("NCDHW", "OIDHW", "NCDHW"),
        precision=lax.Precision.HIGHEST)
    return out + bias.reshape(1, -1, 1, 1, 1)


if __name__ == "__main__":
    def run_case(key, *, n, c_in, c_out, k, s, p, d, pack_taps=None, tol=5e-3):
        kx, kw, kb = jax.random.split(key, 3)
        x = jax.random.normal(kx, (n, c_in, d, d, d), dtype=jnp.float32)
        weight = jax.random.normal(kw, (c_out, c_in, k, k, k), dtype=jnp.float32)
        bias = 0.1 * jax.random.normal(kb, (c_out,), dtype=jnp.float32)

        out = conv3d(x, weight, bias, stride=s, padding=p, pack_taps=pack_taps)
        out = jax.block_until_ready(out)

        ref = _reference(x, weight, bias, s, p, jnp.bfloat16)
        assert out.shape == ref.shape, (out.shape, ref.shape)
        err = float(jnp.max(jnp.abs(out - ref)))
        assert jnp.allclose(out, ref, atol=tol, rtol=tol), f"mismatch vs ref: {err}"

    key = jax.random.PRNGKey(0)
    k1, k2, k3_ = jax.random.split(key, 3)

    # Main case: packed-tap (im2col) path, stride 1.
    run_case(k1, n=2, c_in=4, c_out=8, k=3, s=1, p=1, d=8)
    # Stride-2 downsampling layer: exercises the crop arithmetic.
    run_case(k2, n=2, c_in=4, c_out=8, k=3, s=2, p=1, d=8)
    # Per-tap matmul path (large-C_in branch), forced.
    run_case(k3_, n=1, c_in=8, c_out=8, k=3, s=1, p=1, d=8, pack_taps=False)

    print("KERNEL_OK")
</pallas_src>

<mosaic_0001>
module attributes {stable_mosaic.version = 11 : i64} {
  func.func @_conv3d_kernel(%arg0: i32, %arg1: i32, %arg2: i32, %arg3: memref<1x16x1024xbf16, #tpu.memory_space<vmem>>, %arg4: memref<1x16x256xbf16, #tpu.memory_space<vmem>>, %arg5: memref<8x432xbf16, #tpu.memory_space<vmem>>, %arg6: memref<8x1xf32, #tpu.memory_space<vmem>>, %arg7: memref<1x8x1024xf32, #tpu.memory_space<vmem>>, %arg8: memref<16x1280xbf16, #tpu.memory_space<vmem>>, %arg9: memref<432x1024xbf16, #tpu.memory_space<vmem>>) attributes {dimension_semantics = [#tpu.dimension_semantics<parallel>, #tpu.dimension_semantics<parallel>, #tpu.dimension_semantics<parallel>], iteration_bounds = array<i64: 2, 1, 1>, scalar_prefetch = 0 : i64, scratch_operands = 2 : i64, tpu.core_type = #tpu.core_type<tc>, window_params = [{transform_indices = @transform_0, window_bounds = array<i64: 1, 16, 1024>}, {transform_indices = @transform_1, window_bounds = array<i64: 1, 16, 256>}, {transform_indices = @transform_2, window_bounds = array<i64: 8, 432>}, {transform_indices = @transform_3, window_bounds = array<i64: 8, 1>}, {transform_indices = @transform_4, window_bounds = array<i64: 1, 8, 1024>}]} {
    %c0 = arith.constant 0 : index
    %c0_0 = arith.constant 0 : index
    %c0_1 = arith.constant 0 : index
    %0 = vector.load %arg3[%c0, %c0_0, %c0_1] : memref<1x16x1024xbf16, #tpu.memory_space<vmem>>, vector<1x16x1024xbf16>
    %1 = vector.shape_cast %0 : vector<1x16x1024xbf16> to vector<16x1024xbf16>
    %c0_2 = arith.constant 0 : index
    %c0_3 = arith.constant 0 : index
    %2 = vector.load %arg8[%c0_2, %c0_3] : memref<16x1280xbf16, #tpu.memory_space<vmem>>, vector<16x1024xbf16>
    tpu.vector_store %arg8[%c0_2, %c0_3], %1 {strides = array<i32>} : memref<16x1280xbf16, #tpu.memory_space<vmem>>, vector<16x1024xbf16>,
    %c0_4 = arith.constant 0 : index
    %c0_5 = arith.constant 0 : index
    %c0_6 = arith.constant 0 : index
    %3 = vector.load %arg4[%c0_4, %c0_5, %c0_6] : memref<1x16x256xbf16, #tpu.memory_space<vmem>>, vector<1x16x256xbf16>
    %4 = vector.shape_cast %3 : vector<1x16x256xbf16> to vector<16x256xbf16>
    %c0_7 = arith.constant 0 : index
    %c1024 = arith.constant 1024 : index
    %5 = vector.load %arg8[%c0_7, %c1024] : memref<16x1280xbf16, #tpu.memory_space<vmem>>, vector<16x256xbf16>
    tpu.vector_store %arg8[%c0_7, %c1024], %4 {strides = array<i32>} : memref<16x1280xbf16, #tpu.memory_space<vmem>>, vector<16x256xbf16>,
    %c0_8 = arith.constant 0 : index
    %c0_9 = arith.constant 0 : index
    %6 = vector.load %arg8[%c0_8, %c0_9] : memref<16x1280xbf16, #tpu.memory_space<vmem>>, vector<16x1024xbf16>
    %c0_10 = arith.constant 0 : index
    %c0_11 = arith.constant 0 : index
    %7 = vector.load %arg9[%c0_10, %c0_11] : memref<432x1024xbf16, #tpu.memory_space<vmem>>, vector<16x1024xbf16>
    tpu.vector_store %arg9[%c0_10, %c0_11], %6 {strides = array<i32>} : memref<432x1024xbf16, #tpu.memory_space<vmem>>, vector<16x1024xbf16>,
    %c0_12 = arith.constant 0 : index
    %c1 = arith.constant 1 : index
    %8 = vector.load %arg8[%c0_12, %c1] : memref<16x1280xbf16, #tpu.memory_space<vmem>>, vector<16x1024xbf16>
    %c16 = arith.constant 16 : index
    %c0_13 = arith.constant 0 : index
    %9 = vector.load %arg9[%c16, %c0_13] : memref<432x1024xbf16, #tpu.memory_space<vmem>>, vector<16x1024xbf16>
    tpu.vector_store %arg9[%c16, %c0_13], %8 {strides = array<i32>} : memref<432x1024xbf16, #tpu.memory_space<vmem>>, vector<16x1024xbf16>,
    %c0_14 = arith.constant 0 : index
    %c2 = arith.constant 2 : index
    %10 = vector.load %arg8[%c0_14, %c2] : memref<16x1280xbf16, #tpu.memory_space<vmem>>, vector<16x1024xbf16>
    %c32 = arith.constant 32 : index
    %c0_15 = arith.constant 0 : index
    %11 = vector.load %arg9[%c32, %c0_15] : memref<432x1024xbf16, #tpu.memory_space<vmem>>, vector<16x1024xbf16>
    tpu.vector_store %arg9[%c32, %c0_15], %10 {strides = array<i32>} : memref<432x1024xbf16, #tpu.memory_space<vmem>>, vector<16x1024xbf16>,
    %c0_16 = arith.constant 0 : index
    %c10 = arith.constant 10 : index
    %12 = vector.load %arg8[%c0_16, %c10] : memref<16x1280xbf16, #tpu.memory_space<vmem>>, vector<16x1024xbf16>
    %c48 = arith.constant 48 : index
    %c0_17 = arith.constant 0 : index
    %13 = vector.load %arg9[%c48, %c0_17] : memref<432x1024xbf16, #tpu.memory_space<vmem>>, vector<16x1024xbf16>
    tpu.vector_store %arg9[%c48, %c0_17], %12 {strides = array<i32>} : memref<432x1024xbf16, #tpu.memory_space<vmem>>, vector<16x1024xbf16>,
    %c0_18 = arith.constant 0 : index
    %c11 = arith.constant 11 : index
    %14 = vector.load %arg8[%c0_18, %c11] : memref<16x1280xbf16, #tpu.memory_space<vmem>>, vector<16x1024xbf16>
    %c64 = arith.constant 64 : index
    %c0_19 = arith.constant 0 : index
    %15 = vector.load %arg9[%c64, %c0_19] : memref<432x1024xbf16, #tpu.memory_space<vmem>>, vector<16x1024xbf16>
    tpu.vector_store %arg9[%c64, %c0_19], %14 {strides = array<i32>} : memref<432x1024xbf16, #tpu.memory_space<vmem>>, vector<16x1024xbf16>,
    %c0_20 = arith.constant 0 : index
    %c12 = arith.constant 12 : index
    %16 = vector.load %arg8[%c0_20, %c12] : memref<16x1280xbf16, #tpu.memory_space<vmem>>, vector<16x1024xbf16>
    %c80 = arith.constant 80 : index
    %c0_21 = arith.constant 0 : index
    %17 = vector.load %arg9[%c80, %c0_21] : memref<432x1024xbf16, #tpu.memory_space<vmem>>, vector<16x1024xbf16>
    tpu.vector_store %arg9[%c80, %c0_21], %16 {strides = array<i32>} : memref<432x1024xbf16, #tpu.memory_space<vmem>>, vector<16x1024xbf16>,
    %c0_22 = arith.constant 0 : index
    %c20 = arith.constant 20 : index
    %18 = vector.load %arg8[%c0_22, %c20] : memref<16x1280xbf16, #tpu.memory_space<vmem>>, vector<16x1024xbf16>
    %c96 = arith.constant 96 : index
    %c0_23 = arith.constant 0 : index
    %19 = vector.load %arg9[%c96, %c0_23] : memref<432x1024xbf16, #tpu.memory_space<vmem>>, vector<16x1024xbf16>
    tpu.vector_store %arg9[%c96, %c0_23], %18 {strides = array<i32>} : memref<432x1024xbf16, #tpu.memory_space<vmem>>, vector<16x1024xbf16>,
    %c0_24 = arith.constant 0 : index
    %c21 = arith.constant 21 : index
    %20 = vector.load %arg8[%c0_24, %c21] : memref<16x1280xbf16, #tpu.memory_space<vmem>>, vector<16x1024xbf16>
    %c112 = arith.constant 112 : index
    %c0_25 = arith.constant 0 : index
    %21 = vector.load %arg9[%c112, %c0_25] : memref<432x1024xbf16, #tpu.memory_space<vmem>>, vector<16x1024xbf16>
    tpu.vector_store %arg9[%c112, %c0_25], %20 {strides = array<i32>} : memref<432x1024xbf16, #tpu.memory_space<vmem>>, vector<16x1024xbf16>,
    %c0_26 = arith.constant 0 : index
    %c22 = arith.constant 22 : index
    %22 = vector.load %arg8[%c0_26, %c22] : memref<16x1280xbf16, #tpu.memory_space<vmem>>, vector<16x1024xbf16>
    %c128 = arith.constant 128 : index
    %c0_27 = arith.constant 0 : index
    %23 = vector.load %arg9[%c128, %c0_27] : memref<432x1024xbf16, #tpu.memory_space<vmem>>, vector<16x1024xbf16>
    tpu.vector_store %arg9[%c128, %c0_27], %22 {strides = array<i32>} : memref<432x1024xbf16, #tpu.memory_space<vmem>>, vector<16x1024xbf16>,
    %c0_28 = arith.constant 0 : index
    %c100 = arith.constant 100 : index
    %24 = vector.load %arg8[%c0_28, %c100] : memref<16x1280xbf16, #tpu.memory_space<vmem>>, vector<16x1024xbf16>
    %c144 = arith.constant 144 : index
    %c0_29 = arith.constant 0 : index
    %25 = vector.load %arg9[%c144, %c0_29] : memref<432x1024xbf16, #tpu.memory_space<vmem>>, vector<16x1024xbf16>
    tpu.vector_store %arg9[%c144, %c0_29], %24 {strides = array<i32>} : memref<432x1024xbf16, #tpu.memory_space<vmem>>, vector<16x1024xbf16>,
    %c0_30 = arith.constant 0 : index
    %c101 = arith.constant 101 : index
    %26 = vector.load %arg8[%c0_30, %c101] : memref<16x1280xbf16, #tpu.memory_space<vmem>>, vector<16x1024xbf16>
    %c160 = arith.constant 160 : index
    %c0_31 = arith.constant 0 : index
    %27 = vector.load %arg9[%c160, %c0_31] : memref<432x1024xbf16, #tpu.memory_space<vmem>>, vector<16x1024xbf16>
    tpu.vector_store %arg9[%c160, %c0_31], %26 {strides = array<i32>} : memref<432x1024xbf16, #tpu.memory_space<vmem>>, vector<16x1024xbf16>,
    %c0_32 = arith.constant 0 : index
    %c102 = arith.constant 102 : index
    %28 = vector.load %arg8[%c0_32, %c102] : memref<16x1280xbf16, #tpu.memory_space<vmem>>, vector<16x1024xbf16>
    %c176 = arith.constant 176 : index
    %c0_33 = arith.constant 0 : index
    %29 = vector.load %arg9[%c176, %c0_33] : memref<432x1024xbf16, #tpu.memory_space<vmem>>, vector<16x1024xbf16>
    tpu.vector_store %arg9[%c176, %c0_33], %28 {strides = array<i32>} : memref<432x1024xbf16, #tpu.memory_space<vmem>>, vector<16x1024xbf16>,
    %c0_34 = arith.constant 0 : index
    %c110 = arith.constant 110 : index
    %30 = vector.load %arg8[%c0_34, %c110] : memref<16x1280xbf16, #tpu.memory_space<vmem>>, vector<16x1024xbf16>
    %c192 = arith.constant 192 : index
    %c0_35 = arith.constant 0 : index
    %31 = vector.load %arg9[%c192, %c0_35] : memref<432x1024xbf16, #tpu.memory_space<vmem>>, vector<16x1024xbf16>
    tpu.vector_store %arg9[%c192, %c0_35], %30 {strides = array<i32>} : memref<432x1024xbf16, #tpu.memory_space<vmem>>, vector<16x1024xbf16>,
    %c0_36 = arith.constant 0 : index
    %c111 = arith.constant 111 : index
    %32 = vector.load %arg8[%c0_36, %c111] : memref<16x1280xbf16, #tpu.memory_space<vmem>>, vector<16x1024xbf16>
    %c208 = arith.constant 208 : index
    %c0_37 = arith.constant 0 : index
    %33 = vector.load %arg9[%c208, %c0_37] : memref<432x1024xbf16, #tpu.memory_space<vmem>>, vector<16x1024xbf16>
    tpu.vector_store %arg9[%c208, %c0_37], %32 {strides = array<i32>} : memref<432x1024xbf16, #tpu.memory_space<vmem>>, vector<16x1024xbf16>,
    %c0_38 = arith.constant 0 : index
    %c112_39 = arith.constant 112 : index
    %34 = vector.load %arg8[%c0_38, %c112_39] : memref<16x1280xbf16, #tpu.memory_space<vmem>>, vector<16x1024xbf16>
    %c224 = arith.constant 224 : index
    %c0_40 = arith.constant 0 : index
    %35 = vector.load %arg9[%c224, %c0_40] : memref<432x1024xbf16, #tpu.memory_space<vmem>>, vector<16x1024xbf16>
    tpu.vector_store %arg9[%c224, %c0_40], %34 {strides = array<i32>} : memref<432x1024xbf16, #tpu.memory_space<vmem>>, vector<16x1024xbf16>,
    %c0_41 = arith.constant 0 : index
    %c120 = arith.constant 120 : index
    %36 = vector.load %arg8[%c0_41, %c120] : memref<16x1280xbf16, #tpu.memory_space<vmem>>, vector<16x1024xbf16>
    %c240 = arith.constant 240 : index
    %c0_42 = arith.constant 0 : index
    %37 = vector.load %arg9[%c240, %c0_42] : memref<432x1024xbf16, #tpu.memory_space<vmem>>, vector<16x1024xbf16>
    tpu.vector_store %arg9[%c240, %c0_42], %36 {strides = array<i32>} : memref<432x1024xbf16, #tpu.memory_space<vmem>>, vector<16x1024xbf16>,
    %c0_43 = arith.constant 0 : index
    %c121 = arith.constant 121 : index
    %38 = vector.load %arg8[%c0_43, %c121] : memref<16x1280xbf16, #tpu.memory_space<vmem>>, vector<16x1024xbf16>
    %c256 = arith.constant 256 : index
    %c0_44 = arith.constant 0 : index
    %39 = vector.load %arg9[%c256, %c0_44] : memref<432x1024xbf16, #tpu.memory_space<vmem>>, vector<16x1024xbf16>
    tpu.vector_store %arg9[%c256, %c0_44], %38 {strides = array<i32>} : memref<432x1024xbf16, #tpu.memory_space<vmem>>, vector<16x1024xbf16>,
    %c0_45 = arith.constant 0 : index
    %c122 = arith.constant 122 : index
    %40 = vector.load %arg8[%c0_45, %c122] : memref<16x1280xbf16, #tpu.memory_space<vmem>>, vector<16x1024xbf16>
    %c272 = arith.constant 272 : index
    %c0_46 = arith.constant 0 : index
    %41 = vector.load %arg9[%c272, %c0_46] : memref<432x1024xbf16, #tpu.memory_space<vmem>>, vector<16x1024xbf16>
    tpu.vector_store %arg9[%c272, %c0_46], %40 {strides = array<i32>} : memref<432x1024xbf16, #tpu.memory_space<vmem>>, vector<16x1024xbf16>,
    %c0_47 = arith.constant 0 : index
    %c200 = arith.constant 200 : index
    %42 = vector.load %arg8[%c0_47, %c200] : memref<16x1280xbf16, #tpu.memory_space<vmem>>, vector<16x1024xbf16>
    %c288 = arith.constant 288 : index
    %c0_48 = arith.constant 0 : index
    %43 = vector.load %arg9[%c288, %c0_48] : memref<432x1024xbf16, #tpu.memory_space<vmem>>, vector<16x1024xbf16>
    tpu.vector_store %arg9[%c288, %c0_48], %42 {strides = array<i32>} : memref<432x1024xbf16, #tpu.memory_space<vmem>>, vector<16x1024xbf16>,
    %c0_49 = arith.constant 0 : index
    %c201 = arith.constant 201 : index
    %44 = vector.load %arg8[%c0_49, %c201] : memref<16x1280xbf16, #tpu.memory_space<vmem>>, vector<16x1024xbf16>
    %c304 = arith.constant 304 : index
    %c0_50 = arith.constant 0 : index
    %45 = vector.load %arg9[%c304, %c0_50] : memref<432x1024xbf16, #tpu.memory_space<vmem>>, vector<16x1024xbf16>
    tpu.vector_store %arg9[%c304, %c0_50], %44 {strides = array<i32>} : memref<432x1024xbf16, #tpu.memory_space<vmem>>, vector<16x1024xbf16>,
    %c0_51 = arith.constant 0 : index
    %c202 = arith.constant 202 : index
    %46 = vector.load %arg8[%c0_51, %c202] : memref<16x1280xbf16, #tpu.memory_space<vmem>>, vector<16x1024xbf16>
    %c320 = arith.constant 320 : index
    %c0_52 = arith.constant 0 : index
    %47 = vector.load %arg9[%c320, %c0_52] : memref<432x1024xbf16, #tpu.memory_space<vmem>>, vector<16x1024xbf16>
    tpu.vector_store %arg9[%c320, %c0_52], %46 {strides = array<i32>} : memref<432x1024xbf16, #tpu.memory_space<vmem>>, vector<16x1024xbf16>,
    %c0_53 = arith.constant 0 : index
    %c210 = arith.constant 210 : index
    %48 = vector.load %arg8[%c0_53, %c210] : memref<16x1280xbf16, #tpu.memory_space<vmem>>, vector<16x1024xbf16>
    %c336 = arith.constant 336 : index
    %c0_54 = arith.constant 0 : index
    %49 = vector.load %arg9[%c336, %c0_54] : memref<432x1024xbf16, #tpu.memory_space<vmem>>, vector<16x1024xbf16>
    tpu.vector_store %arg9[%c336, %c0_54], %48 {strides = array<i32>} : memref<432x1024xbf16, #tpu.memory_space<vmem>>, vector<16x1024xbf16>,
    %c0_55 = arith.constant 0 : index
    %c211 = arith.constant 211 : index
    %50 = vector.load %arg8[%c0_55, %c211] : memref<16x1280xbf16, #tpu.memory_space<vmem>>, vector<16x1024xbf16>
    %c352 = arith.constant 352 : index
    %c0_56 = arith.constant 0 : index
    %51 = vector.load %arg9[%c352, %c0_56] : memref<432x1024xbf16, #tpu.memory_space<vmem>>, vector<16x1024xbf16>
    tpu.vector_store %arg9[%c352, %c0_56], %50 {strides = array<i32>} : memref<432x1024xbf16, #tpu.memory_space<vmem>>, vector<16x1024xbf16>,
    %c0_57 = arith.constant 0 : index
    %c212 = arith.constant 212 : index
    %52 = vector.load %arg8[%c0_57, %c212] : memref<16x1280xbf16, #tpu.memory_space<vmem>>, vector<16x1024xbf16>
    %c368 = arith.constant 368 : index
    %c0_58 = arith.constant 0 : index
    %53 = vector.load %arg9[%c368, %c0_58] : memref<432x1024xbf16, #tpu.memory_space<vmem>>, vector<16x1024xbf16>
    tpu.vector_store %arg9[%c368, %c0_58], %52 {strides = array<i32>} : memref<432x1024xbf16, #tpu.memory_space<vmem>>, vector<16x1024xbf16>,
    %c0_59 = arith.constant 0 : index
    %c220 = arith.constant 220 : index
    %54 = vector.load %arg8[%c0_59, %c220] : memref<16x1280xbf16, #tpu.memory_space<vmem>>, vector<16x1024xbf16>
    %c384 = arith.constant 384 : index
    %c0_60 = arith.constant 0 : index
    %55 = vector.load %arg9[%c384, %c0_60] : memref<432x1024xbf16, #tpu.memory_space<vmem>>, vector<16x1024xbf16>
    tpu.vector_store %arg9[%c384, %c0_60], %54 {strides = array<i32>} : memref<432x1024xbf16, #tpu.memory_space<vmem>>, vector<16x1024xbf16>,
    %c0_61 = arith.constant 0 : index
    %c221 = arith.constant 221 : index
    %56 = vector.load %arg8[%c0_61, %c221] : memref<16x1280xbf16, #tpu.memory_space<vmem>>, vector<16x1024xbf16>
    %c400 = arith.constant 400 : index
    %c0_62 = arith.constant 0 : index
    %57 = vector.load %arg9[%c400, %c0_62] : memref<432x1024xbf16, #tpu.memory_space<vmem>>, vector<16x1024xbf16>
    tpu.vector_store %arg9[%c400, %c0_62], %56 {strides = array<i32>} : memref<432x1024xbf16, #tpu.memory_space<vmem>>, vector<16x1024xbf16>,
    %c0_63 = arith.constant 0 : index
    %c222 = arith.constant 222 : index
    %58 = vector.load %arg8[%c0_63, %c222] : memref<16x1280xbf16, #tpu.memory_space<vmem>>, vector<16x1024xbf16>
    %c416 = arith.constant 416 : index
    %c0_64 = arith.constant 0 : index
    %59 = vector.load %arg9[%c416, %c0_64] : memref<432x1024xbf16, #tpu.memory_space<vmem>>, vector<16x1024xbf16>
    tpu.vector_store %arg9[%c416, %c0_64], %58 {strides = array<i32>} : memref<432x1024xbf16, #tpu.memory_space<vmem>>, vector<16x1024xbf16>,
    %c0_65 = arith.constant 0 : index
    %c0_66 = arith.constant 0 : index
    %60 = vector.load %arg5[%c0_65, %c0_66] : memref<8x432xbf16, #tpu.memory_space<vmem>>, vector<8x432xbf16>
    %c0_67 = arith.constant 0 : index
    %c0_68 = arith.constant 0 : index
    %61 = vector.load %arg9[%c0_67, %c0_68] : memref<432x1024xbf16, #tpu.memory_space<vmem>>, vector<432x1024xbf16>
    %cst = arith.constant dense<0.000000e+00> : vector<8x1024xf32>
    %62 = tpu.matmul %60, %61, %cst {dimension_numbers = #tpu.dot_dimension_numbers<[1], [0], [0], [1], [0, 0, 1, 1], [], []>} : vector<8x432xbf16>, vector<432x1024xbf16>, vector<8x1024xf32> -> vector<8x1024xf32>
    %c0_69 = arith.constant 0 : index
    %c0_70 = arith.constant 0 : index
    %63 = vector.load %arg6[%c0_69, %c0_70] : memref<8x1xf32, #tpu.memory_space<vmem>>, vector<8x1xf32>
    %64 = vector.broadcast %63 : vector<8x1xf32> to vector<8x1024xf32>
    %65 = arith.addf %62, %64 : vector<8x1024xf32>
    %c0_71 = arith.constant 0 : index
    %c0_72 = arith.constant 0 : index
    %c0_73 = arith.constant 0 : index
    %66 = vector.load %arg7[%c0_71, %c0_72, %c0_73] : memref<1x8x1024xf32, #tpu.memory_space<vmem>>, vector<1x8x1024xf32>
    %67 = vector.shape_cast %66 : vector<1x8x1024xf32> to vector<8x1024xf32>
    %68 = vector.shape_cast %65 : vector<8x1024xf32> to vector<1x8x1024xf32>
    tpu.vector_store %arg7[%c0_71, %c0_72, %c0_73], %68 {strides = array<i32>} : memref<1x8x1024xf32, #tpu.memory_space<vmem>>, vector<1x8x1024xf32>,
    return
  }
  func.func @transform_0(%arg0: i32, %arg1: i32, %arg2: i32) -> (i32, i32, i32) {
    %c0_i32 = arith.constant 0 : i32
    %c0_i32_0 = arith.constant 0 : i32
    return %arg0, %c0_i32, %arg2 : i32, i32, i32
  }
  func.func @transform_1(%arg0: i32, %arg1: i32, %arg2: i32) -> (i32, i32, i32) {
    %c1_i32 = arith.constant 1 : i32
    %0 = arith.addi %arg2, %c1_i32 : i32
    %c4_i32 = arith.constant 4 : i32
    %1 = arith.muli %0, %c4_i32 : i32
    %c0_i32 = arith.constant 0 : i32
    %c0_i32_0 = arith.constant 0 : i32
    return %arg0, %c0_i32, %1 : i32, i32, i32
  }
  func.func @transform_2(%arg0: i32, %arg1: i32, %arg2: i32) -> (i32, i32) {
    %c0_i32 = arith.constant 0 : i32
    %c0_i32_0 = arith.constant 0 : i32
    return %arg1, %c0_i32 : i32, i32
  }
  func.func @transform_3(%arg0: i32, %arg1: i32, %arg2: i32) -> (i32, i32) {
    %c0_i32 = arith.constant 0 : i32
    %c0_i32_0 = arith.constant 0 : i32
    return %arg1, %c0_i32 : i32, i32
  }
  func.func @transform_4(%arg0: i32, %arg1: i32, %arg2: i32) -> (i32, i32, i32) {
    %c0_i32 = arith.constant 0 : i32
    return %arg0, %arg1, %arg2 : i32, i32, i32
  }
}

</mosaic_0001>

<llo_original>
// kernel: tpu_custom_call.1
$region0: #{tpu_custom_call.1}
  #allocation0 [shape = 'u32[]', space=smem, size = 0x4, offset = 0x4, fixed_abs, tag = 'smem constant byte address 0x4 - core index']
  #allocation1 [shape = 'u32[72,128]{1,0:T(1,128)}', space=vmem, size = 0x9000, scoped, tag = 'internal scratch']
  #allocation2 [shape = 'bf16[16,1280]{1,0:T(8,128)(2,1)}', space=vmem, size = 0xa000, scoped, tag = 'scratch operand']
  #allocation3 [shape = 'bf16[432,1024]{1,0:T(8,128)(2,1)}', space=vmem, size = 0xd8000, scoped, tag = 'scratch operand']
  %s0 = inlined_call_operand.hbm [shape: bf16[2,16,1280], index: 0, kind: input, shape index: {}]
  %s1 = inlined_call_operand.hbm [shape: bf16[2,16,1280], index: 1, kind: input, shape index: {}]
  %s2 = inlined_call_operand.hbm [shape: bf16[8,432], index: 2, kind: input, shape index: {}]
  %s3 = inlined_call_operand.vmem [shape: f32[8,1], index: 3, kind: input, shape index: {}]
  %s4 = inlined_call_operand.hbm [shape: f32[2,8,1024], index: 4, kind: output, shape index: {}]
  %s5 = sld [smem:[#allocation0]]
  $region61: #{tpu_custom_call.1} parent=0
    _
  %s7 = ssub.s32 1, %s5
  %s8 = scalar_select 0, %s7, %s5
  $region1: #{tpu_custom_call.1} parent=0
    #allocation4 [shape = 'u8[65536]{0}', space=vmem, size = 0x10000, scoped, tag = 'input window, operand 0']
    #allocation5 [shape = 's32[2]{0}', space=sflag, size = 0x8, scoped, tag = 'scoped memory for tpu_custom_call.1']
    #allocation6 [shape = 's32[2]{0}', space=sflag, size = 0x8, scoped, tag = 'scoped memory for tpu_custom_call.1']
    #allocation7 [shape = 'u8[16384]{0}', space=vmem, size = 0x4000, scoped, tag = 'input window, operand 1']
    #allocation8 [shape = 's32[2]{0}', space=sflag, size = 0x8, scoped, tag = 'scoped memory for tpu_custom_call.1']
    #allocation9 [shape = 'u8[8192]{0}', space=vmem, size = 0x2000, scoped, tag = 'input window, operand 2, single buffered']
    #allocation10 [shape = 'u8[65536]{0}', space=vmem, size = 0x10000, scoped, tag = 'output window, operand 0']
    %9 = vsyncpa [#allocation5], 0
    %s10 = scalar_lea.sflag [#allocation5], 1
    %11 = vsyncpa %s10, 0
    %12 = vsyncpa [#allocation8], 0
    %s13 = scalar_lea.sflag [#allocation8], 1
    %14 = vsyncpa %s13, 0
    %15 = vsyncpa [#allocation6], 0
    %s16 = scalar_lea.sflag [#allocation6], 1
    %17 = vsyncpa %s16, 0
    loop: start=0, step=1, limit=4
    $region2: #{tpu_custom_call.1} parent=1 // loop_pre_header
      _
    $region3: #{tpu_custom_call.1} parent=1 // loop_header
      %s19 = sphi 0, %s23
      %p20 = scmp.ge.s32.totalorder %s19, 4
      %s26 = sphi 0, %s45
      %s27 = sphi 0, %s41
      %s28 = sphi 0, %s37
      %s29 = sphi 0, %s26
      %s30 = sphi 0, %s27
      %s31 = sphi 0, %s28
      %s32 = sphi 0, %s29
      %s33 = sphi 0, %s30
      %s34 = sphi 0, %s31
      %s50 = sphi 0, %s52
      %s53 = sphi 0, %s50
      %s54 = sphi 0, %s53
      %s70 = sphi 0, %s54
      %s82 = sphi 0, %s84
      %s85 = sphi 0, %s82
      %s86 = sphi 0, %s85
      %s102 = sphi 0, %s86
      %s108 = sphi 0, %s110
      %s111 = sphi 0, %s108
      %s112 = sphi 0, %s111
      %s128 = sphi 0, %s112
      %s134 = sphi 0, %s136
      %s137 = sphi 0, %s134
      %s138 = sphi 0, %s137
      %s154 = sphi 0, %s138
      %s164 = sphi 0, %s166
      %s167 = sphi 0, %s164
      %s168 = sphi 0, %s167
      %s184 = sphi 0, %s168
    $region4: #{tpu_custom_call.1} parent=1 // loop_header_branch
      %22 = sbr.rel (%p20) target = $region8
    $region5: #{tpu_custom_call.1} parent=1 // loop_body
      %s24 = ssub.s32 %s19, 1
      %s25 = ssub.s32 %s19, 2
      %s35 = sadd.s32 1, %s28
      %p36 = scmp.ge.s32.totalorder %s35, 1
      %s37 = scalar_select %p36, 0, %s35
      %s38 = sadd.s32 1, %s27
      %s39 = scalar_select %p36, %s38, %s27
      %p40 = scmp.ge.s32.totalorder %s39, 1
      %s41 = scalar_select %p40, 0, %s39
      %s42 = sadd.s32 1, %s26
      %s43 = scalar_select %p40, %s42, %s26
      %p44 = scmp.ge.s32.totalorder %s43, 2
      %s45 = scalar_select %p44, 0, %s43
      %s46 = ssub.s32 %s26, %s45
      %s47 = ssub.s32 %s28, %s37
      %s48 = sor.u32 %s46, %s47
      %p49 = scmp.eq.s32.totalorder %s48, 0
      %s51 = sadd.s32 %s50, 1
      %s52 = scalar_select %p49, %s50, %s51
      %p55 = pneg %p49
      %p56 = scmp.eq.s32.totalorder %s19, 1
      %p57 = por %p55, %p56
      %p58 = scmp.ne.s32.totalorder %s50, %s53
      %p59 = scmp.eq.s32.totalorder %s19, 0
      %p60 = por %p58, %p59
      %p61 = scmp.ne.s32.totalorder %s50, %s53
      %p62 = scmp.eq.s32.totalorder %s24, 1
      %p63 = por %p61, %p62
      %p64 = scmp.ne.s32.totalorder %s53, %s54
      %p65 = scmp.eq.s32.totalorder %s24, 0
      %p66 = por %p64, %p65
      %p67 = scmp.ne.s32.totalorder %s53, %s54
      %p68 = scmp.eq.s32.totalorder %s25, 1
      %p69 = por %p67, %p68
      %p71 = scmp.ne.s32.totalorder %s54, %s70
      %p72 = scmp.eq.s32.totalorder %s25, 0
      %p73 = por %p71, %p72
      %s74 = sadd.s32 %s28, 1
      %s75 = smul.u32 %s74, 4
      %s76 = sadd.s32 %s37, 1
      %s77 = smul.u32 %s76, 4
      %s78 = ssub.s32 %s26, %s45
      %s79 = ssub.s32 %s75, %s77
      %s80 = sor.u32 %s78, %s79
      %p81 = scmp.eq.s32.totalorder %s80, 0
      %s83 = sadd.s32 %s82, 1
      %s84 = scalar_select %p81, %s82, %s83
      %p87 = pneg %p81
      %p88 = scmp.eq.s32.totalorder %s19, 1
      %p89 = por %p87, %p88
      %p90 = scmp.ne.s32.totalorder %s82, %s85
      %p91 = scmp.eq.s32.totalorder %s19, 0
      %p92 = por %p90, %p91
      %p93 = scmp.ne.s32.totalorder %s82, %s85
      %p94 = scmp.eq.s32.totalorder %s24, 1
      %p95 = por %p93, %p94
      %p96 = scmp.ne.s32.totalorder %s85, %s86
      %p97 = scmp.eq.s32.totalorder %s24, 0
      %p98 = por %p96, %p97
      %p99 = scmp.ne.s32.totalorder %s85, %s86
      %p100 = scmp.eq.s32.totalorder %s25, 1
      %p101 = por %p99, %p100
      %p103 = scmp.ne.s32.totalorder %s86, %s102
      %p104 = scmp.eq.s32.totalorder %s25, 0
      %p105 = por %p103, %p104
      %s106 = ssub.s32 %s27, %s41
      %p107 = scmp.eq.s32.totalorder %s106, 0
      %s109 = sadd.s32 %s108, 1
      %s110 = scalar_select %p107, %s108, %s109
      %p113 = pneg %p107
      %p114 = scmp.eq.s32.totalorder %s19, 1
      %p115 = por %p113, %p114
      %p116 = scmp.ne.s32.totalorder %s108, %s111
      %p117 = scmp.eq.s32.totalorder %s19, 0
      %p118 = por %p116, %p117
      %p119 = scmp.ne.s32.totalorder %s108, %s111
      %p120 = scmp.eq.s32.totalorder %s24, 1
      %p121 = por %p119, %p120
      %p122 = scmp.ne.s32.totalorder %s111, %s112
      %p123 = scmp.eq.s32.totalorder %s24, 0
      %p124 = por %p122, %p123
      %p125 = scmp.ne.s32.totalorder %s111, %s112
      %p126 = scmp.eq.s32.totalorder %s25, 1
      %p127 = por %p125, %p126
      %p129 = scmp.ne.s32.totalorder %s112, %s128
      %p130 = scmp.eq.s32.totalorder %s25, 0
      %p131 = por %p129, %p130
      %s132 = ssub.s32 %s27, %s41
      %p133 = scmp.eq.s32.totalorder %s132, 0
      %s135 = sadd.s32 %s134, 1
      %s136 = scalar_select %p133, %s134, %s135
      %p139 = pneg %p133
      %p140 = scmp.eq.s32.totalorder %s19, 1
      %p141 = por %p139, %p140
      %p142 = scmp.ne.s32.totalorder %s134, %s137
      %p143 = scmp.eq.s32.totalorder %s19, 0
      %p144 = por %p142, %p143
      %p145 = scmp.ne.s32.totalorder %s134, %s137
      %p146 = scmp.eq.s32.totalorder %s24, 1
      %p147 = por %p145, %p146
      %p148 = scmp.ne.s32.totalorder %s137, %s138
      %p149 = scmp.eq.s32.totalorder %s24, 0
      %p150 = por %p148, %p149
      %p151 = scmp.ne.s32.totalorder %s137, %s138
      %p152 = scmp.eq.s32.totalorder %s25, 1
      %p153 = por %p151, %p152
      %p155 = scmp.ne.s32.totalorder %s138, %s154
      %p156 = scmp.eq.s32.totalorder %s25, 0
      %p157 = por %p155, %p156
      %s158 = ssub.s32 %s26, %s45
      %s159 = ssub.s32 %s27, %s41
      %s160 = sor.u32 %s158, %s159
      %s161 = ssub.s32 %s28, %s37
      %s162 = sor.u32 %s160, %s161
      %p163 = scmp.eq.s32.totalorder %s162, 0
      %s165 = sadd.s32 %s164, 1
      %s166 = scalar_select %p163, %s164, %s165
      %p169 = pneg %p163
      %p170 = scmp.eq.s32.totalorder %s19, 1
      %p171 = por %p169, %p170
      %p172 = scmp.ne.s32.totalorder %s164, %s167
      %p173 = scmp.eq.s32.totalorder %s19, 0
      %p174 = por %p172, %p173
      %p175 = scmp.ne.s32.totalorder %s164, %s167
      %p176 = scmp.eq.s32.totalorder %s24, 1
      %p177 = por %p175, %p176
      %p178 = scmp.ne.s32.totalorder %s167, %s168
      %p179 = scmp.eq.s32.totalorder %s24, 0
      %p180 = por %p178, %p179
      %p181 = scmp.ne.s32.totalorder %s167, %s168
      %p182 = scmp.eq.s32.totalorder %s25, 1
      %p183 = por %p181, %p182
      %p185 = scmp.ne.s32.totalorder %s168, %s184
      %p186 = scmp.eq.s32.totalorder %s25, 0
      %p187 = por %p185, %p186
      %p188 = scmp.le.s32.totalorder 1, %s19
      %p189 = scmp.lt.s32.totalorder %s19, 3
      %p190 = pnand %p188, %p189
      %p191 = pneg %p190
      // Predicated region
      $region9: #{tpu_custom_call.1} parent=5 // pred_check
        _
      $region10: #{tpu_custom_call.1} parent=5 // pred_check_branch
        %193 = sbr.rel (%p190) target = $region12
      $region11: #{tpu_custom_call.1} parent=5 // pred_region
        %s194 = ssub.s32 %s19, 1
        // Predicated region
        $region13: #{tpu_custom_call.1} parent=11 // pred_check
          %p195 = pneg %p124
        $region14: #{tpu_custom_call.1} parent=11 // pred_check_branch
          %197 = sbr.rel (%p195) target = $region16
        $region15: #{tpu_custom_call.1} parent=11 // pred_region
          %199 = vsyncadd [#allocation8], 0
          %s200 = smul.addr %s30, 4
          %s201 = smul.addr %s200, 4
          %s202 = scalar_lea.hbm %s2, %s201
          %s204 = sshll.u32 %s202, 4
          %s205 = int_to_ptr.hbm [resolvable:$true] %s204
          %s206 = sshll.u32 [#allocation9], 4
          %s207 = int_to_ptr.vmem [resolvable:$true] %s206
          %209 = dma.hbm_to_vmem [thread:$0]  %s205, 256, %s207, [#allocation8]
        $region16: #{tpu_custom_call.1} parent=11 // pred_fallthru
          _
        // Predicated region
        $region17: #{tpu_custom_call.1} parent=11 // pred_check
          %p210 = pneg %p150
        $region18: #{tpu_custom_call.1} parent=11 // pred_check_branch
          %212 = sbr.rel (%p210) target = $region20
        $region19: #{tpu_custom_call.1} parent=11 // pred_region
          %p213 = scmp.lt.s32.totalorder %s30, 0
          %s214 = scalar_select %p213, %s30, 0
          %s215 = smul.addr %s214, 8
          %s216 = scalar_lea.vmem %s3, %s215
        $region20: #{tpu_custom_call.1} parent=11 // pred_fallthru
          _
      $region12: #{tpu_custom_call.1} parent=5 // pred_fallthru
        _
      %p217 = scmp.lt.s32.totalorder %s19, 2
      // Predicated region
      $region21: #{tpu_custom_call.1} parent=5 // pred_check
        %p218 = pneg %p217
      $region22: #{tpu_custom_call.1} parent=5 // pred_check_branch
        %220 = sbr.rel (%p218) target = $region24
      $region23: #{tpu_custom_call.1} parent=5 // pred_region
        // Predicated region
        $region25: #{tpu_custom_call.1} parent=23 // pred_check
          %p221 = pneg %p60
        $region26: #{tpu_custom_call.1} parent=23 // pred_check_branch
          %223 = sbr.rel (%p221) target = $region28
        $region27: #{tpu_custom_call.1} parent=23 // pred_region
          %s224 = sand.u32 %s50, 1
          %s225 = scalar_lea.sflag [#allocation5], %s224
          %s226 = sand.u32 %s50, 1
          %s227 = smul.addr %s226, 64
          %s228 = scalar_lea.vmem [#allocation4], %s227
          %s229 = smul.u32 8, %s28
          %s230 = ssub.s32 10, %s229
          %p231 = scmp.lt.s32.totalorder %s230, 8
          %s232 = scalar_select %p231, %s230, 8
          %s233 = smul.u32 8, %s232
          %s234 = ssub.s32 64, %s233
          %s235 = sshll.u32 %s234, 4
          %236 = vsyncadd %s225, %s235
          %p237 = scmp.ne.s32.totalorder 0, %s233
          %s238 = smul.addr %s26, 20
          %s239 = sadd.s32 %s229, %s238
          %s240 = smul.addr %s239, 4
          %s241 = scalar_lea.hbm %s0, %s240
          %s242 = smul.u32 %s232, 4
          %s243 = smul.u32 %s242, 2
          %s244 = sshll.u32 %s241, 4
          %s245 = int_to_ptr.hbm [resolvable:$true] %s244
          %s246 = sshll.u32 %s228, 4
          %s247 = int_to_ptr.vmem [resolvable:$true] %s246
          %s248 = sshll.u32 %s243, 4
          %252 = dma.hbm_to_vmem [thread:$0]  (%p237), %s245, %s248, %s247, %s225, 640, 512, %s242
        $region28: #{tpu_custom_call.1} parent=23 // pred_fallthru
          _
        // Predicated region
        $region29: #{tpu_custom_call.1} parent=23 // pred_check
          %p253 = pneg %p92
        $region30: #{tpu_custom_call.1} parent=23 // pred_check_branch
          %255 = sbr.rel (%p253) target = $region32
        $region31: #{tpu_custom_call.1} parent=23 // pred_region
          %s256 = sand.u32 %s19, 1
          %s257 = scalar_lea.sflag [#allocation8], %s256
          %s258 = sand.u32 %s82, 1
          %s259 = smul.addr %s258, 16
          %s260 = scalar_lea.vmem [#allocation7], %s259
          %s261 = sadd.s32 %s28, 1
          %s262 = smul.u32 %s261, 4
          %s263 = smul.u32 2, %s262
          %265 = vsyncadd %s257, 0
          %s266 = smul.addr %s26, 20
          %s267 = sadd.s32 %s263, %s266
          %s268 = smul.addr %s267, 4
          %s269 = scalar_lea.hbm %s1, %s268
          %s270 = sshll.u32 %s269, 4
          %s271 = int_to_ptr.hbm [resolvable:$true] %s270
          %s272 = sshll.u32 %s260, 4
          %s273 = int_to_ptr.vmem [resolvable:$true] %s272
          %278 = dma.hbm_to_vmem [thread:$0]  %s271, 256, %s273, %s257, 640, 128, 8
        $region32: #{tpu_custom_call.1} parent=23 // pred_fallthru
          _
      $region24: #{tpu_custom_call.1} parent=5 // pred_fallthru
        _
      %p279 = scmp.le.s32.totalorder 1, %s19
      %p280 = scmp.lt.s32.totalorder %s19, 3
      %p281 = pnand %p279, %p280
      %p282 = pneg %p281
      // Predicated region
      $region33: #{tpu_custom_call.1} parent=5 // pred_check
        _
      $region34: #{tpu_custom_call.1} parent=5 // pred_check_branch
        %284 = sbr.rel (%p281) target = $region36
      $region35: #{tpu_custom_call.1} parent=5 // pred_region
        %s285 = ssub.s32 %s19, 1
        %s286 = sand.u32 %s53, 1
        %s287 = scalar_lea.sflag [#allocation5], %s286
        %s288 = sand.u32 %s53, 1
        %s289 = smul.addr %s288, 64
        %s290 = scalar_lea.vmem [#allocation4], %s289
        // Predicated region
        $region37: #{tpu_custom_call.1} parent=35 // pred_check
          %p291 = pneg %p66
        $region38: #{tpu_custom_call.1} parent=35 // pred_check_branch
          %293 = sbr.rel (%p291) target = $region40
        $region39: #{tpu_custom_call.1} parent=35 // pred_region
          %295 = dma.done %s287, 1024
        $region40: #{tpu_custom_call.1} parent=35 // pred_fallthru
          _
        %s296 = sand.u32 %s24, 1
        %s297 = scalar_lea.sflag [#allocation8], %s296
        %s298 = sand.u32 %s85, 1
        %s299 = smul.addr %s298, 16
        %s300 = scalar_lea.vmem [#allocation7], %s299
        // Predicated region
        $region41: #{tpu_custom_call.1} parent=35 // pred_check
          %p301 = pneg %p98
        $region42: #{tpu_custom_call.1} parent=35 // pred_check_branch
          %303 = sbr.rel (%p301) target = $region44
        $region43: #{tpu_custom_call.1} parent=35 // pred_region
          %305 = dma.done %s297, 256
        $region44: #{tpu_custom_call.1} parent=35 // pred_fallthru
          _
        // Predicated region
        $region45: #{tpu_custom_call.1} parent=35 // pred_check
          %p306 = pneg %p124
        $region46: #{tpu_custom_call.1} parent=35 // pred_check_branch
          %308 = sbr.rel (%p306) target = $region48
        $region47: #{tpu_custom_call.1} parent=35 // pred_region
          %310 = dma.done [#allocation8], 256
        $region48: #{tpu_custom_call.1} parent=35 // pred_fallthru
          _
        %s311 = sand.u32 %s53, 1
        %s312 = scalar_lea.sflag [#allocation5], %s311
        %s313 = sand.u32 %s53, 1
        %s314 = smul.addr %s313, 64
        %s315 = scalar_lea.vmem [#allocation4], %s314
        %p316 = pneg %p66
        %p317 = pneg %p63
        %s318 = sand.u32 %s24, 1
        %s319 = scalar_lea.sflag [#allocation8], %s318
        %s320 = sand.u32 %s85, 1
        %s321 = smul.addr %s320, 16
        %s322 = scalar_lea.vmem [#allocation7], %s321
        %p323 = pneg %p98
        %p324 = pneg %p95
        %p325 = pneg %p124
        %p326 = pneg %p121
        %p327 = scmp.lt.s32.totalorder %s30, 0
        %s328 = scalar_select %p327, %s30, 0
        %s329 = smul.addr %s328, 8
        %s330 = scalar_lea.vmem %s3, %s329
        %p331 = pneg %p150
        %p332 = pneg %p147
        %p333 = pneg %p180
        %p334 = pneg %p177
        %s335 = sand.u32 %s167, 1
        %s336 = scalar_lea.sflag [#allocation6], %s335
        %s337 = sand.u32 %s167, 1
        %s338 = smul.addr %s337, 64
        %s339 = scalar_lea.vmem [#allocation10], %s338
        %s340 = smul.u32 8, %s31
        %s341 = ssub.s32 10, %s340
        %p342 = scmp.lt.s32.totalorder %s341, 8
        %s343 = scalar_select %p342, %s341, 8
        %s344 = smul.u32 8, %s343
        %s345 = sadd.s32 %s31, 1
        %s346 = smul.u32 %s345, 4
        %s347 = smul.u32 2, %s346
        %p348 = scmp.lt.s32.totalorder %s30, 0
        %s349 = scalar_select %p348, %s30, 0
        %s350 = smul.addr %s349, 8
        %s351 = scalar_lea.vmem %s3, %s350
        %s352 = smul.u32 8, %s31
        %v354 = vld [vmem:[%s290] sm:$0xff]
        %v355 = vld [vmem:[%s290 + $0x8] sm:$0xff]
        %v356 = vld [vmem:[%s290 + $0x10] sm:$0xff]
        %v357 = vld [vmem:[%s290 + $0x18] sm:$0xff]
        %v358 = vld [vmem:[%s290 + $0x20] sm:$0xff]
        %v359 = vld [vmem:[%s290 + $0x28] sm:$0xff]
        %v360 = vld [vmem:[%s290 + $0x30] sm:$0xff]
        %v361 = vld [vmem:[%s290 + $0x38] sm:$0xff]
        %362 = vst [vmem:[#allocation2] sm:$0xff] %v354
        %363 = vst [vmem:[#allocation2 + $0x8] sm:$0xff] %v355
        %364 = vst [vmem:[#allocation2 + $0x10] sm:$0xff] %v356
        %365 = vst [vmem:[#allocation2 + $0x18] sm:$0xff] %v357
        %366 = vst [vmem:[#allocation2 + $0x28] sm:$0xff] %v358
        %367 = vst [vmem:[#allocation2 + $0x30] sm:$0xff] %v359
        %368 = vst [vmem:[#allocation2 + $0x38] sm:$0xff] %v360
        %369 = vst [vmem:[#allocation2 + $0x40] sm:$0xff] %v361
        %v370 = vld [vmem:[%s300] sm:$0xff]
        %v371 = vld [vmem:[%s300 + $0x8] sm:$0xff]
        %372 = vst [vmem:[#allocation2 + $0x20] sm:$0xff] %v370
        %373 = vst [vmem:[#allocation2 + $0x48] sm:$0xff] %v371
        %v374 = vld [vmem:[#allocation2] sm:$0xff]
        %v375 = vld [vmem:[#allocation2 + $0x8] sm:$0xff]
        %v376 = vld [vmem:[#allocation2 + $0x10] sm:$0xff]
        %v377 = vld [vmem:[#allocation2 + $0x18] sm:$0xff]
        %v378 = vld [vmem:[#allocation2 + $0x28] sm:$0xff]
        %v379 = vld [vmem:[#allocation2 + $0x30] sm:$0xff]
        %v380 = vld [vmem:[#allocation2 + $0x38] sm:$0xff]
        %v381 = vld [vmem:[#allocation2 + $0x40] sm:$0xff]
        %382 = vst [vmem:[#allocation3] sm:$0xff] %v374
        %383 = vst [vmem:[#allocation3 + $0x8] sm:$0xff] %v375
        %384 = vst [vmem:[#allocation3 + $0x10] sm:$0xff] %v376
        %385 = vst [vmem:[#allocation3 + $0x18] sm:$0xff] %v377
        %386 = vst [vmem:[#allocation3 + $0x20] sm:$0xff] %v378
        %387 = vst [vmem:[#allocation3 + $0x28] sm:$0xff] %v379
        %388 = vst [vmem:[#allocation3 + $0x30] sm:$0xff] %v380
        %389 = vst [vmem:[#allocation3 + $0x38] sm:$0xff] %v381
        %v390 = vld [vmem:[#allocation2] sm:$0xff]
        %v391 = vld [vmem:[#allocation2 + $0x8] sm:$0xff]
        %v392 = vld [vmem:[#allocation2 + $0x10] sm:$0xff]
        %v393 = vld [vmem:[#allocation2 + $0x18] sm:$0xff]
        %v394 = vld [vmem:[#allocation2 + $0x20] sm:$0xf]
        %v395 = vld [vmem:[#allocation2 + $0x28] sm:$0xff]
        %v396 = vld [vmem:[#allocation2 + $0x30] sm:$0xff]
        %v397 = vld [vmem:[#allocation2 + $0x38] sm:$0xff]
        %v398 = vld [vmem:[#allocation2 + $0x40] sm:$0xff]
        %v399 = vld [vmem:[#allocation2 + $0x48] sm:$0xf]
        %410 = vrot.lane.b32.xlu0 %v390, 127
        %v411 = vpop.permute.xlu0 %410
        %412 = vrot.lane.b32.xlu0 %v391, 127
        %v413 = vpop.permute.xlu0 %412
        %414 = vrot.lane.b32.xlu0 %v392, 127
        %v415 = vpop.permute.xlu0 %414
        %416 = vrot.lane.b32.xlu0 %v393, 127
        %v417 = vpop.permute.xlu0 %416
        %418 = vrot.lane.b32.xlu0 %v394, 127
        %v419 = vpop.permute.xlu0 %418
        %420 = vrot.lane.b32.xlu0 %v395, 127
        %v421 = vpop.permute.xlu0 %420
        %422 = vrot.lane.b32.xlu0 %v396, 127
        %v423 = vpop.permute.xlu0 %422
        %424 = vrot.lane.b32.xlu0 %v397, 127
        %v425 = vpop.permute.xlu0 %424
        %426 = vrot.lane.b32.xlu0 %v398, 127
        %v427 = vpop.permute.xlu0 %426
        %428 = vrot.lane.b32.xlu0 %v399, 127
        %v429 = vpop.permute.xlu0 %428
        %v430 = vrot.slane %v411, 4
        %v431 = vrot.slane %v413, 4
        %v432 = vrot.slane %v415, 4
        %v433 = vrot.slane %v417, 4
        %v434 = vrot.slane %v419, 4
        %v435 = vrot.slane %v421, 4
        %v436 = vrot.slane %v423, 4
        %v437 = vrot.slane %v425, 4
        %v438 = vrot.slane %v427, 4
        %v439 = vrot.slane %v429, 4
        %vm440 = vcmask 1043456
        %v441 = vsel %vm440, %v430, %v431
        %vm442 = vcmask 1039360
        %v443 = vsel %vm442, %v411, %v441
        %v444 = vsel %vm440, %v431, %v432
        %v445 = vsel %vm442, %v413, %v444
        %v446 = vsel %vm440, %v432, %v433
        %v447 = vsel %vm442, %v415, %v446
        %v448 = vsel %vm440, %v433, %v434
        %v449 = vsel %vm442, %v417, %v448
        %v450 = vsel %vm440, %v435, %v436
        %v451 = vsel %vm442, %v421, %v450
        %v452 = vsel %vm440, %v436, %v437
        %v453 = vsel %vm442, %v423, %v452
        %v454 = vsel %vm440, %v437, %v438
        %v455 = vsel %vm442, %v425, %v454
        %v456 = vsel %vm440, %v438, %v439
        %v457 = vsel %vm442, %v427, %v456
        %466 = vst [vmem:[#allocation3 + $0x40] sm:$0xff] %v443
        %467 = vst [vmem:[#allocation3 + $0x48] sm:$0xff] %v445
        %468 = vst [vmem:[#allocation3 + $0x50] sm:$0xff] %v447
        %469 = vst [vmem:[#allocation3 + $0x58] sm:$0xff] %v449
        %470 = vst [vmem:[#allocation3 + $0x60] sm:$0xff] %v451
        %471 = vst [vmem:[#allocation3 + $0x68] sm:$0xff] %v453
        %472 = vst [vmem:[#allocation3 + $0x70] sm:$0xff] %v455
        %473 = vst [vmem:[#allocation3 + $0x78] sm:$0xff] %v457
        %v474 = vld [vmem:[#allocation2] sm:$0xff]
        %v475 = vld [vmem:[#allocation2 + $0x8] sm:$0xff]
        %v476 = vld [vmem:[#allocation2 + $0x10] sm:$0xff]
        %v477 = vld [vmem:[#allocation2 + $0x18] sm:$0xff]
        %v478 = vld [vmem:[#allocation2 + $0x20] sm:$0xf]
        %v479 = vld [vmem:[#allocation2 + $0x28] sm:$0xff]
        %v480 = vld [vmem:[#allocation2 + $0x30] sm:$0xff]
        %v481 = vld [vmem:[#allocation2 + $0x38] sm:$0xff]
        %v482 = vld [vmem:[#allocation2 + $0x40] sm:$0xff]
        %v483 = vld [vmem:[#allocation2 + $0x48] sm:$0xf]
        %494 = vrot.lane.b32.xlu0 %v474, 126
        %v495 = vpop.permute.xlu0 %494
        %496 = vrot.lane.b32.xlu0 %v475, 126
        %v497 = vpop.permute.xlu0 %496
        %498 = vrot.lane.b32.xlu0 %v476, 126
        %v499 = vpop.permute.xlu0 %498
        %500 = vrot.lane.b32.xlu0 %v477, 126
        %v501 = vpop.permute.xlu0 %500
        %502 = vrot.lane.b32.xlu0 %v478, 126
        %v503 = vpop.permute.xlu0 %502
        %504 = vrot.lane.b32.xlu0 %v479, 126
        %v505 = vpop.permute.xlu0 %504
        %506 = vrot.lane.b32.xlu0 %v480, 126
        %v507 = vpop.permute.xlu0 %506
        %508 = vrot.lane.b32.xlu0 %v481, 126
        %v509 = vpop.permute.xlu0 %508
        %510 = vrot.lane.b32.xlu0 %v482, 126
        %v511 = vpop.permute.xlu0 %510
        %512 = vrot.lane.b32.xlu0 %v483, 126
        %v513 = vpop.permute.xlu0 %512
        %v514 = vrot.slane %v495, 4
        %v515 = vrot.slane %v497, 4
        %v516 = vrot.slane %v499, 4
        %v517 = vrot.slane %v501, 4
        %v518 = vrot.slane %v503, 4
        %v519 = vrot.slane %v505, 4
        %v520 = vrot.slane %v507, 4
        %v521 = vrot.slane %v509, 4
        %v522 = vrot.slane %v511, 4
        %v523 = vrot.slane %v513, 4
        %v524 = vsel %vm440, %v514, %v515
        %vm525 = vcmask 1031168
        %v526 = vsel %vm525, %v495, %v524
        %v527 = vsel %vm440, %v515, %v516
        %v528 = vsel %vm525, %v497, %v527
        %v529 = vsel %vm440, %v516, %v517
        %v530 = vsel %vm525, %v499, %v529
        %v531 = vsel %vm440, %v517, %v518
        %v532 = vsel %vm525, %v501, %v531
        %v533 = vsel %vm440, %v519, %v520
        %v534 = vsel %vm525, %v505, %v533
        %v535 = vsel %vm440, %v520, %v521
        %v536 = vsel %vm525, %v507, %v535
        %v537 = vsel %vm440, %v521, %v522
        %v538 = vsel %vm525, %v509, %v537
        %v539 = vsel %vm440, %v522, %v523
        %v540 = vsel %vm525, %v511, %v539
        %549 = vst [vmem:[#allocation3 + $0x80] sm:$0xff] %v526
        %550 = vst [vmem:[#allocation3 + $0x88] sm:$0xff] %v528
        %551 = vst [vmem:[#allocation3 + $0x90] sm:$0xff] %v530
        %552 = vst [vmem:[#allocation3 + $0x98] sm:$0xff] %v532
        %553 = vst [vmem:[#allocation3 + $0xa0] sm:$0xff] %v534
        %554 = vst [vmem:[#allocation3 + $0xa8] sm:$0xff] %v536
        %555 = vst [vmem:[#allocation3 + $0xb0] sm:$0xff] %v538
        %556 = vst [vmem:[#allocation3 + $0xb8] sm:$0xff] %v540
        %v557 = vld [vmem:[#allocation2] sm:$0xff]
        %v558 = vld [vmem:[#allocation2 + $0x8] sm:$0xff]
        %v559 = vld [vmem:[#allocation2 + $0x10] sm:$0xff]
        %v560 = vld [vmem:[#allocation2 + $0x18] sm:$0xff]
        %v561 = vld [vmem:[#allocation2 + $0x20] sm:$0xf]
        %v562 = vld [vmem:[#allocation2 + $0x28] sm:$0xff]
        %v563 = vld [vmem:[#allocation2 + $0x30] sm:$0xff]
        %v564 = vld [vmem:[#allocation2 + $0x38] sm:$0xff]
        %v565 = vld [vmem:[#allocation2 + $0x40] sm:$0xff]
        %v566 = vld [vmem:[#allocation2 + $0x48] sm:$0xf]
        %577 = vrot.lane.b32.xlu0 %v557, 118
        %v578 = vpop.permute.xlu0 %577
        %579 = vrot.lane.b32.xlu0 %v558, 118
        %v580 = vpop.permute.xlu0 %579
        %581 = vrot.lane.b32.xlu0 %v559, 118
        %v582 = vpop.permute.xlu0 %581
        %583 = vrot.lane.b32.xlu0 %v560, 118
        %v584 = vpop.permute.xlu0 %583
        %585 = vrot.lane.b32.xlu0 %v561, 118
        %v586 = vpop.permute.xlu0 %585
        %587 = vrot.lane.b32.xlu0 %v562, 118
        %v588 = vpop.permute.xlu0 %587
        %589 = vrot.lane.b32.xlu0 %v563, 118
        %v590 = vpop.permute.xlu0 %589
        %591 = vrot.lane.b32.xlu0 %v564, 118
        %v592 = vpop.permute.xlu0 %591
        %593 = vrot.lane.b32.xlu0 %v565, 118
        %v594 = vpop.permute.xlu0 %593
        %595 = vrot.lane.b32.xlu0 %v566, 118
        %v596 = vpop.permute.xlu0 %595
        %v597 = vrot.slane %v578, 4
        %v598 = vrot.slane %v580, 4
        %v599 = vrot.slane %v582, 4
        %v600 = vrot.slane %v584, 4
        %v601 = vrot.slane %v586, 4
        %v602 = vrot.slane %v588, 4
        %v603 = vrot.slane %v590, 4
        %v604 = vrot.slane %v592, 4
        %v605 = vrot.slane %v594, 4
        %v606 = vrot.slane %v596, 4
        %v607 = vsel %vm440, %v597, %v598
        %vm608 = vcmask 965632
        %v609 = vsel %vm608, %v578, %v607
        %v610 = vsel %vm440, %v598, %v599
        %v611 = vsel %vm608, %v580, %v610
        %v612 = vsel %vm440, %v599, %v600
        %v613 = vsel %vm608, %v582, %v612
        %v614 = vsel %vm440, %v600, %v601
        %v615 = vsel %vm608, %v584, %v614
        %v616 = vsel %vm440, %v602, %v603
        %v617 = vsel %vm608, %v588, %v616
        %v618 = vsel %vm440, %v603, %v604
        %v619 = vsel %vm608, %v590, %v618
        %v620 = vsel %vm440, %v604, %v605
        %v621 = vsel %vm608, %v592, %v620
        %v622 = vsel %vm440, %v605, %v606
        %v623 = vsel %vm608, %v594, %v622
        %632 = vst [vmem:[#allocation3 + $0xc0] sm:$0xff] %v609
        %633 = vst [vmem:[#allocation3 + $0xc8] sm:$0xff] %v611
        %634 = vst [vmem:[#allocation3 + $0xd0] sm:$0xff] %v613
        %635 = vst [vmem:[#allocation3 + $0xd8] sm:$0xff] %v615
        %636 = vst [vmem:[#allocation3 + $0xe0] sm:$0xff] %v617
        %637 = vst [vmem:[#allocation3 + $0xe8] sm:$0xff] %v619
        %638 = vst [vmem:[#allocation3 + $0xf0] sm:$0xff] %v621
        %639 = vst [vmem:[#allocation3 + $0xf8] sm:$0xff] %v623
        %v640 = vld [vmem:[#allocation2] sm:$0xff]
        %v641 = vld [vmem:[#allocation2 + $0x8] sm:$0xff]
        %v642 = vld [vmem:[#allocation2 + $0x10] sm:$0xff]
        %v643 = vld [vmem:[#allocation2 + $0x18] sm:$0xff]
        %v644 = vld [vmem:[#allocation2 + $0x20] sm:$0xf]
        %v645 = vld [vmem:[#allocation2 + $0x28] sm:$0xff]
        %v646 = vld [vmem:[#allocation2 + $0x30] sm:$0xff]
        %v647 = vld [vmem:[#allocation2 + $0x38] sm:$0xff]
        %v648 = vld [vmem:[#allocation2 + $0x40] sm:$0xff]
        %v649 = vld [vmem:[#allocation2 + $0x48] sm:$0xf]
        %660 = vrot.lane.b32.xlu0 %v640, 117
        %v661 = vpop.permute.xlu0 %660
        %662 = vrot.lane.b32.xlu0 %v641, 117
        %v663 = vpop.permute.xlu0 %662
        %664 = vrot.lane.b32.xlu0 %v642, 117
        %v665 = vpop.permute.xlu0 %664
        %666 = vrot.lane.b32.xlu0 %v643, 117
        %v667 = vpop.permute.xlu0 %666
        %668 = vrot.lane.b32.xlu0 %v644, 117
        %v669 = vpop.permute.xlu0 %668
        %670 = vrot.lane.b32.xlu0 %v645, 117
        %v671 = vpop.permute.xlu0 %670
        %672 = vrot.lane.b32.xlu0 %v646, 117
        %v673 = vpop.permute.xlu0 %672
        %674 = vrot.lane.b32.xlu0 %v647, 117
        %v675 = vpop.permute.xlu0 %674
        %676 = vrot.lane.b32.xlu0 %v648, 117
        %v677 = vpop.permute.xlu0 %676
        %678 = vrot.lane.b32.xlu0 %v649, 117
        %v679 = vpop.permute.xlu0 %678
        %v680 = vrot.slane %v661, 4
        %v681 = vrot.slane %v663, 4
        %v682 = vrot.slane %v665, 4
        %v683 = vrot.slane %v667, 4
        %v684 = vrot.slane %v669, 4
        %v685 = vrot.slane %v671, 4
        %v686 = vrot.slane %v673, 4
        %v687 = vrot.slane %v675, 4
        %v688 = vrot.slane %v677, 4
        %v689 = vrot.slane %v679, 4
        %v690 = vsel %vm440, %v680, %v681
        %vm691 = vcmask 957440
        %v692 = vsel %vm691, %v661, %v690
        %v693 = vsel %vm440, %v681, %v682
        %v694 = vsel %vm691, %v663, %v693
        %v695 = vsel %vm440, %v682, %v683
        %v696 = vsel %vm691, %v665, %v695
        %v697 = vsel %vm440, %v683, %v684
        %v698 = vsel %vm691, %v667, %v697
        %v699 = vsel %vm440, %v685, %v686
        %v700 = vsel %vm691, %v671, %v699
        %v701 = vsel %vm440, %v686, %v687
        %v702 = vsel %vm691, %v673, %v701
        %v703 = vsel %vm440, %v687, %v688
        %v704 = vsel %vm691, %v675, %v703
        %v705 = vsel %vm440, %v688, %v689
        %v706 = vsel %vm691, %v677, %v705
        %715 = vst [vmem:[#allocation3 + $0x100] sm:$0xff] %v692
        %716 = vst [vmem:[#allocation3 + $0x108] sm:$0xff] %v694
        %717 = vst [vmem:[#allocation3 + $0x110] sm:$0xff] %v696
        %718 = vst [vmem:[#allocation3 + $0x118] sm:$0xff] %v698
        %719 = vst [vmem:[#allocation3 + $0x120] sm:$0xff] %v700
        %720 = vst [vmem:[#allocation3 + $0x128] sm:$0xff] %v702
        %721 = vst [vmem:[#allocation3 + $0x130] sm:$0xff] %v704
        %722 = vst [vmem:[#allocation3 + $0x138] sm:$0xff] %v706
        %v723 = vld [vmem:[#allocation2] sm:$0xff]
        %v724 = vld [vmem:[#allocation2 + $0x8] sm:$0xff]
        %v725 = vld [vmem:[#allocation2 + $0x10] sm:$0xff]
        %v726 = vld [vmem:[#allocation2 + $0x18] sm:$0xff]
        %v727 = vld [vmem:[#allocation2 + $0x20] sm:$0xf]
        %v728 = vld [vmem:[#allocation2 + $0x28] sm:$0xff]
        %v729 = vld [vmem:[#allocation2 + $0x30] sm:$0xff]
        %v730 = vld [vmem:[#allocation2 + $0x38] sm:$0xff]
        %v731 = vld [vmem:[#allocation2 + $0x40] sm:$0xff]
        %v732 = vld [vmem:[#allocation2 + $0x48] sm:$0xf]
        %743 = vrot.lane.b32.xlu0 %v723, 116
        %v744 = vpop.permute.xlu0 %743
        %745 = vrot.lane.b32.xlu0 %v724, 116
        %v746 = vpop.permute.xlu0 %745
        %747 = vrot.lane.b32.xlu0 %v725, 116
        %v748 = vpop.permute.xlu0 %747
        %749 = vrot.lane.b32.xlu0 %v726, 116
        %v750 = vpop.permute.xlu0 %749
        %751 = vrot.lane.b32.xlu0 %v727, 116
        %v752 = vpop.permute.xlu0 %751
        %753 = vrot.lane.b32.xlu0 %v728, 116
        %v754 = vpop.permute.xlu0 %753
        %755 = vrot.lane.b32.xlu0 %v729, 116
        %v756 = vpop.permute.xlu0 %755
        %757 = vrot.lane.b32.xlu0 %v730, 116
        %v758 = vpop.permute.xlu0 %757
        %759 = vrot.lane.b32.xlu0 %v731, 116
        %v760 = vpop.permute.xlu0 %759
        %761 = vrot.lane.b32.xlu0 %v732, 116
        %v762 = vpop.permute.xlu0 %761
        %v763 = vrot.slane %v744, 4
        %v764 = vrot.slane %v746, 4
        %v765 = vrot.slane %v748, 4
        %v766 = vrot.slane %v750, 4
        %v767 = vrot.slane %v752, 4
        %v768 = vrot.slane %v754, 4
        %v769 = vrot.slane %v756, 4
        %v770 = vrot.slane %v758, 4
        %v771 = vrot.slane %v760, 4
        %v772 = vrot.slane %v762, 4
        %v773 = vsel %vm440, %v763, %v764
        %vm774 = vcmask 949248
        %v775 = vsel %vm774, %v744, %v773
        %v776 = vsel %vm440, %v764, %v765
        %v777 = vsel %vm774, %v746, %v776
        %v778 = vsel %vm440, %v765, %v766
        %v779 = vsel %vm774, %v748, %v778
        %v780 = vsel %vm440, %v766, %v767
        %v781 = vsel %vm774, %v750, %v780
        %v782 = vsel %vm440, %v768, %v769
        %v783 = vsel %vm774, %v754, %v782
        %v784 = vsel %vm440, %v769, %v770
        %v785 = vsel %vm774, %v756, %v784
        %v786 = vsel %vm440, %v770, %v771
        %v787 = vsel %vm774, %v758, %v786
        %v788 = vsel %vm440, %v771, %v772
        %v789 = vsel %vm774, %v760, %v788
        %798 = vst [vmem:[#allocation3 + $0x140] sm:$0xff] %v775
        %799 = vst [vmem:[#allocation3 + $0x148] sm:$0xff] %v777
        %800 = vst [vmem:[#allocation3 + $0x150] sm:$0xff] %v779
        %801 = vst [vmem:[#allocation3 + $0x158] sm:$0xff] %v781
        %802 = vst [vmem:[#allocation3 + $0x160] sm:$0xff] %v783
        %803 = vst [vmem:[#allocation3 + $0x168] sm:$0xff] %v785
        %804 = vst [vmem:[#allocation3 + $0x170] sm:$0xff] %v787
        %805 = vst [vmem:[#allocation3 + $0x178] sm:$0xff] %v789
        %v806 = vld [vmem:[#allocation2] sm:$0xff]
        %v807 = vld [vmem:[#allocation2 + $0x8] sm:$0xff]
        %v808 = vld [vmem:[#allocation2 + $0x10] sm:$0xff]
        %v809 = vld [vmem:[#allocation2 + $0x18] sm:$0xff]
        %v810 = vld [vmem:[#allocation2 + $0x20] sm:$0xf]
        %v811 = vld [vmem:[#allocation2 + $0x28] sm:$0xff]
        %v812 = vld [vmem:[#allocation2 + $0x30] sm:$0xff]
        %v813 = vld [vmem:[#allocation2 + $0x38] sm:$0xff]
        %v814 = vld [vmem:[#allocation2 + $0x40] sm:$0xff]
        %v815 = vld [vmem:[#allocation2 + $0x48] sm:$0xf]
        %826 = vrot.lane.b32.xlu0 %v806, 108
        %v827 = vpop.permute.xlu0 %826
        %828 = vrot.lane.b32.xlu0 %v807, 108
        %v829 = vpop.permute.xlu0 %828
        %830 = vrot.lane.b32.xlu0 %v808, 108
        %v831 = vpop.permute.xlu0 %830
        %832 = vrot.lane.b32.xlu0 %v809, 108
        %v833 = vpop.permute.xlu0 %832
        %834 = vrot.lane.b32.xlu0 %v810, 108
        %v835 = vpop.permute.xlu0 %834
        %836 = vrot.lane.b32.xlu0 %v811, 108
        %v837 = vpop.permute.xlu0 %836
        %838 = vrot.lane.b32.xlu0 %v812, 108
        %v839 = vpop.permute.xlu0 %838
        %840 = vrot.lane.b32.xlu0 %v813, 108
        %v841 = vpop.permute.xlu0 %840
        %842 = vrot.lane.b32.xlu0 %v814, 108
        %v843 = vpop.permute.xlu0 %842
        %844 = vrot.lane.b32.xlu0 %v815, 108
        %v845 = vpop.permute.xlu0 %844
        %v846 = vrot.slane %v827, 4
        %v847 = vrot.slane %v829, 4
        %v848 = vrot.slane %v831, 4
        %v849 = vrot.slane %v833, 4
        %v850 = vrot.slane %v835, 4
        %v851 = vrot.slane %v837, 4
        %v852 = vrot.slane %v839, 4
        %v853 = vrot.slane %v841, 4
        %v854 = vrot.slane %v843, 4
        %v855 = vrot.slane %v845, 4
        %v856 = vsel %vm440, %v846, %v847
        %vm857 = vcmask 883712
        %v858 = vsel %vm857, %v827, %v856
        %v859 = vsel %vm440, %v847, %v848
        %v860 = vsel %vm857, %v829, %v859
        %v861 = vsel %vm440, %v848, %v849
        %v862 = vsel %vm857, %v831, %v861
        %v863 = vsel %vm440, %v849, %v850
        %v864 = vsel %vm857, %v833, %v863
        %v865 = vsel %vm440, %v851, %v852
        %v866 = vsel %vm857, %v837, %v865
        %v867 = vsel %vm440, %v852, %v853
        %v868 = vsel %vm857, %v839, %v867
        %v869 = vsel %vm440, %v853, %v854
        %v870 = vsel %vm857, %v841, %v869
        %v871 = vsel %vm440, %v854, %v855
        %v872 = vsel %vm857, %v843, %v871
        %881 = vst [vmem:[#allocation3 + $0x180] sm:$0xff] %v858
        %882 = vst [vmem:[#allocation3 + $0x188] sm:$0xff] %v860
        %883 = vst [vmem:[#allocation3 + $0x190] sm:$0xff] %v862
        %884 = vst [vmem:[#allocation3 + $0x198] sm:$0xff] %v864
        %885 = vst [vmem:[#allocation3 + $0x1a0] sm:$0xff] %v866
        %886 = vst [vmem:[#allocation3 + $0x1a8] sm:$0xff] %v868
        %887 = vst [vmem:[#allocation3 + $0x1b0] sm:$0xff] %v870
        %888 = vst [vmem:[#allocation3 + $0x1b8] sm:$0xff] %v872
        %v889 = vld [vmem:[#allocation2] sm:$0xff]
        %v890 = vld [vmem:[#allocation2 + $0x8] sm:$0xff]
        %v891 = vld [vmem:[#allocation2 + $0x10] sm:$0xff]
        %v892 = vld [vmem:[#allocation2 + $0x18] sm:$0xff]
        %v893 = vld [vmem:[#allocation2 + $0x20] sm:$0xf]
        %v894 = vld [vmem:[#allocation2 + $0x28] sm:$0xff]
        %v895 = vld [vmem:[#allocation2 + $0x30] sm:$0xff]
        %v896 = vld [vmem:[#allocation2 + $0x38] sm:$0xff]
        %v897 = vld [vmem:[#allocation2 + $0x40] sm:$0xff]
        %v898 = vld [vmem:[#allocation2 + $0x48] sm:$0xf]
        %909 = vrot.lane.b32.xlu0 %v889, 107
        %v910 = vpop.permute.xlu0 %909
        %911 = vrot.lane.b32.xlu0 %v890, 107
        %v912 = vpop.permute.xlu0 %911
        %913 = vrot.lane.b32.xlu0 %v891, 107
        %v914 = vpop.permute.xlu0 %913
        %915 = vrot.lane.b32.xlu0 %v892, 107
        %v916 = vpop.permute.xlu0 %915
        %917 = vrot.lane.b32.xlu0 %v893, 107
        %v918 = vpop.permute.xlu0 %917
        %919 = vrot.lane.b32.xlu0 %v894, 107
        %v920 = vpop.permute.xlu0 %919
        %921 = vrot.lane.b32.xlu0 %v895, 107
        %v922 = vpop.permute.xlu0 %921
        %923 = vrot.lane.b32.xlu0 %v896, 107
        %v924 = vpop.permute.xlu0 %923
        %925 = vrot.lane.b32.xlu0 %v897, 107
        %v926 = vpop.permute.xlu0 %925
        %927 = vrot.lane.b32.xlu0 %v898, 107
        %v928 = vpop.permute.xlu0 %927
        %v929 = vrot.slane %v910, 4
        %v930 = vrot.slane %v912, 4
        %v931 = vrot.slane %v914, 4
        %v932 = vrot.slane %v916, 4
        %v933 = vrot.slane %v918, 4
        %v934 = vrot.slane %v920, 4
        %v935 = vrot.slane %v922, 4
        %v936 = vrot.slane %v924, 4
        %v937 = vrot.slane %v926, 4
        %v938 = vrot.slane %v928, 4
        %v939 = vsel %vm440, %v929, %v930
        %vm940 = vcmask 875520
        %v941 = vsel %vm940, %v910, %v939
        %v942 = vsel %vm440, %v930, %v931
        %v943 = vsel %vm940, %v912, %v942
        %v944 = vsel %vm440, %v931, %v932
        %v945 = vsel %vm940, %v914, %v944
        %v946 = vsel %vm440, %v932, %v933
        %v947 = vsel %vm940, %v916, %v946
        %v948 = vsel %vm440, %v934, %v935
        %v949 = vsel %vm940, %v920, %v948
        %v950 = vsel %vm440, %v935, %v936
        %v951 = vsel %vm940, %v922, %v950
        %v952 = vsel %vm440, %v936, %v937
        %v953 = vsel %vm940, %v924, %v952
        %v954 = vsel %vm440, %v937, %v938
        %v955 = vsel %vm940, %v926, %v954
        %964 = vst [vmem:[#allocation3 + $0x1c0] sm:$0xff] %v941
        %965 = vst [vmem:[#allocation3 + $0x1c8] sm:$0xff] %v943
        %966 = vst [vmem:[#allocation3 + $0x1d0] sm:$0xff] %v945
        %967 = vst [vmem:[#allocation3 + $0x1d8] sm:$0xff] %v947
        %968 = vst [vmem:[#allocation3 + $0x1e0] sm:$0xff] %v949
        %969 = vst [vmem:[#allocation3 + $0x1e8] sm:$0xff] %v951
        %970 = vst [vmem:[#allocation3 + $0x1f0] sm:$0xff] %v953
        %971 = vst [vmem:[#allocation3 + $0x1f8] sm:$0xff] %v955
        %v972 = vld [vmem:[#allocation2] sm:$0xff]
        %v973 = vld [vmem:[#allocation2 + $0x8] sm:$0xff]
        %v974 = vld [vmem:[#allocation2 + $0x10] sm:$0xff]
        %v975 = vld [vmem:[#allocation2 + $0x18] sm:$0xff]
        %v976 = vld [vmem:[#allocation2 + $0x20] sm:$0xf]
        %v977 = vld [vmem:[#allocation2 + $0x28] sm:$0xff]
        %v978 = vld [vmem:[#allocation2 + $0x30] sm:$0xff]
        %v979 = vld [vmem:[#allocation2 + $0x38] sm:$0xff]
        %v980 = vld [vmem:[#allocation2 + $0x40] sm:$0xff]
        %v981 = vld [vmem:[#allocation2 + $0x48] sm:$0xf]
        %992 = vrot.lane.b32.xlu0 %v972, 106
        %v993 = vpop.permute.xlu0 %992
        %994 = vrot.lane.b32.xlu0 %v973, 106
        %v995 = vpop.permute.xlu0 %994
        %996 = vrot.lane.b32.xlu0 %v974, 106
        %v997 = vpop.permute.xlu0 %996
        %998 = vrot.lane.b32.xlu0 %v975, 106
        %v999 = vpop.permute.xlu0 %998
        %1000 = vrot.lane.b32.xlu0 %v976, 106
        %v1001 = vpop.permute.xlu0 %1000
        %1002 = vrot.lane.b32.xlu0 %v977, 106
        %v1003 = vpop.permute.xlu0 %1002
        %1004 = vrot.lane.b32.xlu0 %v978, 106
        %v1005 = vpop.permute.xlu0 %1004
        %1006 = vrot.lane.b32.xlu0 %v979, 106
        %v1007 = vpop.permute.xlu0 %1006
        %1008 = vrot.lane.b32.xlu0 %v980, 106
        %v1009 = vpop.permute.xlu0 %1008
        %1010 = vrot.lane.b32.xlu0 %v981, 106
        %v1011 = vpop.permute.xlu0 %1010
        %v1012 = vrot.slane %v993, 4
        %v1013 = vrot.slane %v995, 4
        %v1014 = vrot.slane %v997, 4
        %v1015 = vrot.slane %v999, 4
        %v1016 = vrot.slane %v1001, 4
        %v1017 = vrot.slane %v1003, 4
        %v1018 = vrot.slane %v1005, 4
        %v1019 = vrot.slane %v1007, 4
        %v1020 = vrot.slane %v1009, 4
        %v1021 = vrot.slane %v1011, 4
        %v1022 = vsel %vm440, %v1012, %v1013
        %vm1023 = vcmask 867328
        %v1024 = vsel %vm1023, %v993, %v1022
        %v1025 = vsel %vm440, %v1013, %v1014
        %v1026 = vsel %vm1023, %v995, %v1025
        %v1027 = vsel %vm440, %v1014, %v1015
        %v1028 = vsel %vm1023, %v997, %v1027
        %v1029 = vsel %vm440, %v1015, %v1016
        %v1030 = vsel %vm1023, %v999, %v1029
        %v1031 = vsel %vm440, %v1017, %v1018
        %v1032 = vsel %vm1023, %v1003, %v1031
        %v1033 = vsel %vm440, %v1018, %v1019
        %v1034 = vsel %vm1023, %v1005, %v1033
        %v1035 = vsel %vm440, %v1019, %v1020
        %v1036 = vsel %vm1023, %v1007, %v1035
        %v1037 = vsel %vm440, %v1020, %v1021
        %v1038 = vsel %vm1023, %v1009, %v1037
        %1047 = vst [vmem:[#allocation3 + $0x200] sm:$0xff] %v1024
        %1048 = vst [vmem:[#allocation3 + $0x208] sm:$0xff] %v1026
        %1049 = vst [vmem:[#allocation3 + $0x210] sm:$0xff] %v1028
        %1050 = vst [vmem:[#allocation3 + $0x218] sm:$0xff] %v1030
        %1051 = vst [vmem:[#allocation3 + $0x220] sm:$0xff] %v1032
        %1052 = vst [vmem:[#allocation3 + $0x228] sm:$0xff] %v1034
        %1053 = vst [vmem:[#allocation3 + $0x230] sm:$0xff] %v1036
        %1054 = vst [vmem:[#allocation3 + $0x238] sm:$0xff] %v1038
        %v1055 = vld [vmem:[#allocation2] sm:$0xff]
        %v1056 = vld [vmem:[#allocation2 + $0x8] sm:$0xff]
        %v1057 = vld [vmem:[#allocation2 + $0x10] sm:$0xff]
        %v1058 = vld [vmem:[#allocation2 + $0x18] sm:$0xff]
        %v1059 = vld [vmem:[#allocation2 + $0x20] sm:$0xf]
        %v1060 = vld [vmem:[#allocation2 + $0x28] sm:$0xff]
        %v1061 = vld [vmem:[#allocation2 + $0x30] sm:$0xff]
        %v1062 = vld [vmem:[#allocation2 + $0x38] sm:$0xff]
        %v1063 = vld [vmem:[#allocation2 + $0x40] sm:$0xff]
        %v1064 = vld [vmem:[#allocation2 + $0x48] sm:$0xf]
        %1075 = vrot.lane.b32.xlu0 %v1055, 28
        %v1076 = vpop.permute.xlu0 %1075
        %1077 = vrot.lane.b32.xlu0 %v1056, 28
        %v1078 = vpop.permute.xlu0 %1077
        %1079 = vrot.lane.b32.xlu0 %v1057, 28
        %v1080 = vpop.permute.xlu0 %1079
        %1081 = vrot.lane.b32.xlu0 %v1058, 28
        %v1082 = vpop.permute.xlu0 %1081
        %1083 = vrot.lane.b32.xlu0 %v1059, 28
        %v1084 = vpop.permute.xlu0 %1083
        %1085 = vrot.lane.b32.xlu0 %v1060, 28
        %v1086 = vpop.permute.xlu0 %1085
        %1087 = vrot.lane.b32.xlu0 %v1061, 28
        %v1088 = vpop.permute.xlu0 %1087
        %1089 = vrot.lane.b32.xlu0 %v1062, 28
        %v1090 = vpop.permute.xlu0 %1089
        %1091 = vrot.lane.b32.xlu0 %v1063, 28
        %v1092 = vpop.permute.xlu0 %1091
        %1093 = vrot.lane.b32.xlu0 %v1064, 28
        %v1094 = vpop.permute.xlu0 %1093
        %v1095 = vrot.slane %v1076, 4
        %v1096 = vrot.slane %v1078, 4
        %v1097 = vrot.slane %v1080, 4
        %v1098 = vrot.slane %v1082, 4
        %v1099 = vrot.slane %v1084, 4
        %v1100 = vrot.slane %v1086, 4
        %v1101 = vrot.slane %v1088, 4
        %v1102 = vrot.slane %v1090, 4
        %v1103 = vrot.slane %v1092, 4
        %v1104 = vrot.slane %v1094, 4
        %v1105 = vsel %vm440, %v1095, %v1096
        %vm1106 = vcmask 228352
        %v1107 = vsel %vm1106, %v1076, %v1105
        %v1108 = vsel %vm440, %v1096, %v1097
        %v1109 = vsel %vm1106, %v1078, %v1108
        %v1110 = vsel %vm440, %v1097, %v1098
        %v1111 = vsel %vm1106, %v1080, %v1110
        %v1112 = vsel %vm440, %v1098, %v1099
        %v1113 = vsel %vm1106, %v1082, %v1112
        %v1114 = vsel %vm440, %v1100, %v1101
        %v1115 = vsel %vm1106, %v1086, %v1114
        %v1116 = vsel %vm440, %v1101, %v1102
        %v1117 = vsel %vm1106, %v1088, %v1116
        %v1118 = vsel %vm440, %v1102, %v1103
        %v1119 = vsel %vm1106, %v1090, %v1118
        %v1120 = vsel %vm440, %v1103, %v1104
        %v1121 = vsel %vm1106, %v1092, %v1120
        %1130 = vst [vmem:[#allocation3 + $0x240] sm:$0xff] %v1107
        %1131 = vst [vmem:[#allocation3 + $0x248] sm:$0xff] %v1109
        %1132 = vst [vmem:[#allocation3 + $0x250] sm:$0xff] %v1111
        %1133 = vst [vmem:[#allocation3 + $0x258] sm:$0xff] %v1113
        %1134 = vst [vmem:[#allocation3 + $0x260] sm:$0xff] %v1115
        %1135 = vst [vmem:[#allocation3 + $0x268] sm:$0xff] %v1117
        %1136 = vst [vmem:[#allocation3 + $0x270] sm:$0xff] %v1119
        %1137 = vst [vmem:[#allocation3 + $0x278] sm:$0xff] %v1121
        %v1138 = vld [vmem:[#allocation2] sm:$0xff]
        %v1139 = vld [vmem:[#allocation2 + $0x8] sm:$0xff]
        %v1140 = vld [vmem:[#allocation2 + $0x10] sm:$0xff]
        %v1141 = vld [vmem:[#allocation2 + $0x18] sm:$0xff]
        %v1142 = vld [vmem:[#allocation2 + $0x20] sm:$0xf]
        %v1143 = vld [vmem:[#allocation2 + $0x28] sm:$0xff]
        %v1144 = vld [vmem:[#allocation2 + $0x30] sm:$0xff]
        %v1145 = vld [vmem:[#allocation2 + $0x38] sm:$0xff]
        %v1146 = vld [vmem:[#allocation2 + $0x40] sm:$0xff]
        %v1147 = vld [vmem:[#allocation2 + $0x48] sm:$0xf]
        %1158 = vrot.lane.b32.xlu0 %v1138, 27
        %v1159 = vpop.permute.xlu0 %1158
        %1160 = vrot.lane.b32.xlu0 %v1139, 27
        %v1161 = vpop.permute.xlu0 %1160
        %1162 = vrot.lane.b32.xlu0 %v1140, 27
        %v1163 = vpop.permute.xlu0 %1162
        %1164 = vrot.lane.b32.xlu0 %v1141, 27
        %v1165 = vpop.permute.xlu0 %1164
        %1166 = vrot.lane.b32.xlu0 %v1142, 27
        %v1167 = vpop.permute.xlu0 %1166
        %1168 = vrot.lane.b32.xlu0 %v1143, 27
        %v1169 = vpop.permute.xlu0 %1168
        %1170 = vrot.lane.b32.xlu0 %v1144, 27
        %v1171 = vpop.permute.xlu0 %1170
        %1172 = vrot.lane.b32.xlu0 %v1145, 27
        %v1173 = vpop.permute.xlu0 %1172
        %1174 = vrot.lane.b32.xlu0 %v1146, 27
        %v1175 = vpop.permute.xlu0 %1174
        %1176 = vrot.lane.b32.xlu0 %v1147, 27
        %v1177 = vpop.permute.xlu0 %1176
        %v1178 = vrot.slane %v1159, 4
        %v1179 = vrot.slane %v1161, 4
        %v1180 = vrot.slane %v1163, 4
        %v1181 = vrot.slane %v1165, 4
        %v1182 = vrot.slane %v1167, 4
        %v1183 = vrot.slane %v1169, 4
        %v1184 = vrot.slane %v1171, 4
        %v1185 = vrot.slane %v1173, 4
        %v1186 = vrot.slane %v1175, 4
        %v1187 = vrot.slane %v1177, 4
        %v1188 = vsel %vm440, %v1178, %v1179
        %vm1189 = vcmask 220160
        %v1190 = vsel %vm1189, %v1159, %v1188
        %v1191 = vsel %vm440, %v1179, %v1180
        %v1192 = vsel %vm1189, %v1161, %v1191
        %v1193 = vsel %vm440, %v1180, %v1181
        %v1194 = vsel %vm1189, %v1163, %v1193
        %v1195 = vsel %vm440, %v1181, %v1182
        %v1196 = vsel %vm1189, %v1165, %v1195
        %v1197 = vsel %vm440, %v1183, %v1184
        %v1198 = vsel %vm1189, %v1169, %v1197
        %v1199 = vsel %vm440, %v1184, %v1185
        %v1200 = vsel %vm1189, %v1171, %v1199
        %v1201 = vsel %vm440, %v1185, %v1186
        %v1202 = vsel %vm1189, %v1173, %v1201
        %v1203 = vsel %vm440, %v1186, %v1187
        %v1204 = vsel %vm1189, %v1175, %v1203
        %1213 = vst [vmem:[#allocation3 + $0x280] sm:$0xff] %v1190
        %1214 = vst [vmem:[#allocation3 + $0x288] sm:$0xff] %v1192
        %1215 = vst [vmem:[#allocation3 + $0x290] sm:$0xff] %v1194
        %1216 = vst [vmem:[#allocation3 + $0x298] sm:$0xff] %v1196
        %1217 = vst [vmem:[#allocation3 + $0x2a0] sm:$0xff] %v1198
        %1218 = vst [vmem:[#allocation3 + $0x2a8] sm:$0xff] %v1200
        %1219 = vst [vmem:[#allocation3 + $0x2b0] sm:$0xff] %v1202
        %1220 = vst [vmem:[#allocation3 + $0x2b8] sm:$0xff] %v1204
        %v1221 = vld [vmem:[#allocation2] sm:$0xff]
        %v1222 = vld [vmem:[#allocation2 + $0x8] sm:$0xff]
        %v1223 = vld [vmem:[#allocation2 + $0x10] sm:$0xff]
        %v1224 = vld [vmem:[#allocation2 + $0x18] sm:$0xff]
        %v1225 = vld [vmem:[#allocation2 + $0x20] sm:$0xf]
        %v1226 = vld [vmem:[#allocation2 + $0x28] sm:$0xff]
        %v1227 = vld [vmem:[#allocation2 + $0x30] sm:$0xff]
        %v1228 = vld [vmem:[#allocation2 + $0x38] sm:$0xff]
        %v1229 = vld [vmem:[#allocation2 + $0x40] sm:$0xff]
        %v1230 = vld [vmem:[#allocation2 + $0x48] sm:$0xf]
        %1241 = vrot.lane.b32.xlu0 %v1221, 26
        %v1242 = vpop.permute.xlu0 %1241
        %1243 = vrot.lane.b32.xlu0 %v1222, 26
        %v1244 = vpop.permute.xlu0 %1243
        %1245 = vrot.lane.b32.xlu0 %v1223, 26
        %v1246 = vpop.permute.xlu0 %1245
        %1247 = vrot.lane.b32.xlu0 %v1224, 26
        %v1248 = vpop.permute.xlu0 %1247
        %1249 = vrot.lane.b32.xlu0 %v1225, 26
        %v1250 = vpop.permute.xlu0 %1249
        %1251 = vrot.lane.b32.xlu0 %v1226, 26
        %v1252 = vpop.permute.xlu0 %1251
        %1253 = vrot.lane.b32.xlu0 %v1227, 26
        %v1254 = vpop.permute.xlu0 %1253
        %1255 = vrot.lane.b32.xlu0 %v1228, 26
        %v1256 = vpop.permute.xlu0 %1255
        %1257 = vrot.lane.b32.xlu0 %v1229, 26
        %v1258 = vpop.permute.xlu0 %1257
        %1259 = vrot.lane.b32.xlu0 %v1230, 26
        %v1260 = vpop.permute.xlu0 %1259
        %v1261 = vrot.slane %v1242, 4
        %v1262 = vrot.slane %v1244, 4
        %v1263 = vrot.slane %v1246, 4
        %v1264 = vrot.slane %v1248, 4
        %v1265 = vrot.slane %v1250, 4
        %v1266 = vrot.slane %v1252, 4
        %v1267 = vrot.slane %v1254, 4
        %v1268 = vrot.slane %v1256, 4
        %v1269 = vrot.slane %v1258, 4
        %v1270 = vrot.slane %v1260, 4
        %v1271 = vsel %vm440, %v1261, %v1262
        %vm1272 = vcmask 211968
        %v1273 = vsel %vm1272, %v1242, %v1271
        %v1274 = vsel %vm440, %v1262, %v1263
        %v1275 = vsel %vm1272, %v1244, %v1274
        %v1276 = vsel %vm440, %v1263, %v1264
        %v1277 = vsel %vm1272, %v1246, %v1276
        %v1278 = vsel %vm440, %v1264, %v1265
        %v1279 = vsel %vm1272, %v1248, %v1278
        %v1280 = vsel %vm440, %v1266, %v1267
        %v1281 = vsel %vm1272, %v1252, %v1280
        %v1282 = vsel %vm440, %v1267, %v1268
        %v1283 = vsel %vm1272, %v1254, %v1282
        %v1284 = vsel %vm440, %v1268, %v1269
        %v1285 = vsel %vm1272, %v1256, %v1284
        %v1286 = vsel %vm440, %v1269, %v1270
        %v1287 = vsel %vm1272, %v1258, %v1286
        %1296 = vst [vmem:[#allocation3 + $0x2c0] sm:$0xff] %v1273
        %1297 = vst [vmem:[#allocation3 + $0x2c8] sm:$0xff] %v1275
        %1298 = vst [vmem:[#allocation3 + $0x2d0] sm:$0xff] %v1277
        %1299 = vst [vmem:[#allocation3 + $0x2d8] sm:$0xff] %v1279
        %1300 = vst [vmem:[#allocation3 + $0x2e0] sm:$0xff] %v1281
        %1301 = vst [vmem:[#allocation3 + $0x2e8] sm:$0xff] %v1283
        %1302 = vst [vmem:[#allocation3 + $0x2f0] sm:$0xff] %v1285
        %1303 = vst [vmem:[#allocation3 + $0x2f8] sm:$0xff] %v1287
        %v1304 = vld [vmem:[#allocation2] sm:$0xff]
        %v1305 = vld [vmem:[#allocation2 + $0x8] sm:$0xff]
        %v1306 = vld [vmem:[#allocation2 + $0x10] sm:$0xff]
        %v1307 = vld [vmem:[#allocation2 + $0x18] sm:$0xff]
        %v1308 = vld [vmem:[#allocation2 + $0x20] sm:$0xf]
        %v1309 = vld [vmem:[#allocation2 + $0x28] sm:$0xff]
        %v1310 = vld [vmem:[#allocation2 + $0x30] sm:$0xff]
        %v1311 = vld [vmem:[#allocation2 + $0x38] sm:$0xff]
        %v1312 = vld [vmem:[#allocation2 + $0x40] sm:$0xff]
        %v1313 = vld [vmem:[#allocation2 + $0x48] sm:$0xf]
        %1324 = vrot.lane.b32.xlu0 %v1304, 18
        %v1325 = vpop.permute.xlu0 %1324
        %1326 = vrot.lane.b32.xlu0 %v1305, 18
        %v1327 = vpop.permute.xlu0 %1326
        %1328 = vrot.lane.b32.xlu0 %v1306, 18
        %v1329 = vpop.permute.xlu0 %1328
        %1330 = vrot.lane.b32.xlu0 %v1307, 18
        %v1331 = vpop.permute.xlu0 %1330
        %1332 = vrot.lane.b32.xlu0 %v1308, 18
        %v1333 = vpop.permute.xlu0 %1332
        %1334 = vrot.lane.b32.xlu0 %v1309, 18
        %v1335 = vpop.permute.xlu0 %1334
        %1336 = vrot.lane.b32.xlu0 %v1310, 18
        %v1337 = vpop.permute.xlu0 %1336
        %1338 = vrot.lane.b32.xlu0 %v1311, 18
        %v1339 = vpop.permute.xlu0 %1338
        %1340 = vrot.lane.b32.xlu0 %v1312, 18
        %v1341 = vpop.permute.xlu0 %1340
        %1342 = vrot.lane.b32.xlu0 %v1313, 18
        %v1343 = vpop.permute.xlu0 %1342
        %v1344 = vrot.slane %v1325, 4
        %v1345 = vrot.slane %v1327, 4
        %v1346 = vrot.slane %v1329, 4
        %v1347 = vrot.slane %v1331, 4
        %v1348 = vrot.slane %v1333, 4
        %v1349 = vrot.slane %v1335, 4
        %v1350 = vrot.slane %v1337, 4
        %v1351 = vrot.slane %v1339, 4
        %v1352 = vrot.slane %v1341, 4
        %v1353 = vrot.slane %v1343, 4
        %v1354 = vsel %vm440, %v1344, %v1345
        %vm1355 = vcmask 146432
        %v1356 = vsel %vm1355, %v1325, %v1354
        %v1357 = vsel %vm440, %v1345, %v1346
        %v1358 = vsel %vm1355, %v1327, %v1357
        %v1359 = vsel %vm440, %v1346, %v1347
        %v1360 = vsel %vm1355, %v1329, %v1359
        %v1361 = vsel %vm440, %v1347, %v1348
        %v1362 = vsel %vm1355, %v1331, %v1361
        %v1363 = vsel %vm440, %v1349, %v1350
        %v1364 = vsel %vm1355, %v1335, %v1363
        %v1365 = vsel %vm440, %v1350, %v1351
        %v1366 = vsel %vm1355, %v1337, %v1365
        %v1367 = vsel %vm440, %v1351, %v1352
        %v1368 = vsel %vm1355, %v1339, %v1367
        %v1369 = vsel %vm440, %v1352, %v1353
        %v1370 = vsel %vm1355, %v1341, %v1369
        %1379 = vst [vmem:[#allocation3 + $0x300] sm:$0xff] %v1356
        %1380 = vst [vmem:[#allocation3 + $0x308] sm:$0xff] %v1358
        %1381 = vst [vmem:[#allocation3 + $0x310] sm:$0xff] %v1360
        %1382 = vst [vmem:[#allocation3 + $0x318] sm:$0xff] %v1362
        %1383 = vst [vmem:[#allocation3 + $0x320] sm:$0xff] %v1364
        %1384 = vst [vmem:[#allocation3 + $0x328] sm:$0xff] %v1366
        %1385 = vst [vmem:[#allocation3 + $0x330] sm:$0xff] %v1368
        %1386 = vst [vmem:[#allocation3 + $0x338] sm:$0xff] %v1370
        %v1387 = vld [vmem:[#allocation2] sm:$0xff]
        %v1388 = vld [vmem:[#allocation2 + $0x8] sm:$0xff]
        %v1389 = vld [vmem:[#allocation2 + $0x10] sm:$0xff]
        %v1390 = vld [vmem:[#allocation2 + $0x18] sm:$0xff]
        %v1391 = vld [vmem:[#allocation2 + $0x20] sm:$0xf]
        %v1392 = vld [vmem:[#allocation2 + $0x28] sm:$0xff]
        %v1393 = vld [vmem:[#allocation2 + $0x30] sm:$0xff]
        %v1394 = vld [vmem:[#allocation2 + $0x38] sm:$0xff]
        %v1395 = vld [vmem:[#allocation2 + $0x40] sm:$0xff]
        %v1396 = vld [vmem:[#allocation2 + $0x48] sm:$0xf]
        %1407 = vrot.lane.b32.xlu0 %v1387, 17
        %v1408 = vpop.permute.xlu0 %1407
        %1409 = vrot.lane.b32.xlu0 %v1388, 17
        %v1410 = vpop.permute.xlu0 %1409
        %1411 = vrot.lane.b32.xlu0 %v1389, 17
        %v1412 = vpop.permute.xlu0 %1411
        %1413 = vrot.lane.b32.xlu0 %v1390, 17
        %v1414 = vpop.permute.xlu0 %1413
        %1415 = vrot.lane.b32.xlu0 %v1391, 17
        %v1416 = vpop.permute.xlu0 %1415
        %1417 = vrot.lane.b32.xlu0 %v1392, 17
        %v1418 = vpop.permute.xlu0 %1417
        %1419 = vrot.lane.b32.xlu0 %v1393, 17
        %v1420 = vpop.permute.xlu0 %1419
        %1421 = vrot.lane.b32.xlu0 %v1394, 17
        %v1422 = vpop.permute.xlu0 %1421
        %1423 = vrot.lane.b32.xlu0 %v1395, 17
        %v1424 = vpop.permute.xlu0 %1423
        %1425 = vrot.lane.b32.xlu0 %v1396, 17
        %v1426 = vpop.permute.xlu0 %1425
        %v1427 = vrot.slane %v1408, 4
        %v1428 = vrot.slane %v1410, 4
        %v1429 = vrot.slane %v1412, 4
        %v1430 = vrot.slane %v1414, 4
        %v1431 = vrot.slane %v1416, 4
        %v1432 = vrot.slane %v1418, 4
        %v1433 = vrot.slane %v1420, 4
        %v1434 = vrot.slane %v1422, 4
        %v1435 = vrot.slane %v1424, 4
        %v1436 = vrot.slane %v1426, 4
        %v1437 = vsel %vm440, %v1427, %v1428
        %vm1438 = vcmask 138240
        %v1439 = vsel %vm1438, %v1408, %v1437
        %v1440 = vsel %vm440, %v1428, %v1429
        %v1441 = vsel %vm1438, %v1410, %v1440
        %v1442 = vsel %vm440, %v1429, %v1430
        %v1443 = vsel %vm1438, %v1412, %v1442
        %v1444 = vsel %vm440, %v1430, %v1431
        %v1445 = vsel %vm1438, %v1414, %v1444
        %v1446 = vsel %vm440, %v1432, %v1433
        %v1447 = vsel %vm1438, %v1418, %v1446
        %v1448 = vsel %vm440, %v1433, %v1434
        %v1449 = vsel %vm1438, %v1420, %v1448
        %v1450 = vsel %vm440, %v1434, %v1435
        %v1451 = vsel %vm1438, %v1422, %v1450
        %v1452 = vsel %vm440, %v1435, %v1436
        %v1453 = vsel %vm1438, %v1424, %v1452
        %1462 = vst [vmem:[#allocation3 + $0x340] sm:$0xff] %v1439
        %1463 = vst [vmem:[#allocation3 + $0x348] sm:$0xff] %v1441
        %1464 = vst [vmem:[#allocation3 + $0x350] sm:$0xff] %v1443
        %1465 = vst [vmem:[#allocation3 + $0x358] sm:$0xff] %v1445
        %1466 = vst [vmem:[#allocation3 + $0x360] sm:$0xff] %v1447
        %1467 = vst [vmem:[#allocation3 + $0x368] sm:$0xff] %v1449
        %1468 = vst [vmem:[#allocation3 + $0x370] sm:$0xff] %v1451
        %1469 = vst [vmem:[#allocation3 + $0x378] sm:$0xff] %v1453
        %v1470 = vld [vmem:[#allocation2] sm:$0xff]
        %v1471 = vld [vmem:[#allocation2 + $0x8] sm:$0xff]
        %v1472 = vld [vmem:[#allocation2 + $0x10] sm:$0xff]
        %v1473 = vld [vmem:[#allocation2 + $0x18] sm:$0xff]
        %v1474 = vld [vmem:[#allocation2 + $0x20] sm:$0xf]
        %v1475 = vld [vmem:[#allocation2 + $0x28] sm:$0xff]
        %v1476 = vld [vmem:[#allocation2 + $0x30] sm:$0xff]
        %v1477 = vld [vmem:[#allocation2 + $0x38] sm:$0xff]
        %v1478 = vld [vmem:[#allocation2 + $0x40] sm:$0xff]
        %v1479 = vld [vmem:[#allocation2 + $0x48] sm:$0xf]
        %1490 = vrot.lane.b32.xlu0 %v1470, 16
        %v1491 = vpop.permute.xlu0 %1490
        %1492 = vrot.lane.b32.xlu0 %v1471, 16
        %v1493 = vpop.permute.xlu0 %1492
        %1494 = vrot.lane.b32.xlu0 %v1472, 16
        %v1495 = vpop.permute.xlu0 %1494
        %1496 = vrot.lane.b32.xlu0 %v1473, 16
        %v1497 = vpop.permute.xlu0 %1496
        %1498 = vrot.lane.b32.xlu0 %v1474, 16
        %v1499 = vpop.permute.xlu0 %1498
        %1500 = vrot.lane.b32.xlu0 %v1475, 16
        %v1501 = vpop.permute.xlu0 %1500
        %1502 = vrot.lane.b32.xlu0 %v1476, 16
        %v1503 = vpop.permute.xlu0 %1502
        %1504 = vrot.lane.b32.xlu0 %v1477, 16
        %v1505 = vpop.permute.xlu0 %1504
        %1506 = vrot.lane.b32.xlu0 %v1478, 16
        %v1507 = vpop.permute.xlu0 %1506
        %1508 = vrot.lane.b32.xlu0 %v1479, 16
        %v1509 = vpop.permute.xlu0 %1508
        %v1510 = vrot.slane %v1491, 4
        %v1511 = vrot.slane %v1493, 4
        %v1512 = vrot.slane %v1495, 4
        %v1513 = vrot.slane %v1497, 4
        %v1514 = vrot.slane %v1499, 4
        %v1515 = vrot.slane %v1501, 4
        %v1516 = vrot.slane %v1503, 4
        %v1517 = vrot.slane %v1505, 4
        %v1518 = vrot.slane %v1507, 4
        %v1519 = vrot.slane %v1509, 4
        %v1520 = vsel %vm440, %v1510, %v1511
        %vm1521 = vcmask 130048
        %v1522 = vsel %vm1521, %v1491, %v1520
        %v1523 = vsel %vm440, %v1511, %v1512
        %v1524 = vsel %vm1521, %v1493, %v1523
        %v1525 = vsel %vm440, %v1512, %v1513
        %v1526 = vsel %vm1521, %v1495, %v1525
        %v1527 = vsel %vm440, %v1513, %v1514
        %v1528 = vsel %vm1521, %v1497, %v1527
        %v1529 = vsel %vm440, %v1515, %v1516
        %v1530 = vsel %vm1521, %v1501, %v1529
        %v1531 = vsel %vm440, %v1516, %v1517
        %v1532 = vsel %vm1521, %v1503, %v1531
        %v1533 = vsel %vm440, %v1517, %v1518
        %v1534 = vsel %vm1521, %v1505, %v1533
        %v1535 = vsel %vm440, %v1518, %v1519
        %v1536 = vsel %vm1521, %v1507, %v1535
        %1545 = vst [vmem:[#allocation3 + $0x380] sm:$0xff] %v1522
        %1546 = vst [vmem:[#allocation3 + $0x388] sm:$0xff] %v1524
        %1547 = vst [vmem:[#allocation3 + $0x390] sm:$0xff] %v1526
        %1548 = vst [vmem:[#allocation3 + $0x398] sm:$0xff] %v1528
        %1549 = vst [vmem:[#allocation3 + $0x3a0] sm:$0xff] %v1530
        %1550 = vst [vmem:[#allocation3 + $0x3a8] sm:$0xff] %v1532
        %1551 = vst [vmem:[#allocation3 + $0x3b0] sm:$0xff] %v1534
        %1552 = vst [vmem:[#allocation3 + $0x3b8] sm:$0xff] %v1536
        %v1553 = vld [vmem:[#allocation2] sm:$0xff]
        %v1554 = vld [vmem:[#allocation2 + $0x8] sm:$0xff]
        %v1555 = vld [vmem:[#allocation2 + $0x10] sm:$0xff]
        %v1556 = vld [vmem:[#allocation2 + $0x18] sm:$0xff]
        %v1557 = vld [vmem:[#allocation2 + $0x20] sm:$0xf]
        %v1558 = vld [vmem:[#allocation2 + $0x28] sm:$0xff]
        %v1559 = vld [vmem:[#allocation2 + $0x30] sm:$0xff]
        %v1560 = vld [vmem:[#allocation2 + $0x38] sm:$0xff]
        %v1561 = vld [vmem:[#allocation2 + $0x40] sm:$0xff]
        %v1562 = vld [vmem:[#allocation2 + $0x48] sm:$0xf]
        %1573 = vrot.lane.b32.xlu0 %v1553, 8
        %v1574 = vpop.permute.xlu0 %1573
        %1575 = vrot.lane.b32.xlu0 %v1554, 8
        %v1576 = vpop.permute.xlu0 %1575
        %1577 = vrot.lane.b32.xlu0 %v1555, 8
        %v1578 = vpop.permute.xlu0 %1577
        %1579 = vrot.lane.b32.xlu0 %v1556, 8
        %v1580 = vpop.permute.xlu0 %1579
        %1581 = vrot.lane.b32.xlu0 %v1557, 8
        %v1582 = vpop.permute.xlu0 %1581
        %1583 = vrot.lane.b32.xlu0 %v1558, 8
        %v1584 = vpop.permute.xlu0 %1583
        %1585 = vrot.lane.b32.xlu0 %v1559, 8
        %v1586 = vpop.permute.xlu0 %1585
        %1587 = vrot.lane.b32.xlu0 %v1560, 8
        %v1588 = vpop.permute.xlu0 %1587
        %1589 = vrot.lane.b32.xlu0 %v1561, 8
        %v1590 = vpop.permute.xlu0 %1589
        %1591 = vrot.lane.b32.xlu0 %v1562, 8
        %v1592 = vpop.permute.xlu0 %1591
        %v1593 = vrot.slane %v1574, 4
        %v1594 = vrot.slane %v1576, 4
        %v1595 = vrot.slane %v1578, 4
        %v1596 = vrot.slane %v1580, 4
        %v1597 = vrot.slane %v1582, 4
        %v1598 = vrot.slane %v1584, 4
        %v1599 = vrot.slane %v1586, 4
        %v1600 = vrot.slane %v1588, 4
        %v1601 = vrot.slane %v1590, 4
        %v1602 = vrot.slane %v1592, 4
        %v1603 = vsel %vm440, %v1593, %v1594
        %vm1604 = vcmask 64512
        %v1605 = vsel %vm1604, %v1574, %v1603
        %v1606 = vsel %vm440, %v1594, %v1595
        %v1607 = vsel %vm1604, %v1576, %v1606
        %v1608 = vsel %vm440, %v1595, %v1596
        %v1609 = vsel %vm1604, %v1578, %v1608
        %v1610 = vsel %vm440, %v1596, %v1597
        %v1611 = vsel %vm1604, %v1580, %v1610
        %v1612 = vsel %vm440, %v1598, %v1599
        %v1613 = vsel %vm1604, %v1584, %v1612
        %v1614 = vsel %vm440, %v1599, %v1600
        %v1615 = vsel %vm1604, %v1586, %v1614
        %v1616 = vsel %vm440, %v1600, %v1601
        %v1617 = vsel %vm1604, %v1588, %v1616
        %v1618 = vsel %vm440, %v1601, %v1602
        %v1619 = vsel %vm1604, %v1590, %v1618
        %1628 = vst [vmem:[#allocation3 + $0x3c0] sm:$0xff] %v1605
        %1629 = vst [vmem:[#allocation3 + $0x3c8] sm:$0xff] %v1607
        %1630 = vst [vmem:[#allocation3 + $0x3d0] sm:$0xff] %v1609
        %1631 = vst [vmem:[#allocation3 + $0x3d8] sm:$0xff] %v1611
        %1632 = vst [vmem:[#allocation3 + $0x3e0] sm:$0xff] %v1613
        %1633 = vst [vmem:[#allocation3 + $0x3e8] sm:$0xff] %v1615
        %1634 = vst [vmem:[#allocation3 + $0x3f0] sm:$0xff] %v1617
        %1635 = vst [vmem:[#allocation3 + $0x3f8] sm:$0xff] %v1619
        %v1636 = vld [vmem:[#allocation2] sm:$0xff]
        %v1637 = vld [vmem:[#allocation2 + $0x8] sm:$0xff]
        %v1638 = vld [vmem:[#allocation2 + $0x10] sm:$0xff]
        %v1639 = vld [vmem:[#allocation2 + $0x18] sm:$0xff]
        %v1640 = vld [vmem:[#allocation2 + $0x20] sm:$0xf]
        %v1641 = vld [vmem:[#allocation2 + $0x28] sm:$0xff]
        %v1642 = vld [vmem:[#allocation2 + $0x30] sm:$0xff]
        %v1643 = vld [vmem:[#allocation2 + $0x38] sm:$0xff]
        %v1644 = vld [vmem:[#allocation2 + $0x40] sm:$0xff]
        %v1645 = vld [vmem:[#allocation2 + $0x48] sm:$0xf]
        %1656 = vrot.lane.b32.xlu0 %v1636, 7
        %v1657 = vpop.permute.xlu0 %1656
        %1658 = vrot.lane.b32.xlu0 %v1637, 7
        %v1659 = vpop.permute.xlu0 %1658
        %1660 = vrot.lane.b32.xlu0 %v1638, 7
        %v1661 = vpop.permute.xlu0 %1660
        %1662 = vrot.lane.b32.xlu0 %v1639, 7
        %v1663 = vpop.permute.xlu0 %1662
        %1664 = vrot.lane.b32.xlu0 %v1640, 7
        %v1665 = vpop.permute.xlu0 %1664
        %1666 = vrot.lane.b32.xlu0 %v1641, 7
        %v1667 = vpop.permute.xlu0 %1666
        %1668 = vrot.lane.b32.xlu0 %v1642, 7
        %v1669 = vpop.permute.xlu0 %1668
        %1670 = vrot.lane.b32.xlu0 %v1643, 7
        %v1671 = vpop.permute.xlu0 %1670
        %1672 = vrot.lane.b32.xlu0 %v1644, 7
        %v1673 = vpop.permute.xlu0 %1672
        %1674 = vrot.lane.b32.xlu0 %v1645, 7
        %v1675 = vpop.permute.xlu0 %1674
        %v1676 = vrot.slane %v1657, 4
        %v1677 = vrot.slane %v1659, 4
        %v1678 = vrot.slane %v1661, 4
        %v1679 = vrot.slane %v1663, 4
        %v1680 = vrot.slane %v1665, 4
        %v1681 = vrot.slane %v1667, 4
        %v1682 = vrot.slane %v1669, 4
        %v1683 = vrot.slane %v1671, 4
        %v1684 = vrot.slane %v1673, 4
        %v1685 = vrot.slane %v1675, 4
        %v1686 = vsel %vm440, %v1676, %v1677
        %vm1687 = vcmask 56320
        %v1688 = vsel %vm1687, %v1657, %v1686
        %v1689 = vsel %vm440, %v1677, %v1678
        %v1690 = vsel %vm1687, %v1659, %v1689
        %v1691 = vsel %vm440, %v1678, %v1679
        %v1692 = vsel %vm1687, %v1661, %v1691
        %v1693 = vsel %vm440, %v1679, %v1680
        %v1694 = vsel %vm1687, %v1663, %v1693
        %v1695 = vsel %vm440, %v1681, %v1682
        %v1696 = vsel %vm1687, %v1667, %v1695
        %v1697 = vsel %vm440, %v1682, %v1683
        %v1698 = vsel %vm1687, %v1669, %v1697
        %v1699 = vsel %vm440, %v1683, %v1684
        %v1700 = vsel %vm1687, %v1671, %v1699
        %v1701 = vsel %vm440, %v1684, %v1685
        %v1702 = vsel %vm1687, %v1673, %v1701
        %1711 = vst [vmem:[#allocation3 + $0x400] sm:$0xff] %v1688
        %1712 = vst [vmem:[#allocation3 + $0x408] sm:$0xff] %v1690
        %1713 = vst [vmem:[#allocation3 + $0x410] sm:$0xff] %v1692
        %1714 = vst [vmem:[#allocation3 + $0x418] sm:$0xff] %v1694
        %1715 = vst [vmem:[#allocation3 + $0x420] sm:$0xff] %v1696
        %1716 = vst [vmem:[#allocation3 + $0x428] sm:$0xff] %v1698
        %1717 = vst [vmem:[#allocation3 + $0x430] sm:$0xff] %v1700
        %1718 = vst [vmem:[#allocation3 + $0x438] sm:$0xff] %v1702
        %v1719 = vld [vmem:[#allocation2] sm:$0xff]
        %v1720 = vld [vmem:[#allocation2 + $0x8] sm:$0xff]
        %v1721 = vld [vmem:[#allocation2 + $0x10] sm:$0xff]
        %v1722 = vld [vmem:[#allocation2 + $0x18] sm:$0xff]
        %v1723 = vld [vmem:[#allocation2 + $0x20] sm:$0xf]
        %v1724 = vld [vmem:[#allocation2 + $0x28] sm:$0xff]
        %v1725 = vld [vmem:[#allocation2 + $0x30] sm:$0xff]
        %v1726 = vld [vmem:[#allocation2 + $0x38] sm:$0xff]
        %v1727 = vld [vmem:[#allocation2 + $0x40] sm:$0xff]
        %v1728 = vld [vmem:[#allocation2 + $0x48] sm:$0xf]
        %1739 = vrot.lane.b32.xlu0 %v1719, 6
        %v1740 = vpop.permute.xlu0 %1739
        %1741 = vrot.lane.b32.xlu0 %v1720, 6
        %v1742 = vpop.permute.xlu0 %1741
        %1743 = vrot.lane.b32.xlu0 %v1721, 6
        %v1744 = vpop.permute.xlu0 %1743
        %1745 = vrot.lane.b32.xlu0 %v1722, 6
        %v1746 = vpop.permute.xlu0 %1745
        %1747 = vrot.lane.b32.xlu0 %v1723, 6
        %v1748 = vpop.permute.xlu0 %1747
        %1749 = vrot.lane.b32.xlu0 %v1724, 6
        %v1750 = vpop.permute.xlu0 %1749
        %1751 = vrot.lane.b32.xlu0 %v1725, 6
        %v1752 = vpop.permute.xlu0 %1751
        %1753 = vrot.lane.b32.xlu0 %v1726, 6
        %v1754 = vpop.permute.xlu0 %1753
        %1755 = vrot.lane.b32.xlu0 %v1727, 6
        %v1756 = vpop.permute.xlu0 %1755
        %1757 = vrot.lane.b32.xlu0 %v1728, 6
        %v1758 = vpop.permute.xlu0 %1757
        %v1759 = vrot.slane %v1740, 4
        %v1760 = vrot.slane %v1742, 4
        %v1761 = vrot.slane %v1744, 4
        %v1762 = vrot.slane %v1746, 4
        %v1763 = vrot.slane %v1748, 4
        %v1764 = vrot.slane %v1750, 4
        %v1765 = vrot.slane %v1752, 4
        %v1766 = vrot.slane %v1754, 4
        %v1767 = vrot.slane %v1756, 4
        %v1768 = vrot.slane %v1758, 4
        %v1769 = vsel %vm440, %v1759, %v1760
        %vm1770 = vcmask 48128
        %v1771 = vsel %vm1770, %v1740, %v1769
        %v1772 = vsel %vm440, %v1760, %v1761
        %v1773 = vsel %vm1770, %v1742, %v1772
        %v1774 = vsel %vm440, %v1761, %v1762
        %v1775 = vsel %vm1770, %v1744, %v1774
        %v1776 = vsel %vm440, %v1762, %v1763
        %v1777 = vsel %vm1770, %v1746, %v1776
        %v1778 = vsel %vm440, %v1764, %v1765
        %v1779 = vsel %vm1770, %v1750, %v1778
        %v1780 = vsel %vm440, %v1765, %v1766
        %v1781 = vsel %vm1770, %v1752, %v1780
        %v1782 = vsel %vm440, %v1766, %v1767
        %v1783 = vsel %vm1770, %v1754, %v1782
        %v1784 = vsel %vm440, %v1767, %v1768
        %v1785 = vsel %vm1770, %v1756, %v1784
        %1794 = vst [vmem:[#allocation3 + $0x440] sm:$0xff] %v1771
        %1795 = vst [vmem:[#allocation3 + $0x448] sm:$0xff] %v1773
        %1796 = vst [vmem:[#allocation3 + $0x450] sm:$0xff] %v1775
        %1797 = vst [vmem:[#allocation3 + $0x458] sm:$0xff] %v1777
        %1798 = vst [vmem:[#allocation3 + $0x460] sm:$0xff] %v1779
        %1799 = vst [vmem:[#allocation3 + $0x468] sm:$0xff] %v1781
        %1800 = vst [vmem:[#allocation3 + $0x470] sm:$0xff] %v1783
        %1801 = vst [vmem:[#allocation3 + $0x478] sm:$0xff] %v1785
        %v1802 = vld [vmem:[#allocation2 + $0x4] sm:$0xff]
        %v1803 = vld [vmem:[#allocation2 + $0xc] sm:$0xff]
        %v1804 = vld [vmem:[#allocation2 + $0x14] sm:$0xff]
        %v1805 = vld [vmem:[#allocation2 + $0x1c] sm:$0xff]
        %v1806 = vld [vmem:[#allocation2 + $0x24] sm:$0xf]
        %v1807 = vld [vmem:[#allocation2 + $0x2c] sm:$0xff]
        %v1808 = vld [vmem:[#allocation2 + $0x34] sm:$0xff]
        %v1809 = vld [vmem:[#allocation2 + $0x3c] sm:$0xff]
        %v1810 = vld [vmem:[#allocation2 + $0x44] sm:$0xff]
        %v1811 = vld [vmem:[#allocation2 + $0x4c] sm:$0xf]
        %1822 = vrot.lane.b32.xlu0 %v1802, 56
        %v1823 = vpop.permute.xlu0 %1822
        %1824 = vrot.lane.b32.xlu0 %v1803, 56
        %v1825 = vpop.permute.xlu0 %1824
        %1826 = vrot.lane.b32.xlu0 %v1804, 56
        %v1827 = vpop.permute.xlu0 %1826
        %1828 = vrot.lane.b32.xlu0 %v1805, 56
        %v1829 = vpop.permute.xlu0 %1828
        %1830 = vrot.lane.b32.xlu0 %v1806, 56
        %v1831 = vpop.permute.xlu0 %1830
        %1832 = vrot.lane.b32.xlu0 %v1807, 56
        %v1833 = vpop.permute.xlu0 %1832
        %1834 = vrot.lane.b32.xlu0 %v1808, 56
        %v1835 = vpop.permute.xlu0 %1834
        %1836 = vrot.lane.b32.xlu0 %v1809, 56
        %v1837 = vpop.permute.xlu0 %1836
        %1838 = vrot.lane.b32.xlu0 %v1810, 56
        %v1839 = vpop.permute.xlu0 %1838
        %1840 = vrot.lane.b32.xlu0 %v1811, 56
        %v1841 = vpop.permute.xlu0 %1840
        %v1842 = vrot.slane %v1823, 4
        %v1843 = vrot.slane %v1825, 4
        %v1844 = vrot.slane %v1827, 4
        %v1845 = vrot.slane %v1829, 4
        %v1846 = vrot.slane %v1831, 4
        %v1847 = vrot.slane %v1833, 4
        %v1848 = vrot.slane %v1835, 4
        %v1849 = vrot.slane %v1837, 4
        %v1850 = vrot.slane %v1839, 4
        %v1851 = vrot.slane %v1841, 4
        %v1852 = vsel %vm440, %v1842, %v1843
        %vm1853 = vcmask 457728
        %v1854 = vsel %vm1853, %v1823, %v1852
        %v1855 = vsel %vm440, %v1843, %v1844
        %v1856 = vsel %vm1853, %v1825, %v1855
        %v1857 = vsel %vm440, %v1844, %v1845
        %v1858 = vsel %vm1853, %v1827, %v1857
        %v1859 = vsel %vm440, %v1845, %v1846
        %v1860 = vsel %vm1853, %v1829, %v1859
        %v1861 = vsel %vm440, %v1847, %v1848
        %v1862 = vsel %vm1853, %v1833, %v1861
        %v1863 = vsel %vm440, %v1848, %v1849
        %v1864 = vsel %vm1853, %v1835, %v1863
        %v1865 = vsel %vm440, %v1849, %v1850
        %v1866 = vsel %vm1853, %v1837, %v1865
        %v1867 = vsel %vm440, %v1850, %v1851
        %v1868 = vsel %vm1853, %v1839, %v1867
        %1877 = vst [vmem:[#allocation3 + $0x480] sm:$0xff] %v1854
        %1878 = vst [vmem:[#allocation3 + $0x488] sm:$0xff] %v1856
        %1879 = vst [vmem:[#allocation3 + $0x490] sm:$0xff] %v1858
        %1880 = vst [vmem:[#allocation3 + $0x498] sm:$0xff] %v1860
        %1881 = vst [vmem:[#allocation3 + $0x4a0] sm:$0xff] %v1862
        %1882 = vst [vmem:[#allocation3 + $0x4a8] sm:$0xff] %v1864
        %1883 = vst [vmem:[#allocation3 + $0x4b0] sm:$0xff] %v1866
        %1884 = vst [vmem:[#allocation3 + $0x4b8] sm:$0xff] %v1868
        %v1885 = vld [vmem:[#allocation2 + $0x4] sm:$0xff]
        %v1886 = vld [vmem:[#allocation2 + $0xc] sm:$0xff]
        %v1887 = vld [vmem:[#allocation2 + $0x14] sm:$0xff]
        %v1888 = vld [vmem:[#allocation2 + $0x1c] sm:$0xff]
        %v1889 = vld [vmem:[#allocation2 + $0x24] sm:$0xf]
        %v1890 = vld [vmem:[#allocation2 + $0x2c] sm:$0xff]
        %v1891 = vld [vmem:[#allocation2 + $0x34] sm:$0xff]
        %v1892 = vld [vmem:[#allocation2 + $0x3c] sm:$0xff]
        %v1893 = vld [vmem:[#allocation2 + $0x44] sm:$0xff]
        %v1894 = vld [vmem:[#allocation2 + $0x4c] sm:$0xf]
        %1905 = vrot.lane.b32.xlu0 %v1885, 55
        %v1906 = vpop.permute.xlu0 %1905
        %1907 = vrot.lane.b32.xlu0 %v1886, 55
        %v1908 = vpop.permute.xlu0 %1907
        %1909 = vrot.lane.b32.xlu0 %v1887, 55
        %v1910 = vpop.permute.xlu0 %1909
        %1911 = vrot.lane.b32.xlu0 %v1888, 55
        %v1912 = vpop.permute.xlu0 %1911
        %1913 = vrot.lane.b32.xlu0 %v1889, 55
        %v1914 = vpop.permute.xlu0 %1913
        %1915 = vrot.lane.b32.xlu0 %v1890, 55
        %v1916 = vpop.permute.xlu0 %1915
        %1917 = vrot.lane.b32.xlu0 %v1891, 55
        %v1918 = vpop.permute.xlu0 %1917
        %1919 = vrot.lane.b32.xlu0 %v1892, 55
        %v1920 = vpop.permute.xlu0 %1919
        %1921 = vrot.lane.b32.xlu0 %v1893, 55
        %v1922 = vpop.permute.xlu0 %1921
        %1923 = vrot.lane.b32.xlu0 %v1894, 55
        %v1924 = vpop.permute.xlu0 %1923
        %v1925 = vrot.slane %v1906, 4
        %v1926 = vrot.slane %v1908, 4
        %v1927 = vrot.slane %v1910, 4
        %v1928 = vrot.slane %v1912, 4
        %v1929 = vrot.slane %v1914, 4
        %v1930 = vrot.slane %v1916, 4
        %v1931 = vrot.slane %v1918, 4
        %v1932 = vrot.slane %v1920, 4
        %v1933 = vrot.slane %v1922, 4
        %v1934 = vrot.slane %v1924, 4
        %v1935 = vsel %vm440, %v1925, %v1926
        %vm1936 = vcmask 449536
        %v1937 = vsel %vm1936, %v1906, %v1935
        %v1938 = vsel %vm440, %v1926, %v1927
        %v1939 = vsel %vm1936, %v1908, %v1938
        %v1940 = vsel %vm440, %v1927, %v1928
        %v1941 = vsel %vm1936, %v1910, %v1940
        %v1942 = vsel %vm440, %v1928, %v1929
        %v1943 = vsel %vm1936, %v1912, %v1942
        %v1944 = vsel %vm440, %v1930, %v1931
        %v1945 = vsel %vm1936, %v1916, %v1944
        %v1946 = vsel %vm440, %v1931, %v1932
        %v1947 = vsel %vm1936, %v1918, %v1946
        %v1948 = vsel %vm440, %v1932, %v1933
        %v1949 = vsel %vm1936, %v1920, %v1948
        %v1950 = vsel %vm440, %v1933, %v1934
        %v1951 = vsel %vm1936, %v1922, %v1950
        %1960 = vst [vmem:[#allocation3 + $0x4c0] sm:$0xff] %v1937
        %1961 = vst [vmem:[#allocation3 + $0x4c8] sm:$0xff] %v1939
        %1962 = vst [vmem:[#allocation3 + $0x4d0] sm:$0xff] %v1941
        %1963 = vst [vmem:[#allocation3 + $0x4d8] sm:$0xff] %v1943
        %1964 = vst [vmem:[#allocation3 + $0x4e0] sm:$0xff] %v1945
        %1965 = vst [vmem:[#allocation3 + $0x4e8] sm:$0xff] %v1947
        %1966 = vst [vmem:[#allocation3 + $0x4f0] sm:$0xff] %v1949
        %1967 = vst [vmem:[#allocation3 + $0x4f8] sm:$0xff] %v1951
        %v1968 = vld [vmem:[#allocation2 + $0x4] sm:$0xff]
        %v1969 = vld [vmem:[#allocation2 + $0xc] sm:$0xff]
        %v1970 = vld [vmem:[#allocation2 + $0x14] sm:$0xff]
        %v1971 = vld [vmem:[#allocation2 + $0x1c] sm:$0xff]
        %v1972 = vld [vmem:[#allocation2 + $0x24] sm:$0xf]
        %v1973 = vld [vmem:[#allocation2 + $0x2c] sm:$0xff]
        %v1974 = vld [vmem:[#allocation2 + $0x34] sm:$0xff]
        %v1975 = vld [vmem:[#allocation2 + $0x3c] sm:$0xff]
        %v1976 = vld [vmem:[#allocation2 + $0x44] sm:$0xff]
        %v1977 = vld [vmem:[#allocation2 + $0x4c] sm:$0xf]
        %1988 = vrot.lane.b32.xlu0 %v1968, 54
        %v1989 = vpop.permute.xlu0 %1988
        %1990 = vrot.lane.b32.xlu0 %v1969, 54
        %v1991 = vpop.permute.xlu0 %1990
        %1992 = vrot.lane.b32.xlu0 %v1970, 54
        %v1993 = vpop.permute.xlu0 %1992
        %1994 = vrot.lane.b32.xlu0 %v1971, 54
        %v1995 = vpop.permute.xlu0 %1994
        %1996 = vrot.lane.b32.xlu0 %v1972, 54
        %v1997 = vpop.permute.xlu0 %1996
        %1998 = vrot.lane.b32.xlu0 %v1973, 54
        %v1999 = vpop.permute.xlu0 %1998
        %2000 = vrot.lane.b32.xlu0 %v1974, 54
        %v2001 = vpop.permute.xlu0 %2000
        %2002 = vrot.lane.b32.xlu0 %v1975, 54
        %v2003 = vpop.permute.xlu0 %2002
        %2004 = vrot.lane.b32.xlu0 %v1976, 54
        %v2005 = vpop.permute.xlu0 %2004
        %2006 = vrot.lane.b32.xlu0 %v1977, 54
        %v2007 = vpop.permute.xlu0 %2006
        %v2008 = vrot.slane %v1989, 4
        %v2009 = vrot.slane %v1991, 4
        %v2010 = vrot.slane %v1993, 4
        %v2011 = vrot.slane %v1995, 4
        %v2012 = vrot.slane %v1997, 4
        %v2013 = vrot.slane %v1999, 4
        %v2014 = vrot.slane %v2001, 4
        %v2015 = vrot.slane %v2003, 4
        %v2016 = vrot.slane %v2005, 4
        %v2017 = vrot.slane %v2007, 4
        %v2018 = vsel %vm440, %v2008, %v2009
        %vm2019 = vcmask 441344
        %v2020 = vsel %vm2019, %v1989, %v2018
        %v2021 = vsel %vm440, %v2009, %v2010
        %v2022 = vsel %vm2019, %v1991, %v2021
        %v2023 = vsel %vm440, %v2010, %v2011
        %v2024 = vsel %vm2019, %v1993, %v2023
        %v2025 = vsel %vm440, %v2011, %v2012
        %v2026 = vsel %vm2019, %v1995, %v2025
        %v2027 = vsel %vm440, %v2013, %v2014
        %v2028 = vsel %vm2019, %v1999, %v2027
        %v2029 = vsel %vm440, %v2014, %v2015
        %v2030 = vsel %vm2019, %v2001, %v2029
        %v2031 = vsel %vm440, %v2015, %v2016
        %v2032 = vsel %vm2019, %v2003, %v2031
        %v2033 = vsel %vm440, %v2016, %v2017
        %v2034 = vsel %vm2019, %v2005, %v2033
        %2043 = vst [vmem:[#allocation3 + $0x500] sm:$0xff] %v2020
        %2044 = vst [vmem:[#allocation3 + $0x508] sm:$0xff] %v2022
        %2045 = vst [vmem:[#allocation3 + $0x510] sm:$0xff] %v2024
        %2046 = vst [vmem:[#allocation3 + $0x518] sm:$0xff] %v2026
        %2047 = vst [vmem:[#allocation3 + $0x520] sm:$0xff] %v2028
        %2048 = vst [vmem:[#allocation3 + $0x528] sm:$0xff] %v2030
        %2049 = vst [vmem:[#allocation3 + $0x530] sm:$0xff] %v2032
        %2050 = vst [vmem:[#allocation3 + $0x538] sm:$0xff] %v2034
        %v2051 = vld [vmem:[#allocation2 + $0x4] sm:$0xff]
        %v2052 = vld [vmem:[#allocation2 + $0xc] sm:$0xff]
        %v2053 = vld [vmem:[#allocation2 + $0x14] sm:$0xff]
        %v2054 = vld [vmem:[#allocation2 + $0x1c] sm:$0xff]
        %v2055 = vld [vmem:[#allocation2 + $0x24] sm:$0xf]
        %v2056 = vld [vmem:[#allocation2 + $0x2c] sm:$0xff]
        %v2057 = vld [vmem:[#allocation2 + $0x34] sm:$0xff]
        %v2058 = vld [vmem:[#allocation2 + $0x3c] sm:$0xff]
        %v2059 = vld [vmem:[#allocation2 + $0x44] sm:$0xff]
        %v2060 = vld [vmem:[#allocation2 + $0x4c] sm:$0xf]
        %2071 = vrot.lane.b32.xlu0 %v2051, 46
        %v2072 = vpop.permute.xlu0 %2071
        %2073 = vrot.lane.b32.xlu0 %v2052, 46
        %v2074 = vpop.permute.xlu0 %2073
        %2075 = vrot.lane.b32.xlu0 %v2053, 46
        %v2076 = vpop.permute.xlu0 %2075
        %2077 = vrot.lane.b32.xlu0 %v2054, 46
        %v2078 = vpop.permute.xlu0 %2077
        %2079 = vrot.lane.b32.xlu0 %v2055, 46
        %v2080 = vpop.permute.xlu0 %2079
        %2081 = vrot.lane.b32.xlu0 %v2056, 46
        %v2082 = vpop.permute.xlu0 %2081
        %2083 = vrot.lane.b32.xlu0 %v2057, 46
        %v2084 = vpop.permute.xlu0 %2083
        %2085 = vrot.lane.b32.xlu0 %v2058, 46
        %v2086 = vpop.permute.xlu0 %2085
        %2087 = vrot.lane.b32.xlu0 %v2059, 46
        %v2088 = vpop.permute.xlu0 %2087
        %2089 = vrot.lane.b32.xlu0 %v2060, 46
        %v2090 = vpop.permute.xlu0 %2089
        %v2091 = vrot.slane %v2072, 4
        %v2092 = vrot.slane %v2074, 4
        %v2093 = vrot.slane %v2076, 4
        %v2094 = vrot.slane %v2078, 4
        %v2095 = vrot.slane %v2080, 4
        %v2096 = vrot.slane %v2082, 4
        %v2097 = vrot.slane %v2084, 4
        %v2098 = vrot.slane %v2086, 4
        %v2099 = vrot.slane %v2088, 4
        %v2100 = vrot.slane %v2090, 4
        %v2101 = vsel %vm440, %v2091, %v2092
        %vm2102 = vcmask 375808
        %v2103 = vsel %vm2102, %v2072, %v2101
        %v2104 = vsel %vm440, %v2092, %v2093
        %v2105 = vsel %vm2102, %v2074, %v2104
        %v2106 = vsel %vm440, %v2093, %v2094
        %v2107 = vsel %vm2102, %v2076, %v2106
        %v2108 = vsel %vm440, %v2094, %v2095
        %v2109 = vsel %vm2102, %v2078, %v2108
        %v2110 = vsel %vm440, %v2096, %v2097
        %v2111 = vsel %vm2102, %v2082, %v2110
        %v2112 = vsel %vm440, %v2097, %v2098
        %v2113 = vsel %vm2102, %v2084, %v2112
        %v2114 = vsel %vm440, %v2098, %v2099
        %v2115 = vsel %vm2102, %v2086, %v2114
        %v2116 = vsel %vm440, %v2099, %v2100
        %v2117 = vsel %vm2102, %v2088, %v2116
        %2126 = vst [vmem:[#allocation3 + $0x540] sm:$0xff] %v2103
        %2127 = vst [vmem:[#allocation3 + $0x548] sm:$0xff] %v2105
        %2128 = vst [vmem:[#allocation3 + $0x550] sm:$0xff] %v2107
        %2129 = vst [vmem:[#allocation3 + $0x558] sm:$0xff] %v2109
        %2130 = vst [vmem:[#allocation3 + $0x560] sm:$0xff] %v2111
        %2131 = vst [vmem:[#allocation3 + $0x568] sm:$0xff] %v2113
        %2132 = vst [vmem:[#allocation3 + $0x570] sm:$0xff] %v2115
        %2133 = vst [vmem:[#allocation3 + $0x578] sm:$0xff] %v2117
        %v2134 = vld [vmem:[#allocation2 + $0x4] sm:$0xff]
        %v2135 = vld [vmem:[#allocation2 + $0xc] sm:$0xff]
        %v2136 = vld [vmem:[#allocation2 + $0x14] sm:$0xff]
        %v2137 = vld [vmem:[#allocation2 + $0x1c] sm:$0xff]
        %v2138 = vld [vmem:[#allocation2 + $0x24] sm:$0xf]
        %v2139 = vld [vmem:[#allocation2 + $0x2c] sm:$0xff]
        %v2140 = vld [vmem:[#allocation2 + $0x34] sm:$0xff]
        %v2141 = vld [vmem:[#allocation2 + $0x3c] sm:$0xff]
        %v2142 = vld [vmem:[#allocation2 + $0x44] sm:$0xff]
        %v2143 = vld [vmem:[#allocation2 + $0x4c] sm:$0xf]
        %2154 = vrot.lane.b32.xlu0 %v2134, 45
        %v2155 = vpop.permute.xlu0 %2154
        %2156 = vrot.lane.b32.xlu0 %v2135, 45
        %v2157 = vpop.permute.xlu0 %2156
        %2158 = vrot.lane.b32.xlu0 %v2136, 45
        %v2159 = vpop.permute.xlu0 %2158
        %2160 = vrot.lane.b32.xlu0 %v2137, 45
        %v2161 = vpop.permute.xlu0 %2160
        %2162 = vrot.lane.b32.xlu0 %v2138, 45
        %v2163 = vpop.permute.xlu0 %2162
        %2164 = vrot.lane.b32.xlu0 %v2139, 45
        %v2165 = vpop.permute.xlu0 %2164
        %2166 = vrot.lane.b32.xlu0 %v2140, 45
        %v2167 = vpop.permute.xlu0 %2166
        %2168 = vrot.lane.b32.xlu0 %v2141, 45
        %v2169 = vpop.permute.xlu0 %2168
        %2170 = vrot.lane.b32.xlu0 %v2142, 45
        %v2171 = vpop.permute.xlu0 %2170
        %2172 = vrot.lane.b32.xlu0 %v2143, 45
        %v2173 = vpop.permute.xlu0 %2172
        %v2174 = vrot.slane %v2155, 4
        %v2175 = vrot.slane %v2157, 4
        %v2176 = vrot.slane %v2159, 4
        %v2177 = vrot.slane %v2161, 4
        %v2178 = vrot.slane %v2163, 4
        %v2179 = vrot.slane %v2165, 4
        %v2180 = vrot.slane %v2167, 4
        %v2181 = vrot.slane %v2169, 4
        %v2182 = vrot.slane %v2171, 4
        %v2183 = vrot.slane %v2173, 4
        %v2184 = vsel %vm440, %v2174, %v2175
        %vm2185 = vcmask 367616
        %v2186 = vsel %vm2185, %v2155, %v2184
        %v2187 = vsel %vm440, %v2175, %v2176
        %v2188 = vsel %vm2185, %v2157, %v2187
        %v2189 = vsel %vm440, %v2176, %v2177
        %v2190 = vsel %vm2185, %v2159, %v2189
        %v2191 = vsel %vm440, %v2177, %v2178
        %v2192 = vsel %vm2185, %v2161, %v2191
        %v2193 = vsel %vm440, %v2179, %v2180
        %v2194 = vsel %vm2185, %v2165, %v2193
        %v2195 = vsel %vm440, %v2180, %v2181
        %v2196 = vsel %vm2185, %v2167, %v2195
        %v2197 = vsel %vm440, %v2181, %v2182
        %v2198 = vsel %vm2185, %v2169, %v2197
        %v2199 = vsel %vm440, %v2182, %v2183
        %v2200 = vsel %vm2185, %v2171, %v2199
        %2209 = vst [vmem:[#allocation3 + $0x580] sm:$0xff] %v2186
        %2210 = vst [vmem:[#allocation3 + $0x588] sm:$0xff] %v2188
        %2211 = vst [vmem:[#allocation3 + $0x590] sm:$0xff] %v2190
        %2212 = vst [vmem:[#allocation3 + $0x598] sm:$0xff] %v2192
        %2213 = vst [vmem:[#allocation3 + $0x5a0] sm:$0xff] %v2194
        %2214 = vst [vmem:[#allocation3 + $0x5a8] sm:$0xff] %v2196
        %2215 = vst [vmem:[#allocation3 + $0x5b0] sm:$0xff] %v2198
        %2216 = vst [vmem:[#allocation3 + $0x5b8] sm:$0xff] %v2200
        %v2217 = vld [vmem:[#allocation2 + $0x4] sm:$0xff]
        %v2218 = vld [vmem:[#allocation2 + $0xc] sm:$0xff]
        %v2219 = vld [vmem:[#allocation2 + $0x14] sm:$0xff]
        %v2220 = vld [vmem:[#allocation2 + $0x1c] sm:$0xff]
        %v2221 = vld [vmem:[#allocation2 + $0x24] sm:$0xf]
        %v2222 = vld [vmem:[#allocation2 + $0x2c] sm:$0xff]
        %v2223 = vld [vmem:[#allocation2 + $0x34] sm:$0xff]
        %v2224 = vld [vmem:[#allocation2 + $0x3c] sm:$0xff]
        %v2225 = vld [vmem:[#allocation2 + $0x44] sm:$0xff]
        %v2226 = vld [vmem:[#allocation2 + $0x4c] sm:$0xf]
        %2237 = vrot.lane.b32.xlu0 %v2217, 44
        %v2238 = vpop.permute.xlu0 %2237
        %2239 = vrot.lane.b32.xlu0 %v2218, 44
        %v2240 = vpop.permute.xlu0 %2239
        %2241 = vrot.lane.b32.xlu0 %v2219, 44
        %v2242 = vpop.permute.xlu0 %2241
        %2243 = vrot.lane.b32.xlu0 %v2220, 44
        %v2244 = vpop.permute.xlu0 %2243
        %2245 = vrot.lane.b32.xlu0 %v2221, 44
        %v2246 = vpop.permute.xlu0 %2245
        %2247 = vrot.lane.b32.xlu0 %v2222, 44
        %v2248 = vpop.permute.xlu0 %2247
        %2249 = vrot.lane.b32.xlu0 %v2223, 44
        %v2250 = vpop.permute.xlu0 %2249
        %2251 = vrot.lane.b32.xlu0 %v2224, 44
        %v2252 = vpop.permute.xlu0 %2251
        %2253 = vrot.lane.b32.xlu0 %v2225, 44
        %v2254 = vpop.permute.xlu0 %2253
        %2255 = vrot.lane.b32.xlu0 %v2226, 44
        %v2256 = vpop.permute.xlu0 %2255
        %v2257 = vrot.slane %v2238, 4
        %v2258 = vrot.slane %v2240, 4
        %v2259 = vrot.slane %v2242, 4
        %v2260 = vrot.slane %v2244, 4
        %v2261 = vrot.slane %v2246, 4
        %v2262 = vrot.slane %v2248, 4
        %v2263 = vrot.slane %v2250, 4
        %v2264 = vrot.slane %v2252, 4
        %v2265 = vrot.slane %v2254, 4
        %v2266 = vrot.slane %v2256, 4
        %v2267 = vsel %vm440, %v2257, %v2258
        %vm2268 = vcmask 359424
        %v2269 = vsel %vm2268, %v2238, %v2267
        %v2270 = vsel %vm440, %v2258, %v2259
        %v2271 = vsel %vm2268, %v2240, %v2270
        %v2272 = vsel %vm440, %v2259, %v2260
        %v2273 = vsel %vm2268, %v2242, %v2272
        %v2274 = vsel %vm440, %v2260, %v2261
        %v2275 = vsel %vm2268, %v2244, %v2274
        %v2276 = vsel %vm440, %v2262, %v2263
        %v2277 = vsel %vm2268, %v2248, %v2276
        %v2278 = vsel %vm440, %v2263, %v2264
        %v2279 = vsel %vm2268, %v2250, %v2278
        %v2280 = vsel %vm440, %v2264, %v2265
        %v2281 = vsel %vm2268, %v2252, %v2280
        %v2282 = vsel %vm440, %v2265, %v2266
        %v2283 = vsel %vm2268, %v2254, %v2282
        %2292 = vst [vmem:[#allocation3 + $0x5c0] sm:$0xff] %v2269
        %2293 = vst [vmem:[#allocation3 + $0x5c8] sm:$0xff] %v2271
        %2294 = vst [vmem:[#allocation3 + $0x5d0] sm:$0xff] %v2273
        %2295 = vst [vmem:[#allocation3 + $0x5d8] sm:$0xff] %v2275
        %2296 = vst [vmem:[#allocation3 + $0x5e0] sm:$0xff] %v2277
        %2297 = vst [vmem:[#allocation3 + $0x5e8] sm:$0xff] %v2279
        %2298 = vst [vmem:[#allocation3 + $0x5f0] sm:$0xff] %v2281
        %2299 = vst [vmem:[#allocation3 + $0x5f8] sm:$0xff] %v2283
        %v2300 = vld [vmem:[#allocation2 + $0x4] sm:$0xff]
        %v2301 = vld [vmem:[#allocation2 + $0xc] sm:$0xff]
        %v2302 = vld [vmem:[#allocation2 + $0x14] sm:$0xff]
        %v2303 = vld [vmem:[#allocation2 + $0x1c] sm:$0xff]
        %v2304 = vld [vmem:[#allocation2 + $0x24] sm:$0xf]
        %v2305 = vld [vmem:[#allocation2 + $0x2c] sm:$0xff]
        %v2306 = vld [vmem:[#allocation2 + $0x34] sm:$0xff]
        %v2307 = vld [vmem:[#allocation2 + $0x3c] sm:$0xff]
        %v2308 = vld [vmem:[#allocation2 + $0x44] sm:$0xff]
        %v2309 = vld [vmem:[#allocation2 + $0x4c] sm:$0xf]
        %2320 = vrot.lane.b32.xlu0 %v2300, 36
        %v2321 = vpop.permute.xlu0 %2320
        %2322 = vrot.lane.b32.xlu0 %v2301, 36
        %v2323 = vpop.permute.xlu0 %2322
        %2324 = vrot.lane.b32.xlu0 %v2302, 36
        %v2325 = vpop.permute.xlu0 %2324
        %2326 = vrot.lane.b32.xlu0 %v2303, 36
        %v2327 = vpop.permute.xlu0 %2326
        %2328 = vrot.lane.b32.xlu0 %v2304, 36
        %v2329 = vpop.permute.xlu0 %2328
        %2330 = vrot.lane.b32.xlu0 %v2305, 36
        %v2331 = vpop.permute.xlu0 %2330
        %2332 = vrot.lane.b32.xlu0 %v2306, 36
        %v2333 = vpop.permute.xlu0 %2332
        %2334 = vrot.lane.b32.xlu0 %v2307, 36
        %v2335 = vpop.permute.xlu0 %2334
        %2336 = vrot.lane.b32.xlu0 %v2308, 36
        %v2337 = vpop.permute.xlu0 %2336
        %2338 = vrot.lane.b32.xlu0 %v2309, 36
        %v2339 = vpop.permute.xlu0 %2338
        %v2340 = vrot.slane %v2321, 4
        %v2341 = vrot.slane %v2323, 4
        %v2342 = vrot.slane %v2325, 4
        %v2343 = vrot.slane %v2327, 4
        %v2344 = vrot.slane %v2329, 4
        %v2345 = vrot.slane %v2331, 4
        %v2346 = vrot.slane %v2333, 4
        %v2347 = vrot.slane %v2335, 4
        %v2348 = vrot.slane %v2337, 4
        %v2349 = vrot.slane %v2339, 4
        %v2350 = vsel %vm440, %v2340, %v2341
        %vm2351 = vcmask 293888
        %v2352 = vsel %vm2351, %v2321, %v2350
        %v2353 = vsel %vm440, %v2341, %v2342
        %v2354 = vsel %vm2351, %v2323, %v2353
        %v2355 = vsel %vm440, %v2342, %v2343
        %v2356 = vsel %vm2351, %v2325, %v2355
        %v2357 = vsel %vm440, %v2343, %v2344
        %v2358 = vsel %vm2351, %v2327, %v2357
        %v2359 = vsel %vm440, %v2345, %v2346
        %v2360 = vsel %vm2351, %v2331, %v2359
        %v2361 = vsel %vm440, %v2346, %v2347
        %v2362 = vsel %vm2351, %v2333, %v2361
        %v2363 = vsel %vm440, %v2347, %v2348
        %v2364 = vsel %vm2351, %v2335, %v2363
        %v2365 = vsel %vm440, %v2348, %v2349
        %v2366 = vsel %vm2351, %v2337, %v2365
        %2375 = vst [vmem:[#allocation3 + $0x600] sm:$0xff] %v2352
        %2376 = vst [vmem:[#allocation3 + $0x608] sm:$0xff] %v2354
        %2377 = vst [vmem:[#allocation3 + $0x610] sm:$0xff] %v2356
        %2378 = vst [vmem:[#allocation3 + $0x618] sm:$0xff] %v2358
        %2379 = vst [vmem:[#allocation3 + $0x620] sm:$0xff] %v2360
        %2380 = vst [vmem:[#allocation3 + $0x628] sm:$0xff] %v2362
        %2381 = vst [vmem:[#allocation3 + $0x630] sm:$0xff] %v2364
        %2382 = vst [vmem:[#allocation3 + $0x638] sm:$0xff] %v2366
        %v2383 = vld [vmem:[#allocation2 + $0x4] sm:$0xff]
        %v2384 = vld [vmem:[#allocation2 + $0xc] sm:$0xff]
        %v2385 = vld [vmem:[#allocation2 + $0x14] sm:$0xff]
        %v2386 = vld [vmem:[#allocation2 + $0x1c] sm:$0xff]
        %v2387 = vld [vmem:[#allocation2 + $0x24] sm:$0xf]
        %v2388 = vld [vmem:[#allocation2 + $0x2c] sm:$0xff]
        %v2389 = vld [vmem:[#allocation2 + $0x34] sm:$0xff]
        %v2390 = vld [vmem:[#allocation2 + $0x3c] sm:$0xff]
        %v2391 = vld [vmem:[#allocation2 + $0x44] sm:$0xff]
        %v2392 = vld [vmem:[#allocation2 + $0x4c] sm:$0xf]
        %2403 = vrot.lane.b32.xlu0 %v2383, 35
        %v2404 = vpop.permute.xlu0 %2403
        %2405 = vrot.lane.b32.xlu0 %v2384, 35
        %v2406 = vpop.permute.xlu0 %2405
        %2407 = vrot.lane.b32.xlu0 %v2385, 35
        %v2408 = vpop.permute.xlu0 %2407
        %2409 = vrot.lane.b32.xlu0 %v2386, 35
        %v2410 = vpop.permute.xlu0 %2409
        %2411 = vrot.lane.b32.xlu0 %v2387, 35
        %v2412 = vpop.permute.xlu0 %2411
        %2413 = vrot.lane.b32.xlu0 %v2388, 35
        %v2414 = vpop.permute.xlu0 %2413
        %2415 = vrot.lane.b32.xlu0 %v2389, 35
        %v2416 = vpop.permute.xlu0 %2415
        %2417 = vrot.lane.b32.xlu0 %v2390, 35
        %v2418 = vpop.permute.xlu0 %2417
        %2419 = vrot.lane.b32.xlu0 %v2391, 35
        %v2420 = vpop.permute.xlu0 %2419
        %2421 = vrot.lane.b32.xlu0 %v2392, 35
        %v2422 = vpop.permute.xlu0 %2421
        %v2423 = vrot.slane %v2404, 4
        %v2424 = vrot.slane %v2406, 4
        %v2425 = vrot.slane %v2408, 4
        %v2426 = vrot.slane %v2410, 4
        %v2427 = vrot.slane %v2412, 4
        %v2428 = vrot.slane %v2414, 4
        %v2429 = vrot.slane %v2416, 4
        %v2430 = vrot.slane %v2418, 4
        %v2431 = vrot.slane %v2420, 4
        %v2432 = vrot.slane %v2422, 4
        %v2433 = vsel %vm440, %v2423, %v2424
        %vm2434 = vcmask 285696
        %v2435 = vsel %vm2434, %v2404, %v2433
        %v2436 = vsel %vm440, %v2424, %v2425
        %v2437 = vsel %vm2434, %v2406, %v2436
        %v2438 = vsel %vm440, %v2425, %v2426
        %v2439 = vsel %vm2434, %v2408, %v2438
        %v2440 = vsel %vm440, %v2426, %v2427
        %v2441 = vsel %vm2434, %v2410, %v2440
        %v2442 = vsel %vm440, %v2428, %v2429
        %v2443 = vsel %vm2434, %v2414, %v2442
        %v2444 = vsel %vm440, %v2429, %v2430
        %v2445 = vsel %vm2434, %v2416, %v2444
        %v2446 = vsel %vm440, %v2430, %v2431
        %v2447 = vsel %vm2434, %v2418, %v2446
        %v2448 = vsel %vm440, %v2431, %v2432
        %v2449 = vsel %vm2434, %v2420, %v2448
        %2458 = vst [vmem:[#allocation3 + $0x640] sm:$0xff] %v2435
        %2459 = vst [vmem:[#allocation3 + $0x648] sm:$0xff] %v2437
        %2460 = vst [vmem:[#allocation3 + $0x650] sm:$0xff] %v2439
        %2461 = vst [vmem:[#allocation3 + $0x658] sm:$0xff] %v2441
        %2462 = vst [vmem:[#allocation3 + $0x660] sm:$0xff] %v2443
        %2463 = vst [vmem:[#allocation3 + $0x668] sm:$0xff] %v2445
        %2464 = vst [vmem:[#allocation3 + $0x670] sm:$0xff] %v2447
        %2465 = vst [vmem:[#allocation3 + $0x678] sm:$0xff] %v2449
        %v2466 = vld [vmem:[#allocation2 + $0x4] sm:$0xff]
        %v2467 = vld [vmem:[#allocation2 + $0xc] sm:$0xff]
        %v2468 = vld [vmem:[#allocation2 + $0x14] sm:$0xff]
        %v2469 = vld [vmem:[#allocation2 + $0x1c] sm:$0xff]
        %v2470 = vld [vmem:[#allocation2 + $0x24] sm:$0xf]
        %v2471 = vld [vmem:[#allocation2 + $0x2c] sm:$0xff]
        %v2472 = vld [vmem:[#allocation2 + $0x34] sm:$0xff]
        %v2473 = vld [vmem:[#allocation2 + $0x3c] sm:$0xff]
        %v2474 = vld [vmem:[#allocation2 + $0x44] sm:$0xff]
        %v2475 = vld [vmem:[#allocation2 + $0x4c] sm:$0xf]
        %2486 = vrot.lane.b32.xlu0 %v2466, 34
        %v2487 = vpop.permute.xlu0 %2486
        %2488 = vrot.lane.b32.xlu0 %v2467, 34
        %v2489 = vpop.permute.xlu0 %2488
        %2490 = vrot.lane.b32.xlu0 %v2468, 34
        %v2491 = vpop.permute.xlu0 %2490
        %2492 = vrot.lane.b32.xlu0 %v2469, 34
        %v2493 = vpop.permute.xlu0 %2492
        %2494 = vrot.lane.b32.xlu0 %v2470, 34
        %v2495 = vpop.permute.xlu0 %2494
        %2496 = vrot.lane.b32.xlu0 %v2471, 34
        %v2497 = vpop.permute.xlu0 %2496
        %2498 = vrot.lane.b32.xlu0 %v2472, 34
        %v2499 = vpop.permute.xlu0 %2498
        %2500 = vrot.lane.b32.xlu0 %v2473, 34
        %v2501 = vpop.permute.xlu0 %2500
        %2502 = vrot.lane.b32.xlu0 %v2474, 34
        %v2503 = vpop.permute.xlu0 %2502
        %2504 = vrot.lane.b32.xlu0 %v2475, 34
        %v2505 = vpop.permute.xlu0 %2504
        %v2506 = vrot.slane %v2487, 4
        %v2507 = vrot.slane %v2489, 4
        %v2508 = vrot.slane %v2491, 4
        %v2509 = vrot.slane %v2493, 4
        %v2510 = vrot.slane %v2495, 4
        %v2511 = vrot.slane %v2497, 4
        %v2512 = vrot.slane %v2499, 4
        %v2513 = vrot.slane %v2501, 4
        %v2514 = vrot.slane %v2503, 4
        %v2515 = vrot.slane %v2505, 4
        %v2516 = vsel %vm440, %v2506, %v2507
        %vm2517 = vcmask 277504
        %v2518 = vsel %vm2517, %v2487, %v2516
        %v2519 = vsel %vm440, %v2507, %v2508
        %v2520 = vsel %vm2517, %v2489, %v2519
        %v2521 = vsel %vm440, %v2508, %v2509
        %v2522 = vsel %vm2517, %v2491, %v2521
        %v2523 = vsel %vm440, %v2509, %v2510
        %v2524 = vsel %vm2517, %v2493, %v2523
        %v2525 = vsel %vm440, %v2511, %v2512
        %v2526 = vsel %vm2517, %v2497, %v2525
        %v2527 = vsel %vm440, %v2512, %v2513
        %v2528 = vsel %vm2517, %v2499, %v2527
        %v2529 = vsel %vm440, %v2513, %v2514
        %v2530 = vsel %vm2517, %v2501, %v2529
        %v2531 = vsel %vm440, %v2514, %v2515
        %v2532 = vsel %vm2517, %v2503, %v2531
        %2541 = vst [vmem:[#allocation3 + $0x680] sm:$0xff] %v2518
        %2542 = vst [vmem:[#allocation3 + $0x688] sm:$0xff] %v2520
        %2543 = vst [vmem:[#allocation3 + $0x690] sm:$0xff] %v2522
        %2544 = vst [vmem:[#allocation3 + $0x698] sm:$0xff] %v2524
        %2545 = vst [vmem:[#allocation3 + $0x6a0] sm:$0xff] %v2526
        %2546 = vst [vmem:[#allocation3 + $0x6a8] sm:$0xff] %v2528
        %2547 = vst [vmem:[#allocation3 + $0x6b0] sm:$0xff] %v2530
        %2548 = vst [vmem:[#allocation3 + $0x6b8] sm:$0xff] %v2532
        %v2549 = vld [vmem:[#allocation9] sm:$0xff]
        %v2550 = vld [vmem:[#allocation9 + $0x8] sm:$0xff]
        %v2551 = vld [vmem:[#allocation3] sm:$0xff]
        %v2552 = vld [vmem:[#allocation3 + $0x8] sm:$0xff]
        %v2553 = vld [vmem:[#allocation3 + $0x10] sm:$0xff]
        %v2554 = vld [vmem:[#allocation3 + $0x18] sm:$0xff]
        %v2555 = vld [vmem:[#allocation3 + $0x20] sm:$0xff]
        %v2556 = vld [vmem:[#allocation3 + $0x28] sm:$0xff]
        %v2557 = vld [vmem:[#allocation3 + $0x30] sm:$0xff]
        %v2558 = vld [vmem:[#allocation3 + $0x38] sm:$0xff]
        %v2559 = vld [vmem:[#allocation3 + $0x40] sm:$0xff]
        %v2560 = vld [vmem:[#allocation3 + $0x48] sm:$0xff]
        %v2561 = vld [vmem:[#allocation3 + $0x50] sm:$0xff]
        %v2562 = vld [vmem:[#allocation3 + $0x58] sm:$0xff]
        %v2563 = vld [vmem:[#allocation3 + $0x60] sm:$0xff]
        %v2564 = vld [vmem:[#allocation3 + $0x68] sm:$0xff]
        %v2565 = vld [vmem:[#allocation3 + $0x70] sm:$0xff]
        %v2566 = vld [vmem:[#allocation3 + $0x78] sm:$0xff]
        %v2567 = vld [vmem:[#allocation3 + $0x80] sm:$0xff]
        %v2568 = vld [vmem:[#allocation3 + $0x88] sm:$0xff]
        %v2569 = vld [vmem:[#allocation3 + $0x90] sm:$0xff]
        %v2570 = vld [vmem:[#allocation3 + $0x98] sm:$0xff]
        %v2571 = vld [vmem:[#allocation3 + $0xa0] sm:$0xff]
        %v2572 = vld [vmem:[#allocation3 + $0xa8] sm:$0xff]
        %v2573 = vld [vmem:[#allocation3 + $0xb0] sm:$0xff]
        %v2574 = vld [vmem:[#allocation3 + $0xb8] sm:$0xff]
        %v2575 = vld [vmem:[#allocation3 + $0xc0] sm:$0xff]
        %v2576 = vld [vmem:[#allocation3 + $0xc8] sm:$0xff]
        %v2577 = vld [vmem:[#allocation3 + $0xd0] sm:$0xff]
        %v2578 = vld [vmem:[#allocation3 + $0xd8] sm:$0xff]
        %v2579 = vld [vmem:[#allocation3 + $0xe0] sm:$0xff]
        %v2580 = vld [vmem:[#allocation3 + $0xe8] sm:$0xff]
        %v2581 = vld [vmem:[#allocation3 + $0xf0] sm:$0xff]
        %v2582 = vld [vmem:[#allocation3 + $0xf8] sm:$0xff]
        %v2583 = vld [vmem:[#allocation3 + $0x100] sm:$0xff]
        %v2584 = vld [vmem:[#allocation3 + $0x108] sm:$0xff]
        %v2585 = vld [vmem:[#allocation3 + $0x110] sm:$0xff]
        %v2586 = vld [vmem:[#allocation3 + $0x118] sm:$0xff]
        %v2587 = vld [vmem:[#allocation3 + $0x120] sm:$0xff]
        %v2588 = vld [vmem:[#allocation3 + $0x128] sm:$0xff]
        %v2589 = vld [vmem:[#allocation3 + $0x130] sm:$0xff]
        %v2590 = vld [vmem:[#allocation3 + $0x138] sm:$0xff]
        %v2591 = vld [vmem:[#allocation3 + $0x140] sm:$0xff]
        %v2592 = vld [vmem:[#allocation3 + $0x148] sm:$0xff]
        %v2593 = vld [vmem:[#allocation3 + $0x150] sm:$0xff]
        %v2594 = vld [vmem:[#allocation3 + $0x158] sm:$0xff]
        %v2595 = vld [vmem:[#allocation3 + $0x160] sm:$0xff]
        %v2596 = vld [vmem:[#allocation3 + $0x168] sm:$0xff]
        %v2597 = vld [vmem:[#allocation3 + $0x170] sm:$0xff]
        %v2598 = vld [vmem:[#allocation3 + $0x178] sm:$0xff]
        %v2599 = vld [vmem:[#allocation3 + $0x180] sm:$0xff]
        %v2600 = vld [vmem:[#allocation3 + $0x188] sm:$0xff]
        %v2601 = vld [vmem:[#allocation3 + $0x190] sm:$0xff]
        %v2602 = vld [vmem:[#allocation3 + $0x198] sm:$0xff]
        %v2603 = vld [vmem:[#allocation3 + $0x1a0] sm:$0xff]
        %v2604 = vld [vmem:[#allocation3 + $0x1a8] sm:$0xff]
        %v2605 = vld [vmem:[#allocation3 + $0x1b0] sm:$0xff]
        %v2606 = vld [vmem:[#allocation3 + $0x1b8] sm:$0xff]
        %v2607 = vld [vmem:[#allocation3 + $0x1c0] sm:$0xff]
        %v2608 = vld [vmem:[#allocation3 + $0x1c8] sm:$0xff]
        %v2609 = vld [vmem:[#allocation3 + $0x1d0] sm:$0xff]
        %v2610 = vld [vmem:[#allocation3 + $0x1d8] sm:$0xff]
        %v2611 = vld [vmem:[#allocation3 + $0x1e0] sm:$0xff]
        %v2612 = vld [vmem:[#allocation3 + $0x1e8] sm:$0xff]
        %v2613 = vld [vmem:[#allocation3 + $0x1f0] sm:$0xff]
        %v2614 = vld [vmem:[#allocation3 + $0x1f8] sm:$0xff]
        %v2615 = vld [vmem:[#allocation3 + $0x200] sm:$0xff]
        %v2616 = vld [vmem:[#allocation3 + $0x208] sm:$0xff]
        %v2617 = vld [vmem:[#allocation3 + $0x210] sm:$0xff]
        %v2618 = vld [vmem:[#allocation3 + $0x218] sm:$0xff]
        %v2619 = vld [vmem:[#allocation3 + $0x220] sm:$0xff]
        %v2620 = vld [vmem:[#allocation3 + $0x228] sm:$0xff]
        %v2621 = vld [vmem:[#allocation3 + $0x230] sm:$0xff]
        %v2622 = vld [vmem:[#allocation3 + $0x238] sm:$0xff]
        %v2623 = vld [vmem:[#allocation3 + $0x240] sm:$0xff]
        %v2624 = vld [vmem:[#allocation3 + $0x248] sm:$0xff]
        %v2625 = vld [vmem:[#allocation3 + $0x250] sm:$0xff]
        %v2626 = vld [vmem:[#allocation3 + $0x258] sm:$0xff]
        %v2627 = vld [vmem:[#allocation3 + $0x260] sm:$0xff]
        %v2628 = vld [vmem:[#allocation3 + $0x268] sm:$0xff]
        %v2629 = vld [vmem:[#allocation3 + $0x270] sm:$0xff]
        %v2630 = vld [vmem:[#allocation3 + $0x278] sm:$0xff]
        %v2631 = vld [vmem:[#allocation3 + $0x280] sm:$0xff]
        %v2632 = vld [vmem:[#allocation3 + $0x288] sm:$0xff]
        %v2633 = vld [vmem:[#allocation3 + $0x290] sm:$0xff]
        %v2634 = vld [vmem:[#allocation3 + $0x298] sm:$0xff]
        %v2635 = vld [vmem:[#allocation3 + $0x2a0] sm:$0xff]
        %v2636 = vld [vmem:[#allocation3 + $0x2a8] sm:$0xff]
        %v2637 = vld [vmem:[#allocation3 + $0x2b0] sm:$0xff]
        %v2638 = vld [vmem:[#allocation3 + $0x2b8] sm:$0xff]
        %v2639 = vld [vmem:[#allocation3 + $0x2c0] sm:$0xff]
        %v2640 = vld [vmem:[#allocation3 + $0x2c8] sm:$0xff]
        %v2641 = vld [vmem:[#allocation3 + $0x2d0] sm:$0xff]
        %v2642 = vld [vmem:[#allocation3 + $0x2d8] sm:$0xff]
        %v2643 = vld [vmem:[#allocation3 + $0x2e0] sm:$0xff]
        %v2644 = vld [vmem:[#allocation3 + $0x2e8] sm:$0xff]
        %v2645 = vld [vmem:[#allocation3 + $0x2f0] sm:$0xff]
        %v2646 = vld [vmem:[#allocation3 + $0x2f8] sm:$0xff]
        %v2647 = vld [vmem:[#allocation3 + $0x300] sm:$0xff]
        %v2648 = vld [vmem:[#allocation3 + $0x308] sm:$0xff]
        %v2649 = vld [vmem:[#allocation3 + $0x310] sm:$0xff]
        %v2650 = vld [vmem:[#allocation3 + $0x318] sm:$0xff]
        %v2651 = vld [vmem:[#allocation3 + $0x320] sm:$0xff]
        %v2652 = vld [vmem:[#allocation3 + $0x328] sm:$0xff]
        %v2653 = vld [vmem:[#allocation3 + $0x330] sm:$0xff]
        %v2654 = vld [vmem:[#allocation3 + $0x338] sm:$0xff]
        %v2655 = vld [vmem:[#allocation3 + $0x340] sm:$0xff]
        %v2656 = vld [vmem:[#allocation3 + $0x348] sm:$0xff]
        %v2657 = vld [vmem:[#allocation3 + $0x350] sm:$0xff]
        %v2658 = vld [vmem:[#allocation3 + $0x358] sm:$0xff]
        %v2659 = vld [vmem:[#allocation3 + $0x360] sm:$0xff]
        %v2660 = vld [vmem:[#allocation3 + $0x368] sm:$0xff]
        %v2661 = vld [vmem:[#allocation3 + $0x370] sm:$0xff]
        %v2662 = vld [vmem:[#allocation3 + $0x378] sm:$0xff]
        %v2663 = vld [vmem:[#allocation3 + $0x380] sm:$0xff]
        %v2664 = vld [vmem:[#allocation3 + $0x388] sm:$0xff]
        %v2665 = vld [vmem:[#allocation3 + $0x390] sm:$0xff]
        %v2666 = vld [vmem:[#allocation3 + $0x398] sm:$0xff]
        %v2667 = vld [vmem:[#allocation3 + $0x3a0] sm:$0xff]
        %v2668 = vld [vmem:[#allocation3 + $0x3a8] sm:$0xff]
        %v2669 = vld [vmem:[#allocation3 + $0x3b0] sm:$0xff]
        %v2670 = vld [vmem:[#allocation3 + $0x3b8] sm:$0xff]
        %v2671 = vld [vmem:[#allocation3 + $0x3c0] sm:$0xff]
        %v2672 = vld [vmem:[#allocation3 + $0x3c8] sm:$0xff]
        %v2673 = vld [vmem:[#allocation3 + $0x3d0] sm:$0xff]
        %v2674 = vld [vmem:[#allocation3 + $0x3d8] sm:$0xff]
        %v2675 = vld [vmem:[#allocation3 + $0x3e0] sm:$0xff]
        %v2676 = vld [vmem:[#allocation3 + $0x3e8] sm:$0xff]
        %v2677 = vld [vmem:[#allocation3 + $0x3f0] sm:$0xff]
        %v2678 = vld [vmem:[#allocation3 + $0x3f8] sm:$0xff]
        %v2679 = vld [vmem:[#allocation3 + $0x400] sm:$0xff]
        %v2680 = vld [vmem:[#allocation3 + $0x408] sm:$0xff]
        %v2681 = vld [vmem:[#allocation3 + $0x410] sm:$0xff]
        %v2682 = vld [vmem:[#allocation3 + $0x418] sm:$0xff]
        %v2683 = vld [vmem:[#allocation3 + $0x420] sm:$0xff]
        %v2684 = vld [vmem:[#allocation3 + $0x428] sm:$0xff]
        %v2685 = vld [vmem:[#allocation3 + $0x430] sm:$0xff]
        %v2686 = vld [vmem:[#allocation3 + $0x438] sm:$0xff]
        %v2687 = vld [vmem:[#allocation3 + $0x440] sm:$0xff]
        %v2688 = vld [vmem:[#allocation3 + $0x448] sm:$0xff]
        %v2689 = vld [vmem:[#allocation3 + $0x450] sm:$0xff]
        %v2690 = vld [vmem:[#allocation3 + $0x458] sm:$0xff]
        %v2691 = vld [vmem:[#allocation3 + $0x460] sm:$0xff]
        %v2692 = vld [vmem:[#allocation3 + $0x468] sm:$0xff]
        %v2693 = vld [vmem:[#allocation3 + $0x470] sm:$0xff]
        %v2694 = vld [vmem:[#allocation3 + $0x478] sm:$0xff]
        %v2695 = vld [vmem:[#allocation3 + $0x480] sm:$0xff]
        %v2696 = vld [vmem:[#allocation3 + $0x488] sm:$0xff]
        %v2697 = vld [vmem:[#allocation3 + $0x490] sm:$0xff]
        %v2698 = vld [vmem:[#allocation3 + $0x498] sm:$0xff]
        %v2699 = vld [vmem:[#allocation3 + $0x4a0] sm:$0xff]
        %v2700 = vld [vmem:[#allocation3 + $0x4a8] sm:$0xff]
        %v2701 = vld [vmem:[#allocation3 + $0x4b0] sm:$0xff]
        %v2702 = vld [vmem:[#allocation3 + $0x4b8] sm:$0xff]
        %v2703 = vld [vmem:[#allocation3 + $0x4c0] sm:$0xff]
        %v2704 = vld [vmem:[#allocation3 + $0x4c8] sm:$0xff]
        %v2705 = vld [vmem:[#allocation3 + $0x4d0] sm:$0xff]
        %v2706 = vld [vmem:[#allocation3 + $0x4d8] sm:$0xff]
        %v2707 = vld [vmem:[#allocation3 + $0x4e0] sm:$0xff]
        %v2708 = vld [vmem:[#allocation3 + $0x4e8] sm:$0xff]
        %v2709 = vld [vmem:[#allocation3 + $0x4f0] sm:$0xff]
        %v2710 = vld [vmem:[#allocation3 + $0x4f8] sm:$0xff]
        %v2711 = vld [vmem:[#allocation3 + $0x500] sm:$0xff]
        %v2712 = vld [vmem:[#allocation3 + $0x508] sm:$0xff]
        %v2713 = vld [vmem:[#allocation3 + $0x510] sm:$0xff]
        %v2714 = vld [vmem:[#allocation3 + $0x518] sm:$0xff]
        %v2715 = vld [vmem:[#allocation3 + $0x520] sm:$0xff]
        %v2716 = vld [vmem:[#allocation3 + $0x528] sm:$0xff]
        %v2717 = vld [vmem:[#allocation3 + $0x530] sm:$0xff]
        %v2718 = vld [vmem:[#allocation3 + $0x538] sm:$0xff]
        %v2719 = vld [vmem:[#allocation3 + $0x540] sm:$0xff]
        %v2720 = vld [vmem:[#allocation3 + $0x548] sm:$0xff]
        %v2721 = vld [vmem:[#allocation3 + $0x550] sm:$0xff]
        %v2722 = vld [vmem:[#allocation3 + $0x558] sm:$0xff]
        %v2723 = vld [vmem:[#allocation3 + $0x560] sm:$0xff]
        %v2724 = vld [vmem:[#allocation3 + $0x568] sm:$0xff]
        %v2725 = vld [vmem:[#allocation3 + $0x570] sm:$0xff]
        %v2726 = vld [vmem:[#allocation3 + $0x578] sm:$0xff]
        %v2727 = vld [vmem:[#allocation3 + $0x580] sm:$0xff]
        %v2728 = vld [vmem:[#allocation3 + $0x588] sm:$0xff]
        %v2729 = vld [vmem:[#allocation3 + $0x590] sm:$0xff]
        %v2730 = vld [vmem:[#allocation3 + $0x598] sm:$0xff]
        %v2731 = vld [vmem:[#allocation3 + $0x5a0] sm:$0xff]
        %v2732 = vld [vmem:[#allocation3 + $0x5a8] sm:$0xff]
        %v2733 = vld [vmem:[#allocation3 + $0x5b0] sm:$0xff]
        %v2734 = vld [vmem:[#allocation3 + $0x5b8] sm:$0xff]
        %v2735 = vld [vmem:[#allocation3 + $0x5c0] sm:$0xff]
        %v2736 = vld [vmem:[#allocation3 + $0x5c8] sm:$0xff]
        %v2737 = vld [vmem:[#allocation3 + $0x5d0] sm:$0xff]
        %v2738 = vld [vmem:[#allocation3 + $0x5d8] sm:$0xff]
        %v2739 = vld [vmem:[#allocation3 + $0x5e0] sm:$0xff]
        %v2740 = vld [vmem:[#allocation3 + $0x5e8] sm:$0xff]
        %v2741 = vld [vmem:[#allocation3 + $0x5f0] sm:$0xff]
        %v2742 = vld [vmem:[#allocation3 + $0x5f8] sm:$0xff]
        %v2743 = vld [vmem:[#allocation3 + $0x600] sm:$0xff]
        %v2744 = vld [vmem:[#allocation3 + $0x608] sm:$0xff]
        %v2745 = vld [vmem:[#allocation3 + $0x610] sm:$0xff]
        %v2746 = vld [vmem:[#allocation3 + $0x618] sm:$0xff]
        %v2747 = vld [vmem:[#allocation3 + $0x620] sm:$0xff]
        %v2748 = vld [vmem:[#allocation3 + $0x628] sm:$0xff]
        %v2749 = vld [vmem:[#allocation3 + $0x630] sm:$0xff]
        %v2750 = vld [vmem:[#allocation3 + $0x638] sm:$0xff]
        %v2751 = vld [vmem:[#allocation3 + $0x640] sm:$0xff]
        %v2752 = vld [vmem:[#allocation3 + $0x648] sm:$0xff]
        %v2753 = vld [vmem:[#allocation3 + $0x650] sm:$0xff]
        %v2754 = vld [vmem:[#allocation3 + $0x658] sm:$0xff]
        %v2755 = vld [vmem:[#allocation3 + $0x660] sm:$0xff]
        %v2756 = vld [vmem:[#allocation3 + $0x668] sm:$0xff]
        %v2757 = vld [vmem:[#allocation3 + $0x670] sm:$0xff]
        %v2758 = vld [vmem:[#allocation3 + $0x678] sm:$0xff]
        %v2759 = vld [vmem:[#allocation3 + $0x680] sm:$0xff]
        %v2760 = vld [vmem:[#allocation3 + $0x688] sm:$0xff]
        %v2761 = vld [vmem:[#allocation3 + $0x690] sm:$0xff]
        %v2762 = vld [vmem:[#allocation3 + $0x698] sm:$0xff]
        %v2763 = vld [vmem:[#allocation3 + $0x6a0] sm:$0xff]
        %v2764 = vld [vmem:[#allocation3 + $0x6a8] sm:$0xff]
        %v2765 = vld [vmem:[#allocation3 + $0x6b0] sm:$0xff]
        %v2766 = vld [vmem:[#allocation3 + $0x6b8] sm:$0xff]
        %v2767 = vld [vmem:[%s351] sm:$0xff]
        %2769 = vset.pattern.permute.xlu0 0
        %2770 = vperm.xlu0 %2769, %v2767
        %v2771 = vpop.permute.xlu0 %2770
        %v2775 = vunpack.c.l.b16 %v2549
        %v2776 = vunpack.c.h.b16 %v2549
        %v2777 = vunpack.c.l.b16 %v2550
        %v2778 = vunpack.c.h.b16 %v2550
        %v2779 = vpack.c.b16 %v2775, %v2775
        %v2780 = vpack.c.b16 %v2776, %v2776
        %v2781 = vpack.c.b16 %v2777, %v2777
        %v2782 = vpack.c.b16 %v2778, %v2778
        %v3002 = vunpack.c.l.b16 %v2551
        %v3003 = vunpack.c.h.b16 %v2551
        %v3004 = vunpack.c.l.b16 %v2552
        %v3005 = vunpack.c.h.b16 %v2552
        %v3006 = vunpack.c.l.b16 %v2553
        %v3007 = vunpack.c.h.b16 %v2553
        %v3008 = vunpack.c.l.b16 %v2554
        %v3009 = vunpack.c.h.b16 %v2554
        %v3010 = vunpack.c.l.b16 %v2555
        %v3011 = vunpack.c.h.b16 %v2555
        %v3012 = vunpack.c.l.b16 %v2556
        %v3013 = vunpack.c.h.b16 %v2556
        %v3014 = vunpack.c.l.b16 %v2557
        %v3015 = vunpack.c.h.b16 %v2557
        %v3016 = vunpack.c.l.b16 %v2558
        %v3017 = vunpack.c.h.b16 %v2558
        %v3018 = vunpack.c.l.b16 %v2559
        %v3019 = vunpack.c.h.b16 %v2559
        %v3020 = vunpack.c.l.b16 %v2560
        %v3021 = vunpack.c.h.b16 %v2560
        %v3022 = vunpack.c.l.b16 %v2561
        %v3023 = vunpack.c.h.b16 %v2561
        %v3024 = vunpack.c.l.b16 %v2562
        %v3025 = vunpack.c.h.b16 %v2562
        %v3026 = vunpack.c.l.b16 %v2563
        %v3027 = vunpack.c.h.b16 %v2563
        %v3028 = vunpack.c.l.b16 %v2564
        %v3029 = vunpack.c.h.b16 %v2564
        %v3030 = vunpack.c.l.b16 %v2565
        %v3031 = vunpack.c.h.b16 %v2565
        %v3032 = vunpack.c.l.b16 %v2566
        %v3033 = vunpack.c.h.b16 %v2566
        %v3034 = vunpack.c.l.b16 %v2567
        %v3035 = vunpack.c.h.b16 %v2567
        %v3036 = vunpack.c.l.b16 %v2568
        %v3037 = vunpack.c.h.b16 %v2568
        %v3038 = vunpack.c.l.b16 %v2569
        %v3039 = vunpack.c.h.b16 %v2569
        %v3040 = vunpack.c.l.b16 %v2570
        %v3041 = vunpack.c.h.b16 %v2570
        %v3042 = vunpack.c.l.b16 %v2571
        %v3043 = vunpack.c.h.b16 %v2571
        %v3044 = vunpack.c.l.b16 %v2572
        %v3045 = vunpack.c.h.b16 %v2572
        %v3046 = vunpack.c.l.b16 %v2573
        %v3047 = vunpack.c.h.b16 %v2573
        %v3048 = vunpack.c.l.b16 %v2574
        %v3049 = vunpack.c.h.b16 %v2574
        %v3050 = vunpack.c.l.b16 %v2575
        %v3051 = vunpack.c.h.b16 %v2575
        %v3052 = vunpack.c.l.b16 %v2576
        %v3053 = vunpack.c.h.b16 %v2576
        %v3054 = vunpack.c.l.b16 %v2577
        %v3055 = vunpack.c.h.b16 %v2577
        %v3056 = vunpack.c.l.b16 %v2578
        %v3057 = vunpack.c.h.b16 %v2578
        %v3058 = vunpack.c.l.b16 %v2579
        %v3059 = vunpack.c.h.b16 %v2579
        %v3060 = vunpack.c.l.b16 %v2580
        %v3061 = vunpack.c.h.b16 %v2580
        %v3062 = vunpack.c.l.b16 %v2581
        %v3063 = vunpack.c.h.b16 %v2581
        %v3064 = vunpack.c.l.b16 %v2582
        %v3065 = vunpack.c.h.b16 %v2582
        %v3066 = vunpack.c.l.b16 %v2583
        %v3067 = vunpack.c.h.b16 %v2583
        %v3068 = vunpack.c.l.b16 %v2584
        %v3069 = vunpack.c.h.b16 %v2584
        %v3070 = vunpack.c.l.b16 %v2585
        %v3071 = vunpack.c.h.b16 %v2585
        %v3072 = vunpack.c.l.b16 %v2586
        %v3073 = vunpack.c.h.b16 %v2586
        %v3074 = vunpack.c.l.b16 %v2587
        %v3075 = vunpack.c.h.b16 %v2587
        %v3076 = vunpack.c.l.b16 %v2588
        %v3077 = vunpack.c.h.b16 %v2588
        %v3078 = vunpack.c.l.b16 %v2589
        %v3079 = vunpack.c.h.b16 %v2589
        %v3080 = vunpack.c.l.b16 %v2590
        %v3081 = vunpack.c.h.b16 %v2590
        %v3082 = vunpack.c.l.b16 %v2591
        %v3083 = vunpack.c.h.b16 %v2591
        %v3084 = vunpack.c.l.b16 %v2592
        %v3085 = vunpack.c.h.b16 %v2592
        %v3086 = vunpack.c.l.b16 %v2593
        %v3087 = vunpack.c.h.b16 %v2593
        %v3088 = vunpack.c.l.b16 %v2594
        %v3089 = vunpack.c.h.b16 %v2594
        %v3090 = vunpack.c.l.b16 %v2595
        %v3091 = vunpack.c.h.b16 %v2595
        %v3092 = vunpack.c.l.b16 %v2596
        %v3093 = vunpack.c.h.b16 %v2596
        %v3094 = vunpack.c.l.b16 %v2597
        %v3095 = vunpack.c.h.b16 %v2597
        %v3096 = vunpack.c.l.b16 %v2598
        %v3097 = vunpack.c.h.b16 %v2598
        %v3098 = vunpack.c.l.b16 %v2599
        %v3099 = vunpack.c.h.b16 %v2599
        %v3100 = vunpack.c.l.b16 %v2600
        %v3101 = vunpack.c.h.b16 %v2600
        %v3102 = vunpack.c.l.b16 %v2601
        %v3103 = vunpack.c.h.b16 %v2601
        %v3104 = vunpack.c.l.b16 %v2602
        %v3105 = vunpack.c.h.b16 %v2602
        %v3106 = vunpack.c.l.b16 %v2603
        %v3107 = vunpack.c.h.b16 %v2603
        %v3108 = vunpack.c.l.b16 %v2604
        %v3109 = vunpack.c.h.b16 %v2604
        %v3110 = vunpack.c.l.b16 %v2605
        %v3111 = vunpack.c.h.b16 %v2605
        %v3112 = vunpack.c.l.b16 %v2606
        %v3113 = vunpack.c.h.b16 %v2606
        %v3114 = vunpack.c.l.b16 %v2607
        %v3115 = vunpack.c.h.b16 %v2607
        %v3116 = vunpack.c.l.b16 %v2608
        %v3117 = vunpack.c.h.b16 %v2608
        %v3118 = vunpack.c.l.b16 %v2609
        %v3119 = vunpack.c.h.b16 %v2609
        %v3120 = vunpack.c.l.b16 %v2610
        %v3121 = vunpack.c.h.b16 %v2610
        %v3122 = vunpack.c.l.b16 %v2611
        %v3123 = vunpack.c.h.b16 %v2611
        %v3124 = vunpack.c.l.b16 %v2612
        %v3125 = vunpack.c.h.b16 %v2612
        %v3126 = vunpack.c.l.b16 %v2613
        %v3127 = vunpack.c.h.b16 %v2613
        %v3128 = vunpack.c.l.b16 %v2614
        %v3129 = vunpack.c.h.b16 %v2614
        %v3130 = vunpack.c.l.b16 %v2615
        %v3131 = vunpack.c.h.b16 %v2615
        %v3132 = vunpack.c.l.b16 %v2616
        %v3133 = vunpack.c.h.b16 %v2616
        %v3134 = vunpack.c.l.b16 %v2617
        %v3135 = vunpack.c.h.b16 %v2617
        %v3136 = vunpack.c.l.b16 %v2618
        %v3137 = vunpack.c.h.b16 %v2618
        %v3138 = vunpack.c.l.b16 %v2619
        %v3139 = vunpack.c.h.b16 %v2619
        %v3140 = vunpack.c.l.b16 %v2620
        %v3141 = vunpack.c.h.b16 %v2620
        %v3142 = vunpack.c.l.b16 %v2621
        %v3143 = vunpack.c.h.b16 %v2621
        %v3144 = vunpack.c.l.b16 %v2622
        %v3145 = vunpack.c.h.b16 %v2622
        %v3146 = vunpack.c.l.b16 %v2623
        %v3147 = vunpack.c.h.b16 %v2623
        %v3148 = vunpack.c.l.b16 %v2624
        %v3149 = vunpack.c.h.b16 %v2624
        %v3150 = vunpack.c.l.b16 %v2625
        %v3151 = vunpack.c.h.b16 %v2625
        %v3152 = vunpack.c.l.b16 %v2626
        %v3153 = vunpack.c.h.b16 %v2626
        %v3154 = vunpack.c.l.b16 %v2627
        %v3155 = vunpack.c.h.b16 %v2627
        %v3156 = vunpack.c.l.b16 %v2628
        %v3157 = vunpack.c.h.b16 %v2628
        %v3158 = vunpack.c.l.b16 %v2629
        %v3159 = vunpack.c.h.b16 %v2629
        %v3160 = vunpack.c.l.b16 %v2630
        %v3161 = vunpack.c.h.b16 %v2630
        %v3162 = vunpack.c.l.b16 %v2631
        %v3163 = vunpack.c.h.b16 %v2631
        %v3164 = vunpack.c.l.b16 %v2632
        %v3165 = vunpack.c.h.b16 %v2632
        %v3166 = vunpack.c.l.b16 %v2633
        %v3167 = vunpack.c.h.b16 %v2633
        %v3168 = vunpack.c.l.b16 %v2634
        %v3169 = vunpack.c.h.b16 %v2634
        %v3170 = vunpack.c.l.b16 %v2635
        %v3171 = vunpack.c.h.b16 %v2635
        %v3172 = vunpack.c.l.b16 %v2636
        %v3173 = vunpack.c.h.b16 %v2636
        %v3174 = vunpack.c.l.b16 %v2637
        %v3175 = vunpack.c.h.b16 %v2637
        %v3176 = vunpack.c.l.b16 %v2638
        %v3177 = vunpack.c.h.b16 %v2638
        %v3178 = vunpack.c.l.b16 %v2639
        %v3179 = vunpack.c.h.b16 %v2639
        %v3180 = vunpack.c.l.b16 %v2640
        %v3181 = vunpack.c.h.b16 %v2640
        %v3182 = vunpack.c.l.b16 %v2641
        %v3183 = vunpack.c.h.b16 %v2641
        %v3184 = vunpack.c.l.b16 %v2642
        %v3185 = vunpack.c.h.b16 %v2642
        %v3186 = vunpack.c.l.b16 %v2643
        %v3187 = vunpack.c.h.b16 %v2643
        %v3188 = vunpack.c.l.b16 %v2644
        %v3189 = vunpack.c.h.b16 %v2644
        %v3190 = vunpack.c.l.b16 %v2645
        %v3191 = vunpack.c.h.b16 %v2645
        %v3192 = vunpack.c.l.b16 %v2646
        %v3193 = vunpack.c.h.b16 %v2646
        %v3194 = vunpack.c.l.b16 %v2647
        %v3195 = vunpack.c.h.b16 %v2647
        %v3196 = vunpack.c.l.b16 %v2648
        %v3197 = vunpack.c.h.b16 %v2648
        %v3198 = vunpack.c.l.b16 %v2649
        %v3199 = vunpack.c.h.b16 %v2649
        %v3200 = vunpack.c.l.b16 %v2650
        %v3201 = vunpack.c.h.b16 %v2650
        %v3202 = vunpack.c.l.b16 %v2651
        %v3203 = vunpack.c.h.b16 %v2651
        %v3204 = vunpack.c.l.b16 %v2652
        %v3205 = vunpack.c.h.b16 %v2652
        %v3206 = vunpack.c.l.b16 %v2653
        %v3207 = vunpack.c.h.b16 %v2653
        %v3208 = vunpack.c.l.b16 %v2654
        %v3209 = vunpack.c.h.b16 %v2654
        %v3210 = vunpack.c.l.b16 %v2655
        %v3211 = vunpack.c.h.b16 %v2655
        %v3212 = vunpack.c.l.b16 %v2656
        %v3213 = vunpack.c.h.b16 %v2656
        %v3214 = vunpack.c.l.b16 %v2657
        %v3215 = vunpack.c.h.b16 %v2657
        %v3216 = vunpack.c.l.b16 %v2658
        %v3217 = vunpack.c.h.b16 %v2658
        %v3218 = vunpack.c.l.b16 %v2659
        %v3219 = vunpack.c.h.b16 %v2659
        %v3220 = vunpack.c.l.b16 %v2660
        %v3221 = vunpack.c.h.b16 %v2660
        %v3222 = vunpack.c.l.b16 %v2661
        %v3223 = vunpack.c.h.b16 %v2661
        %v3224 = vunpack.c.l.b16 %v2662
        %v3225 = vunpack.c.h.b16 %v2662
        %v3226 = vunpack.c.l.b16 %v2663
        %v3227 = vunpack.c.h.b16 %v2663
        %v3228 = vunpack.c.l.b16 %v2664
        %v3229 = vunpack.c.h.b16 %v2664
        %v3230 = vunpack.c.l.b16 %v2665
        %v3231 = vunpack.c.h.b16 %v2665
        %v3232 = vunpack.c.l.b16 %v2666
        %v3233 = vunpack.c.h.b16 %v2666
        %v3234 = vunpack.c.l.b16 %v2667
        %v3235 = vunpack.c.h.b16 %v2667
        %v3236 = vunpack.c.l.b16 %v2668
        %v3237 = vunpack.c.h.b16 %v2668
        %v3238 = vunpack.c.l.b16 %v2669
        %v3239 = vunpack.c.h.b16 %v2669
        %v3240 = vunpack.c.l.b16 %v2670
        %v3241 = vunpack.c.h.b16 %v2670
        %v3242 = vunpack.c.l.b16 %v2671
        %v3243 = vunpack.c.h.b16 %v2671
        %v3244 = vunpack.c.l.b16 %v2672
        %v3245 = vunpack.c.h.b16 %v2672
        %v3246 = vunpack.c.l.b16 %v2673
        %v3247 = vunpack.c.h.b16 %v2673
        %v3248 = vunpack.c.l.b16 %v2674
        %v3249 = vunpack.c.h.b16 %v2674
        %v3250 = vunpack.c.l.b16 %v2675
        %v3251 = vunpack.c.h.b16 %v2675
        %v3252 = vunpack.c.l.b16 %v2676
        %v3253 = vunpack.c.h.b16 %v2676
        %v3254 = vunpack.c.l.b16 %v2677
        %v3255 = vunpack.c.h.b16 %v2677
        %v3256 = vunpack.c.l.b16 %v2678
        %v3257 = vunpack.c.h.b16 %v2678
        %v3258 = vunpack.c.l.b16 %v2679
        %v3259 = vunpack.c.h.b16 %v2679
        %v3260 = vunpack.c.l.b16 %v2680
        %v3261 = vunpack.c.h.b16 %v2680
        %v3262 = vunpack.c.l.b16 %v2681
        %v3263 = vunpack.c.h.b16 %v2681
        %v3264 = vunpack.c.l.b16 %v2682
        %v3265 = vunpack.c.h.b16 %v2682
        %v3266 = vunpack.c.l.b16 %v2683
        %v3267 = vunpack.c.h.b16 %v2683
        %v3268 = vunpack.c.l.b16 %v2684
        %v3269 = vunpack.c.h.b16 %v2684
        %v3270 = vunpack.c.l.b16 %v2685
        %v3271 = vunpack.c.h.b16 %v2685
        %v3272 = vunpack.c.l.b16 %v2686
        %v3273 = vunpack.c.h.b16 %v2686
        %v3274 = vunpack.c.l.b16 %v2687
        %v3275 = vunpack.c.h.b16 %v2687
        %v3276 = vunpack.c.l.b16 %v2688
        %v3277 = vunpack.c.h.b16 %v2688
        %v3278 = vunpack.c.l.b16 %v2689
        %v3279 = vunpack.c.h.b16 %v2689
        %v3280 = vunpack.c.l.b16 %v2690
        %v3281 = vunpack.c.h.b16 %v2690
        %v3282 = vunpack.c.l.b16 %v2691
        %v3283 = vunpack.c.h.b16 %v2691
        %v3284 = vunpack.c.l.b16 %v2692
        %v3285 = vunpack.c.h.b16 %v2692
        %v3286 = vunpack.c.l.b16 %v2693
        %v3287 = vunpack.c.h.b16 %v2693
        %v3288 = vunpack.c.l.b16 %v2694
        %v3289 = vunpack.c.h.b16 %v2694
        %v3290 = vunpack.c.l.b16 %v2695
        %v3291 = vunpack.c.h.b16 %v2695
        %v3292 = vunpack.c.l.b16 %v2696
        %v3293 = vunpack.c.h.b16 %v2696
        %v3294 = vunpack.c.l.b16 %v2697
        %v3295 = vunpack.c.h.b16 %v2697
        %v3296 = vunpack.c.l.b16 %v2698
        %v3297 = vunpack.c.h.b16 %v2698
        %v3298 = vunpack.c.l.b16 %v2699
        %v3299 = vunpack.c.h.b16 %v2699
        %v3300 = vunpack.c.l.b16 %v2700
        %v3301 = vunpack.c.h.b16 %v2700
        %v3302 = vunpack.c.l.b16 %v2701
        %v3303 = vunpack.c.h.b16 %v2701
        %v3304 = vunpack.c.l.b16 %v2702
        %v3305 = vunpack.c.h.b16 %v2702
        %v3306 = vunpack.c.l.b16 %v2703
        %v3307 = vunpack.c.h.b16 %v2703
        %v3308 = vunpack.c.l.b16 %v2704
        %v3309 = vunpack.c.h.b16 %v2704
        %v3310 = vunpack.c.l.b16 %v2705
        %v3311 = vunpack.c.h.b16 %v2705
        %v3312 = vunpack.c.l.b16 %v2706
        %v3313 = vunpack.c.h.b16 %v2706
        %v3314 = vunpack.c.l.b16 %v2707
        %v3315 = vunpack.c.h.b16 %v2707
        %v3316 = vunpack.c.l.b16 %v2708
        %v3317 = vunpack.c.h.b16 %v2708
        %v3318 = vunpack.c.l.b16 %v2709
        %v3319 = vunpack.c.h.b16 %v2709
        %v3320 = vunpack.c.l.b16 %v2710
        %v3321 = vunpack.c.h.b16 %v2710
        %v3322 = vunpack.c.l.b16 %v2711
        %v3323 = vunpack.c.h.b16 %v2711
        %v3324 = vunpack.c.l.b16 %v2712
        %v3325 = vunpack.c.h.b16 %v2712
        %v3326 = vunpack.c.l.b16 %v2713
        %v3327 = vunpack.c.h.b16 %v2713
        %v3328 = vunpack.c.l.b16 %v2714
        %v3329 = vunpack.c.h.b16 %v2714
        %v3330 = vunpack.c.l.b16 %v2715
        %v3331 = vunpack.c.h.b16 %v2715
        %v3332 = vunpack.c.l.b16 %v2716
        %v3333 = vunpack.c.h.b16 %v2716
        %v3334 = vunpack.c.l.b16 %v2717
        %v3335 = vunpack.c.h.b16 %v2717
        %v3336 = vunpack.c.l.b16 %v2718
        %v3337 = vunpack.c.h.b16 %v2718
        %v3338 = vunpack.c.l.b16 %v2719
        %v3339 = vunpack.c.h.b16 %v2719
        %v3340 = vunpack.c.l.b16 %v2720
        %v3341 = vunpack.c.h.b16 %v2720
        %v3342 = vunpack.c.l.b16 %v2721
        %v3343 = vunpack.c.h.b16 %v2721
        %v3344 = vunpack.c.l.b16 %v2722
        %v3345 = vunpack.c.h.b16 %v2722
        %v3346 = vunpack.c.l.b16 %v2723
        %v3347 = vunpack.c.h.b16 %v2723
        %v3348 = vunpack.c.l.b16 %v2724
        %v3349 = vunpack.c.h.b16 %v2724
        %v3350 = vunpack.c.l.b16 %v2725
        %v3351 = vunpack.c.h.b16 %v2725
        %v3352 = vunpack.c.l.b16 %v2726
        %v3353 = vunpack.c.h.b16 %v2726
        %v3354 = vunpack.c.l.b16 %v2727
        %v3355 = vunpack.c.h.b16 %v2727
        %v3356 = vunpack.c.l.b16 %v2728
        %v3357 = vunpack.c.h.b16 %v2728
        %v3358 = vunpack.c.l.b16 %v2729
        %v3359 = vunpack.c.h.b16 %v2729
        %v3360 = vunpack.c.l.b16 %v2730
        %v3361 = vunpack.c.h.b16 %v2730
        %v3362 = vunpack.c.l.b16 %v2731
        %v3363 = vunpack.c.h.b16 %v2731
        %v3364 = vunpack.c.l.b16 %v2732
        %v3365 = vunpack.c.h.b16 %v2732
        %v3366 = vunpack.c.l.b16 %v2733
        %v3367 = vunpack.c.h.b16 %v2733
        %v3368 = vunpack.c.l.b16 %v2734
        %v3369 = vunpack.c.h.b16 %v2734
        %v3370 = vunpack.c.l.b16 %v2735
        %v3371 = vunpack.c.h.b16 %v2735
        %v3372 = vunpack.c.l.b16 %v2736
        %v3373 = vunpack.c.h.b16 %v2736
        %v3374 = vunpack.c.l.b16 %v2737
        %v3375 = vunpack.c.h.b16 %v2737
        %v3376 = vunpack.c.l.b16 %v2738
        %v3377 = vunpack.c.h.b16 %v2738
        %v3378 = vunpack.c.l.b16 %v2739
        %v3379 = vunpack.c.h.b16 %v2739
        %v3380 = vunpack.c.l.b16 %v2740
        %v3381 = vunpack.c.h.b16 %v2740
        %v3382 = vunpack.c.l.b16 %v2741
        %v3383 = vunpack.c.h.b16 %v2741
        %v3384 = vunpack.c.l.b16 %v2742
        %v3385 = vunpack.c.h.b16 %v2742
        %v3386 = vunpack.c.l.b16 %v2743
        %v3387 = vunpack.c.h.b16 %v2743
        %v3388 = vunpack.c.l.b16 %v2744
        %v3389 = vunpack.c.h.b16 %v2744
        %v3390 = vunpack.c.l.b16 %v2745
        %v3391 = vunpack.c.h.b16 %v2745
        %v3392 = vunpack.c.l.b16 %v2746
        %v3393 = vunpack.c.h.b16 %v2746
        %v3394 = vunpack.c.l.b16 %v2747
        %v3395 = vunpack.c.h.b16 %v2747
        %v3396 = vunpack.c.l.b16 %v2748
        %v3397 = vunpack.c.h.b16 %v2748
        %v3398 = vunpack.c.l.b16 %v2749
        %v3399 = vunpack.c.h.b16 %v2749
        %v3400 = vunpack.c.l.b16 %v2750
        %v3401 = vunpack.c.h.b16 %v2750
        %v3402 = vunpack.c.l.b16 %v2751
        %v3403 = vunpack.c.h.b16 %v2751
        %v3404 = vunpack.c.l.b16 %v2752
        %v3405 = vunpack.c.h.b16 %v2752
        %v3406 = vunpack.c.l.b16 %v2753
        %v3407 = vunpack.c.h.b16 %v2753
        %v3408 = vunpack.c.l.b16 %v2754
        %v3409 = vunpack.c.h.b16 %v2754
        %v3410 = vunpack.c.l.b16 %v2755
        %v3411 = vunpack.c.h.b16 %v2755
        %v3412 = vunpack.c.l.b16 %v2756
        %v3413 = vunpack.c.h.b16 %v2756
        %v3414 = vunpack.c.l.b16 %v2757
        %v3415 = vunpack.c.h.b16 %v2757
        %v3416 = vunpack.c.l.b16 %v2758
        %v3417 = vunpack.c.h.b16 %v2758
        %v3418 = vunpack.c.l.b16 %v2759
        %v3419 = vunpack.c.h.b16 %v2759
        %v3420 = vunpack.c.l.b16 %v2760
        %v3421 = vunpack.c.h.b16 %v2760
        %v3422 = vunpack.c.l.b16 %v2761
        %v3423 = vunpack.c.h.b16 %v2761
        %v3424 = vunpack.c.l.b16 %v2762
        %v3425 = vunpack.c.h.b16 %v2762
        %v3426 = vunpack.c.l.b16 %v2763
        %v3427 = vunpack.c.h.b16 %v2763
        %v3428 = vunpack.c.l.b16 %v2764
        %v3429 = vunpack.c.h.b16 %v2764
        %v3430 = vunpack.c.l.b16 %v2765
        %v3431 = vunpack.c.h.b16 %v2765
        %v3432 = vunpack.c.l.b16 %v2766
        %v3433 = vunpack.c.h.b16 %v2766
        %v3434 = vpack.c.b16 %v3010, %v3002
        %v3435 = vpack.c.b16 %v3011, %v3003
        %v3436 = vpack.c.b16 %v3012, %v3004
        %v3437 = vpack.c.b16 %v3013, %v3005
        %v3438 = vpack.c.b16 %v3014, %v3006
        %v3439 = vpack.c.b16 %v3015, %v3007
        %v3440 = vpack.c.b16 %v3016, %v3008
        %v3441 = vpack.c.b16 %v3017, %v3009
        %v3442 = vpack.c.b16 %v3026, %v3018
        %v3443 = vpack.c.b16 %v3027, %v3019
        %v3444 = vpack.c.b16 %v3028, %v3020
        %v3445 = vpack.c.b16 %v3029, %v3021
        %v3446 = vpack.c.b16 %v3030, %v3022
        %v3447 = vpack.c.b16 %v3031, %v3023
        %v3448 = vpack.c.b16 %v3032, %v3024
        %v3449 = vpack.c.b16 %v3033, %v3025
        %v3450 = vpack.c.b16 %v3042, %v3034
        %v3451 = vpack.c.b16 %v3043, %v3035
        %v3452 = vpack.c.b16 %v3044, %v3036
        %v3453 = vpack.c.b16 %v3045, %v3037
        %v3454 = vpack.c.b16 %v3046, %v3038
        %v3455 = vpack.c.b16 %v3047, %v3039
        %v3456 = vpack.c.b16 %v3048, %v3040
        %v3457 = vpack.c.b16 %v3049, %v3041
        %v3458 = vpack.c.b16 %v3058, %v3050
        %v3459 = vpack.c.b16 %v3059, %v3051
        %v3460 = vpack.c.b16 %v3060, %v3052
        %v3461 = vpack.c.b16 %v3061, %v3053
        %v3462 = vpack.c.b16 %v3062, %v3054
        %v3463 = vpack.c.b16 %v3063, %v3055
        %v3464 = vpack.c.b16 %v3064, %v3056
        %v3465 = vpack.c.b16 %v3065, %v3057
        %v3466 = vpack.c.b16 %v3074, %v3066
        %v3467 = vpack.c.b16 %v3075, %v3067
        %v3468 = vpack.c.b16 %v3076, %v3068
        %v3469 = vpack.c.b16 %v3077, %v3069
        %v3470 = vpack.c.b16 %v3078, %v3070
        %v3471 = vpack.c.b16 %v3079, %v3071
        %v3472 = vpack.c.b16 %v3080, %v3072
        %v3473 = vpack.c.b16 %v3081, %v3073
        %v3474 = vpack.c.b16 %v3090, %v3082
        %v3475 = vpack.c.b16 %v3091, %v3083
        %v3476 = vpack.c.b16 %v3092, %v3084
        %v3477 = vpack.c.b16 %v3093, %v3085
        %v3478 = vpack.c.b16 %v3094, %v3086
        %v3479 = vpack.c.b16 %v3095, %v3087
        %v3480 = vpack.c.b16 %v3096, %v3088
        %v3481 = vpack.c.b16 %v3097, %v3089
        %v3482 = vpack.c.b16 %v3106, %v3098
        %v3483 = vpack.c.b16 %v3107, %v3099
        %v3484 = vpack.c.b16 %v3108, %v3100
        %v3485 = vpack.c.b16 %v3109, %v3101
        %v3486 = vpack.c.b16 %v3110, %v3102
        %v3487 = vpack.c.b16 %v3111, %v3103
        %v3488 = vpack.c.b16 %v3112, %v3104
        %v3489 = vpack.c.b16 %v3113, %v3105
        %v3490 = vpack.c.b16 %v3122, %v3114
        %v3491 = vpack.c.b16 %v3123, %v3115
        %v3492 = vpack.c.b16 %v3124, %v3116
        %v3493 = vpack.c.b16 %v3125, %v3117
        %v3494 = vpack.c.b16 %v3126, %v3118
        %v3495 = vpack.c.b16 %v3127, %v3119
        %v3496 = vpack.c.b16 %v3128, %v3120
        %v3497 = vpack.c.b16 %v3129, %v3121
        %v3498 = vpack.c.b16 %v3138, %v3130
        %v3499 = vpack.c.b16 %v3139, %v3131
        %v3500 = vpack.c.b16 %v3140, %v3132
        %v3501 = vpack.c.b16 %v3141, %v3133
        %v3502 = vpack.c.b16 %v3142, %v3134
        %v3503 = vpack.c.b16 %v3143, %v3135
        %v3504 = vpack.c.b16 %v3144, %v3136
        %v3505 = vpack.c.b16 %v3145, %v3137
        %v3506 = vpack.c.b16 %v3154, %v3146
        %v3507 = vpack.c.b16 %v3155, %v3147
        %v3508 = vpack.c.b16 %v3156, %v3148
        %v3509 = vpack.c.b16 %v3157, %v3149
        %v3510 = vpack.c.b16 %v3158, %v3150
        %v3511 = vpack.c.b16 %v3159, %v3151
        %v3512 = vpack.c.b16 %v3160, %v3152
        %v3513 = vpack.c.b16 %v3161, %v3153
        %v3514 = vpack.c.b16 %v3170, %v3162
        %v3515 = vpack.c.b16 %v3171, %v3163
        %v3516 = vpack.c.b16 %v3172, %v3164
        %v3517 = vpack.c.b16 %v3173, %v3165
        %v3518 = vpack.c.b16 %v3174, %v3166
        %v3519 = vpack.c.b16 %v3175, %v3167
        %v3520 = vpack.c.b16 %v3176, %v3168
        %v3521 = vpack.c.b16 %v3177, %v3169
        %v3522 = vpack.c.b16 %v3186, %v3178
        %v3523 = vpack.c.b16 %v3187, %v3179
        %v3524 = vpack.c.b16 %v3188, %v3180
        %v3525 = vpack.c.b16 %v3189, %v3181
        %v3526 = vpack.c.b16 %v3190, %v3182
        %v3527 = vpack.c.b16 %v3191, %v3183
        %v3528 = vpack.c.b16 %v3192, %v3184
        %v3529 = vpack.c.b16 %v3193, %v3185
        %v3530 = vpack.c.b16 %v3202, %v3194
        %v3531 = vpack.c.b16 %v3203, %v3195
        %v3532 = vpack.c.b16 %v3204, %v3196
        %v3533 = vpack.c.b16 %v3205, %v3197
        %v3534 = vpack.c.b16 %v3206, %v3198
        %v3535 = vpack.c.b16 %v3207, %v3199
        %v3536 = vpack.c.b16 %v3208, %v3200
        %v3537 = vpack.c.b16 %v3209, %v3201
        %v3538 = vpack.c.b16 %v3218, %v3210
        %v3539 = vpack.c.b16 %v3219, %v3211
        %v3540 = vpack.c.b16 %v3220, %v3212
        %v3541 = vpack.c.b16 %v3221, %v3213
        %v3542 = vpack.c.b16 %v3222, %v3214
        %v3543 = vpack.c.b16 %v3223, %v3215
        %v3544 = vpack.c.b16 %v3224, %v3216
        %v3545 = vpack.c.b16 %v3225, %v3217
        %v3546 = vpack.c.b16 %v3234, %v3226
        %v3547 = vpack.c.b16 %v3235, %v3227
        %v3548 = vpack.c.b16 %v3236, %v3228
        %v3549 = vpack.c.b16 %v3237, %v3229
        %v3550 = vpack.c.b16 %v3238, %v3230
        %v3551 = vpack.c.b16 %v3239, %v3231
        %v3552 = vpack.c.b16 %v3240, %v3232
        %v3553 = vpack.c.b16 %v3241, %v3233
        %v3554 = vpack.c.b16 %v3250, %v3242
        %v3555 = vpack.c.b16 %v3251, %v3243
        %v3556 = vpack.c.b16 %v3252, %v3244
        %v3557 = vpack.c.b16 %v3253, %v3245
        %v3558 = vpack.c.b16 %v3254, %v3246
        %v3559 = vpack.c.b16 %v3255, %v3247
        %v3560 = vpack.c.b16 %v3256, %v3248
        %v3561 = vpack.c.b16 %v3257, %v3249
        %v3562 = vpack.c.b16 %v3266, %v3258
        %v3563 = vpack.c.b16 %v3267, %v3259
        %v3564 = vpack.c.b16 %v3268, %v3260
        %v3565 = vpack.c.b16 %v3269, %v3261
        %v3566 = vpack.c.b16 %v3270, %v3262
        %v3567 = vpack.c.b16 %v3271, %v3263
        %v3568 = vpack.c.b16 %v3272, %v3264
        %v3569 = vpack.c.b16 %v3273, %v3265
        %v3570 = vpack.c.b16 %v3282, %v3274
        %v3571 = vpack.c.b16 %v3283, %v3275
        %v3572 = vpack.c.b16 %v3284, %v3276
        %v3573 = vpack.c.b16 %v3285, %v3277
        %v3574 = vpack.c.b16 %v3286, %v3278
        %v3575 = vpack.c.b16 %v3287, %v3279
        %v3576 = vpack.c.b16 %v3288, %v3280
        %v3577 = vpack.c.b16 %v3289, %v3281
        %v3578 = vpack.c.b16 %v3298, %v3290
        %v3579 = vpack.c.b16 %v3299, %v3291
        %v3580 = vpack.c.b16 %v3300, %v3292
        %v3581 = vpack.c.b16 %v3301, %v3293
        %v3582 = vpack.c.b16 %v3302, %v3294
        %v3583 = vpack.c.b16 %v3303, %v3295
        %v3584 = vpack.c.b16 %v3304, %v3296
        %v3585 = vpack.c.b16 %v3305, %v3297
        %v3586 = vpack.c.b16 %v3314, %v3306
        %v3587 = vpack.c.b16 %v3315, %v3307
        %v3588 = vpack.c.b16 %v3316, %v3308
        %v3589 = vpack.c.b16 %v3317, %v3309
        %v3590 = vpack.c.b16 %v3318, %v3310
        %v3591 = vpack.c.b16 %v3319, %v3311
        %v3592 = vpack.c.b16 %v3320, %v3312
        %v3593 = vpack.c.b16 %v3321, %v3313
        %v3594 = vpack.c.b16 %v3330, %v3322
        %v3595 = vpack.c.b16 %v3331, %v3323
        %v3596 = vpack.c.b16 %v3332, %v3324
        %v3597 = vpack.c.b16 %v3333, %v3325
        %v3598 = vpack.c.b16 %v3334, %v3326
        %v3599 = vpack.c.b16 %v3335, %v3327
        %v3600 = vpack.c.b16 %v3336, %v3328
        %v3601 = vpack.c.b16 %v3337, %v3329
        %v3602 = vpack.c.b16 %v3346, %v3338
        %v3603 = vpack.c.b16 %v3347, %v3339
        %v3604 = vpack.c.b16 %v3348, %v3340
        %v3605 = vpack.c.b16 %v3349, %v3341
        %v3606 = vpack.c.b16 %v3350, %v3342
        %v3607 = vpack.c.b16 %v3351, %v3343
        %v3608 = vpack.c.b16 %v3352, %v3344
        %v3609 = vpack.c.b16 %v3353, %v3345
        %v3610 = vpack.c.b16 %v3362, %v3354
        %v3611 = vpack.c.b16 %v3363, %v3355
        %v3612 = vpack.c.b16 %v3364, %v3356
        %v3613 = vpack.c.b16 %v3365, %v3357
        %v3614 = vpack.c.b16 %v3366, %v3358
        %v3615 = vpack.c.b16 %v3367, %v3359
        %v3616 = vpack.c.b16 %v3368, %v3360
        %v3617 = vpack.c.b16 %v3369, %v3361
        %v3618 = vpack.c.b16 %v3378, %v3370
        %v3619 = vpack.c.b16 %v3379, %v3371
        %v3620 = vpack.c.b16 %v3380, %v3372
        %v3621 = vpack.c.b16 %v3381, %v3373
        %v3622 = vpack.c.b16 %v3382, %v3374
        %v3623 = vpack.c.b16 %v3383, %v3375
        %v3624 = vpack.c.b16 %v3384, %v3376
        %v3625 = vpack.c.b16 %v3385, %v3377
        %v3626 = vpack.c.b16 %v3394, %v3386
        %v3627 = vpack.c.b16 %v3395, %v3387
        %v3628 = vpack.c.b16 %v3396, %v3388
        %v3629 = vpack.c.b16 %v3397, %v3389
        %v3630 = vpack.c.b16 %v3398, %v3390
        %v3631 = vpack.c.b16 %v3399, %v3391
        %v3632 = vpack.c.b16 %v3400, %v3392
        %v3633 = vpack.c.b16 %v3401, %v3393
        %v3634 = vpack.c.b16 %v3410, %v3402
        %v3635 = vpack.c.b16 %v3411, %v3403
        %v3636 = vpack.c.b16 %v3412, %v3404
        %v3637 = vpack.c.b16 %v3413, %v3405
        %v3638 = vpack.c.b16 %v3414, %v3406
        %v3639 = vpack.c.b16 %v3415, %v3407
        %v3640 = vpack.c.b16 %v3416, %v3408
        %v3641 = vpack.c.b16 %v3417, %v3409
        %v3642 = vpack.c.b16 %v3426, %v3418
        %v3643 = vpack.c.b16 %v3427, %v3419
        %v3644 = vpack.c.b16 %v3428, %v3420
        %v3645 = vpack.c.b16 %v3429, %v3421
        %v3646 = vpack.c.b16 %v3430, %v3422
        %v3647 = vpack.c.b16 %v3431, %v3423
        %v3648 = vpack.c.b16 %v3432, %v3424
        %v3649 = vpack.c.b16 %v3433, %v3425
        %vm3866 = vcmask 392192
        %v3868 = vsel %vm3866, %v2782, 0
        %3870 = vmatpush.bf16.msra.mxu0 %v3490
        %3871 = vmatpush.bf16.msra.mxu0 %v3482
        %3872 = vmatpush.bf16.msra.mxu0 %v3474
        %3873 = vmatpush.bf16.msra.mxu0 %v3466
        %3874 = vmatpush.bf16.msra.mxu0 %v3458
        %3875 = vmatpush.bf16.msra.mxu0 %v3450
        %3876 = vmatpush.bf16.msra.mxu0 %v3442
        %3877 = vmatpush.bf16.msra.mxu0 %v3434
        %3878 = vmatmul.bf16.gmra.mxu0 %v2779
        %v3879 = vpop.f32.mrf.mxu0
        %v3880 = vadd.f32 %v2771, %v3879
        %v3881 = vpop.f32.mrf.mxu0
        %3882 = vdwg.mxu0
        %3883 = vmatpush.bf16.msra.mxu0 %v3554
        %3884 = vmatpush.bf16.msra.mxu0 %v3546
        %3885 = vmatpush.bf16.msra.mxu0 %v3538
        %3886 = vmatpush.bf16.msra.mxu0 %v3530
        %3887 = vmatpush.bf16.msra.mxu0 %v3522
        %3888 = vmatpush.bf16.msra.mxu0 %v3514
        %3889 = vmatpush.bf16.msra.mxu0 %v3506
        %3890 = vmatpush.bf16.msra.mxu0 %v3498
        %3891 = vmatmul.bf16.gmra.mxu0 %v2780
        %v3892 = vpop.f32.mrf.mxu0
        %v3893 = vadd.f32 %v3880, %v3892
        %v3894 = vpop.f32.mrf.mxu0
        %3895 = vdwg.mxu0
        %3896 = vmatpush.bf16.msra.mxu0 %v3618
        %3897 = vmatpush.bf16.msra.mxu0 %v3610
        %3898 = vmatpush.bf16.msra.mxu0 %v3602
        %3899 = vmatpush.bf16.msra.mxu0 %v3594
        %3900 = vmatpush.bf16.msra.mxu0 %v3586
        %3901 = vmatpush.bf16.msra.mxu0 %v3578
        %3902 = vmatpush.bf16.msra.mxu0 %v3570
        %3903 = vmatpush.bf16.msra.mxu0 %v3562
        %3904 = vmatmul.bf16.gmra.mxu0 %v2781
        %v3905 = vpop.f32.mrf.mxu0
        %v3906 = vadd.f32 %v3893, %v3905
        %v3907 = vpop.f32.mrf.mxu0
        %3908 = vdwg.mxu0
        %3909 = vmatpush.bf16.msra.mxu0 0
        %3910 = vmatpush.bf16.msra.mxu0 0
        %3911 = vmatpush.bf16.msra.mxu0 0
        %3912 = vmatpush.bf16.msra.mxu0 0
        %3913 = vmatpush.bf16.msra.mxu0 0
        %3914 = vmatpush.bf16.msra.mxu0 %v3642
        %3915 = vmatpush.bf16.msra.mxu0 %v3634
        %3916 = vmatpush.bf16.msra.mxu0 %v3626
        %3917 = vmatmul.bf16.gmra.mxu0 %v3868
        %v3918 = vpop.f32.mrf.mxu0
        %v3919 = vadd.f32 %v3906, %v3918
        %v3920 = vpop.f32.mrf.mxu0
        %3921 = vdwg.mxu0
        %3922 = vmatpush.bf16.msra.mxu0 %v3491
        %3923 = vmatpush.bf16.msra.mxu0 %v3483
        %3924 = vmatpush.bf16.msra.mxu0 %v3475
        %3925 = vmatpush.bf16.msra.mxu0 %v3467
        %3926 = vmatpush.bf16.msra.mxu0 %v3459
        %3927 = vmatpush.bf16.msra.mxu0 %v3451
        %3928 = vmatpush.bf16.msra.mxu0 %v3443
        %3929 = vmatpush.bf16.msra.mxu0 %v3435
        %3930 = vmatmul.bf16.gmra.mxu0 %v2779
        %v3931 = vpop.f32.mrf.mxu0
        %v3932 = vadd.f32 %v2771, %v3931
        %v3933 = vpop.f32.mrf.mxu0
        %3934 = vdwg.mxu0
        %3935 = vmatpush.bf16.msra.mxu0 %v3555
        %3936 = vmatpush.bf16.msra.mxu0 %v3547
        %3937 = vmatpush.bf16.msra.mxu0 %v3539
        %3938 = vmatpush.bf16.msra.mxu0 %v3531
        %3939 = vmatpush.bf16.msra.mxu0 %v3523
        %3940 = vmatpush.bf16.msra.mxu0 %v3515
        %3941 = vmatpush.bf16.msra.mxu0 %v3507
        %3942 = vmatpush.bf16.msra.mxu0 %v3499
        %3943 = vmatmul.bf16.gmra.mxu0 %v2780
        %v3944 = vpop.f32.mrf.mxu0
        %v3945 = vadd.f32 %v3932, %v3944
        %v3946 = vpop.f32.mrf.mxu0
        %3947 = vdwg.mxu0
        %3948 = vmatpush.bf16.msra.mxu0 %v3619
        %3949 = vmatpush.bf16.msra.mxu0 %v3611
        %3950 = vmatpush.bf16.msra.mxu0 %v3603
        %3951 = vmatpush.bf16.msra.mxu0 %v3595
        %3952 = vmatpush.bf16.msra.mxu0 %v3587
        %3953 = vmatpush.bf16.msra.mxu0 %v3579
        %3954 = vmatpush.bf16.msra.mxu0 %v3571
        %3955 = vmatpush.bf16.msra.mxu0 %v3563
        %3956 = vmatmul.bf16.gmra.mxu0 %v2781
        %v3957 = vpop.f32.mrf.mxu0
        %v3958 = vadd.f32 %v3945, %v3957
        %v3959 = vpop.f32.mrf.mxu0
        %3960 = vdwg.mxu0
        %3961 = vmatpush.bf16.msra.mxu0 0
        %3962 = vmatpush.bf16.msra.mxu0 0
        %3963 = vmatpush.bf16.msra.mxu0 0
        %3964 = vmatpush.bf16.msra.mxu0 0
        %3965 = vmatpush.bf16.msra.mxu0 0
        %3966 = vmatpush.bf16.msra.mxu0 %v3643
        %3967 = vmatpush.bf16.msra.mxu0 %v3635
        %3968 = vmatpush.bf16.msra.mxu0 %v3627
        %3969 = vmatmul.bf16.gmra.mxu0 %v3868
        %v3970 = vpop.f32.mrf.mxu0
        %v3971 = vadd.f32 %v3958, %v3970
        %v3972 = vpop.f32.mrf.mxu0
        %3973 = vdwg.mxu0
        %3974 = vmatpush.bf16.msra.mxu0 %v3492
        %3975 = vmatpush.bf16.msra.mxu0 %v3484
        %3976 = vmatpush.bf16.msra.mxu0 %v3476
        %3977 = vmatpush.bf16.msra.mxu0 %v3468
        %3978 = vmatpush.bf16.msra.mxu0 %v3460
        %3979 = vmatpush.bf16.msra.mxu0 %v3452
        %3980 = vmatpush.bf16.msra.mxu0 %v3444
        %3981 = vmatpush.bf16.msra.mxu0 %v3436
        %3982 = vmatmul.bf16.gmra.mxu0 %v2779
        %v3983 = vpop.f32.mrf.mxu0
        %v3984 = vadd.f32 %v2771, %v3983
        %v3985 = vpop.f32.mrf.mxu0
        %3986 = vdwg.mxu0
        %3987 = vmatpush.bf16.msra.mxu0 %v3556
        %3988 = vmatpush.bf16.msra.mxu0 %v3548
        %3989 = vmatpush.bf16.msra.mxu0 %v3540
        %3990 = vmatpush.bf16.msra.mxu0 %v3532
        %3991 = vmatpush.bf16.msra.mxu0 %v3524
        %3992 = vmatpush.bf16.msra.mxu0 %v3516
        %3993 = vmatpush.bf16.msra.mxu0 %v3508
        %3994 = vmatpush.bf16.msra.mxu0 %v3500
        %3995 = vmatmul.bf16.gmra.mxu0 %v2780
        %v3996 = vpop.f32.mrf.mxu0
        %v3997 = vadd.f32 %v3984, %v3996
        %v3998 = vpop.f32.mrf.mxu0
        %3999 = vdwg.mxu0
        %4000 = vmatpush.bf16.msra.mxu0 %v3620
        %4001 = vmatpush.bf16.msra.mxu0 %v3612
        %4002 = vmatpush.bf16.msra.mxu0 %v3604
        %4003 = vmatpush.bf16.msra.mxu0 %v3596
        %4004 = vmatpush.bf16.msra.mxu0 %v3588
        %4005 = vmatpush.bf16.msra.mxu0 %v3580
        %4006 = vmatpush.bf16.msra.mxu0 %v3572
        %4007 = vmatpush.bf16.msra.mxu0 %v3564
        %4008 = vmatmul.bf16.gmra.mxu0 %v2781
        %v4009 = vpop.f32.mrf.mxu0
        %v4010 = vadd.f32 %v3997, %v4009
        %v4011 = vpop.f32.mrf.mxu0
        %4012 = vdwg.mxu0
        %4013 = vmatpush.bf16.msra.mxu0 0
        %4014 = vmatpush.bf16.msra.mxu0 0
        %4015 = vmatpush.bf16.msra.mxu0 0
        %4016 = vmatpush.bf16.msra.mxu0 0
        %4017 = vmatpush.bf16.msra.mxu0 0
        %4018 = vmatpush.bf16.msra.mxu0 %v3644
        %4019 = vmatpush.bf16.msra.mxu0 %v3636
        %4020 = vmatpush.bf16.msra.mxu0 %v3628
        %4021 = vmatmul.bf16.gmra.mxu0 %v3868
        %v4022 = vpop.f32.mrf.mxu0
        %v4023 = vadd.f32 %v4010, %v4022
        %v4024 = vpop.f32.mrf.mxu0
        %4025 = vdwg.mxu0
        %4026 = vmatpush.bf16.msra.mxu0 %v3493
        %4027 = vmatpush.bf16.msra.mxu0 %v3485
        %4028 = vmatpush.bf16.msra.mxu0 %v3477
        %4029 = vmatpush.bf16.msra.mxu0 %v3469
        %4030 = vmatpush.bf16.msra.mxu0 %v3461
        %4031 = vmatpush.bf16.msra.mxu0 %v3453
        %4032 = vmatpush.bf16.msra.mxu0 %v3445
        %4033 = vmatpush.bf16.msra.mxu0 %v3437
        %4034 = vmatmul.bf16.gmra.mxu0 %v2779
        %v4035 = vpop.f32.mrf.mxu0
        %v4036 = vadd.f32 %v2771, %v4035
        %v4037 = vpop.f32.mrf.mxu0
        %4038 = vdwg.mxu0
        %4039 = vmatpush.bf16.msra.mxu0 %v3557
        %4040 = vmatpush.bf16.msra.mxu0 %v3549
        %4041 = vmatpush.bf16.msra.mxu0 %v3541
        %4042 = vmatpush.bf16.msra.mxu0 %v3533
        %4043 = vmatpush.bf16.msra.mxu0 %v3525
        %4044 = vmatpush.bf16.msra.mxu0 %v3517
        %4045 = vmatpush.bf16.msra.mxu0 %v3509
        %4046 = vmatpush.bf16.msra.mxu0 %v3501
        %4047 = vmatmul.bf16.gmra.mxu0 %v2780
        %v4048 = vpop.f32.mrf.mxu0
        %v4049 = vadd.f32 %v4036, %v4048
        %v4050 = vpop.f32.mrf.mxu0
        %4051 = vdwg.mxu0
        %4052 = vmatpush.bf16.msra.mxu0 %v3621
        %4053 = vmatpush.bf16.msra.mxu0 %v3613
        %4054 = vmatpush.bf16.msra.mxu0 %v3605
        %4055 = vmatpush.bf16.msra.mxu0 %v3597
        %4056 = vmatpush.bf16.msra.mxu0 %v3589
        %4057 = vmatpush.bf16.msra.mxu0 %v3581
        %4058 = vmatpush.bf16.msra.mxu0 %v3573
        %4059 = vmatpush.bf16.msra.mxu0 %v3565
        %4060 = vmatmul.bf16.gmra.mxu0 %v2781
        %v4061 = vpop.f32.mrf.mxu0
        %v4062 = vadd.f32 %v4049, %v4061
        %v4063 = vpop.f32.mrf.mxu0
        %4064 = vdwg.mxu0
        %4065 = vmatpush.bf16.msra.mxu0 0
        %4066 = vmatpush.bf16.msra.mxu0 0
        %4067 = vmatpush.bf16.msra.mxu0 0
        %4068 = vmatpush.bf16.msra.mxu0 0
        %4069 = vmatpush.bf16.msra.mxu0 0
        %4070 = vmatpush.bf16.msra.mxu0 %v3645
        %4071 = vmatpush.bf16.msra.mxu0 %v3637
        %4072 = vmatpush.bf16.msra.mxu0 %v3629
        %4073 = vmatmul.bf16.gmra.mxu0 %v3868
        %v4074 = vpop.f32.mrf.mxu0
        %v4075 = vadd.f32 %v4062, %v4074
        %v4076 = vpop.f32.mrf.mxu0
        %4077 = vdwg.mxu0
        %4078 = vmatpush.bf16.msra.mxu0 %v3494
        %4079 = vmatpush.bf16.msra.mxu0 %v3486
        %4080 = vmatpush.bf16.msra.mxu0 %v3478
        %4081 = vmatpush.bf16.msra.mxu0 %v3470
        %4082 = vmatpush.bf16.msra.mxu0 %v3462
        %4083 = vmatpush.bf16.msra.mxu0 %v3454
        %4084 = vmatpush.bf16.msra.mxu0 %v3446
        %4085 = vmatpush.bf16.msra.mxu0 %v3438
        %4086 = vmatmul.bf16.gmra.mxu0 %v2779
        %v4087 = vpop.f32.mrf.mxu0
        %v4088 = vadd.f32 %v2771, %v4087
        %v4089 = vpop.f32.mrf.mxu0
        %4090 = vdwg.mxu0
        %4091 = vmatpush.bf16.msra.mxu0 %v3558
        %4092 = vmatpush.bf16.msra.mxu0 %v3550
        %4093 = vmatpush.bf16.msra.mxu0 %v3542
        %4094 = vmatpush.bf16.msra.mxu0 %v3534
        %4095 = vmatpush.bf16.msra.mxu0 %v3526
        %4096 = vmatpush.bf16.msra.mxu0 %v3518
        %4097 = vmatpush.bf16.msra.mxu0 %v3510
        %4098 = vmatpush.bf16.msra.mxu0 %v3502
        %4099 = vmatmul.bf16.gmra.mxu0 %v2780
        %v4100 = vpop.f32.mrf.mxu0
        %v4101 = vadd.f32 %v4088, %v4100
        %v4102 = vpop.f32.mrf.mxu0
        %4103 = vdwg.mxu0
        %4104 = vmatpush.bf16.msra.mxu0 %v3622
        %4105 = vmatpush.bf16.msra.mxu0 %v3614
        %4106 = vmatpush.bf16.msra.mxu0 %v3606
        %4107 = vmatpush.bf16.msra.mxu0 %v3598
        %4108 = vmatpush.bf16.msra.mxu0 %v3590
        %4109 = vmatpush.bf16.msra.mxu0 %v3582
        %4110 = vmatpush.bf16.msra.mxu0 %v3574
        %4111 = vmatpush.bf16.msra.mxu0 %v3566
        %4112 = vmatmul.bf16.gmra.mxu0 %v2781
        %v4113 = vpop.f32.mrf.mxu0
        %v4114 = vadd.f32 %v4101, %v4113
        %v4115 = vpop.f32.mrf.mxu0
        %4116 = vdwg.mxu0
        %4117 = vmatpush.bf16.msra.mxu0 0
        %4118 = vmatpush.bf16.msra.mxu0 0
        %4119 = vmatpush.bf16.msra.mxu0 0
        %4120 = vmatpush.bf16.msra.mxu0 0
        %4121 = vmatpush.bf16.msra.mxu0 0
        %4122 = vmatpush.bf16.msra.mxu0 %v3646
        %4123 = vmatpush.bf16.msra.mxu0 %v3638
        %4124 = vmatpush.bf16.msra.mxu0 %v3630
        %4125 = vmatmul.bf16.gmra.mxu0 %v3868
        %v4126 = vpop.f32.mrf.mxu0
        %v4127 = vadd.f32 %v4114, %v4126
        %v4128 = vpop.f32.mrf.mxu0
        %4129 = vdwg.mxu0
        %4130 = vmatpush.bf16.msra.mxu0 %v3495
        %4131 = vmatpush.bf16.msra.mxu0 %v3487
        %4132 = vmatpush.bf16.msra.mxu0 %v3479
        %4133 = vmatpush.bf16.msra.mxu0 %v3471
        %4134 = vmatpush.bf16.msra.mxu0 %v3463
        %4135 = vmatpush.bf16.msra.mxu0 %v3455
        %4136 = vmatpush.bf16.msra.mxu0 %v3447
        %4137 = vmatpush.bf16.msra.mxu0 %v3439
        %4138 = vmatmul.bf16.gmra.mxu0 %v2779
        %v4139 = vpop.f32.mrf.mxu0
        %v4140 = vadd.f32 %v2771, %v4139
        %v4141 = vpop.f32.mrf.mxu0
        %4142 = vdwg.mxu0
        %4143 = vmatpush.bf16.msra.mxu0 %v3559
        %4144 = vmatpush.bf16.msra.mxu0 %v3551
        %4145 = vmatpush.bf16.msra.mxu0 %v3543
        %4146 = vmatpush.bf16.msra.mxu0 %v3535
        %4147 = vmatpush.bf16.msra.mxu0 %v3527
        %4148 = vmatpush.bf16.msra.mxu0 %v3519
        %4149 = vmatpush.bf16.msra.mxu0 %v3511
        %4150 = vmatpush.bf16.msra.mxu0 %v3503
        %4151 = vmatmul.bf16.gmra.mxu0 %v2780
        %v4152 = vpop.f32.mrf.mxu0
        %v4153 = vadd.f32 %v4140, %v4152
        %v4154 = vpop.f32.mrf.mxu0
        %4155 = vdwg.mxu0
        %4156 = vmatpush.bf16.msra.mxu0 %v3623
        %4157 = vmatpush.bf16.msra.mxu0 %v3615
        %4158 = vmatpush.bf16.msra.mxu0 %v3607
        %4159 = vmatpush.bf16.msra.mxu0 %v3599
        %4160 = vmatpush.bf16.msra.mxu0 %v3591
        %4161 = vmatpush.bf16.msra.mxu0 %v3583
        %4162 = vmatpush.bf16.msra.mxu0 %v3575
        %4163 = vmatpush.bf16.msra.mxu0 %v3567
        %4164 = vmatmul.bf16.gmra.mxu0 %v2781
        %v4165 = vpop.f32.mrf.mxu0
        %v4166 = vadd.f32 %v4153, %v4165
        %v4167 = vpop.f32.mrf.mxu0
        %4168 = vdwg.mxu0
        %4169 = vmatpush.bf16.msra.mxu0 0
        %4170 = vmatpush.bf16.msra.mxu0 0
        %4171 = vmatpush.bf16.msra.mxu0 0
        %4172 = vmatpush.bf16.msra.mxu0 0
        %4173 = vmatpush.bf16.msra.mxu0 0
        %4174 = vmatpush.bf16.msra.mxu0 %v3647
        %4175 = vmatpush.bf16.msra.mxu0 %v3639
        %4176 = vmatpush.bf16.msra.mxu0 %v3631
        %4177 = vmatmul.bf16.gmra.mxu0 %v3868
        %v4178 = vpop.f32.mrf.mxu0
        %v4179 = vadd.f32 %v4166, %v4178
        %v4180 = vpop.f32.mrf.mxu0
        %4181 = vdwg.mxu0
        %4182 = vmatpush.bf16.msra.mxu0 %v3496
        %4183 = vmatpush.bf16.msra.mxu0 %v3488
        %4184 = vmatpush.bf16.msra.mxu0 %v3480
        %4185 = vmatpush.bf16.msra.mxu0 %v3472
        %4186 = vmatpush.bf16.msra.mxu0 %v3464
        %4187 = vmatpush.bf16.msra.mxu0 %v3456
        %4188 = vmatpush.bf16.msra.mxu0 %v3448
        %4189 = vmatpush.bf16.msra.mxu0 %v3440
        %4190 = vmatmul.bf16.gmra.mxu0 %v2779
        %v4191 = vpop.f32.mrf.mxu0
        %v4192 = vadd.f32 %v2771, %v4191
        %v4193 = vpop.f32.mrf.mxu0
        %4194 = vdwg.mxu0
        %4195 = vmatpush.bf16.msra.mxu0 %v3560
        %4196 = vmatpush.bf16.msra.mxu0 %v3552
        %4197 = vmatpush.bf16.msra.mxu0 %v3544
        %4198 = vmatpush.bf16.msra.mxu0 %v3536
        %4199 = vmatpush.bf16.msra.mxu0 %v3528
        %4200 = vmatpush.bf16.msra.mxu0 %v3520
        %4201 = vmatpush.bf16.msra.mxu0 %v3512
        %4202 = vmatpush.bf16.msra.mxu0 %v3504
        %4203 = vmatmul.bf16.gmra.mxu0 %v2780
        %v4204 = vpop.f32.mrf.mxu0
        %v4205 = vadd.f32 %v4192, %v4204
        %v4206 = vpop.f32.mrf.mxu0
        %4207 = vdwg.mxu0
        %4208 = vmatpush.bf16.msra.mxu0 %v3624
        %4209 = vmatpush.bf16.msra.mxu0 %v3616
        %4210 = vmatpush.bf16.msra.mxu0 %v3608
        %4211 = vmatpush.bf16.msra.mxu0 %v3600
        %4212 = vmatpush.bf16.msra.mxu0 %v3592
        %4213 = vmatpush.bf16.msra.mxu0 %v3584
        %4214 = vmatpush.bf16.msra.mxu0 %v3576
        %4215 = vmatpush.bf16.msra.mxu0 %v3568
        %4216 = vmatmul.bf16.gmra.mxu0 %v2781
        %v4217 = vpop.f32.mrf.mxu0
        %v4218 = vadd.f32 %v4205, %v4217
        %v4219 = vpop.f32.mrf.mxu0
        %4220 = vdwg.mxu0
        %4221 = vmatpush.bf16.msra.mxu0 0
        %4222 = vmatpush.bf16.msra.mxu0 0
        %4223 = vmatpush.bf16.msra.mxu0 0
        %4224 = vmatpush.bf16.msra.mxu0 0
        %4225 = vmatpush.bf16.msra.mxu0 0
        %4226 = vmatpush.bf16.msra.mxu0 %v3648
        %4227 = vmatpush.bf16.msra.mxu0 %v3640
        %4228 = vmatpush.bf16.msra.mxu0 %v3632
        %4229 = vmatmul.bf16.gmra.mxu0 %v3868
        %v4230 = vpop.f32.mrf.mxu0
        %v4231 = vadd.f32 %v4218, %v4230
        %v4232 = vpop.f32.mrf.mxu0
        %4233 = vdwg.mxu0
        %4234 = vmatpush.bf16.msra.mxu0 %v3497
        %4235 = vmatpush.bf16.msra.mxu0 %v3489
        %4236 = vmatpush.bf16.msra.mxu0 %v3481
        %4237 = vmatpush.bf16.msra.mxu0 %v3473
        %4238 = vmatpush.bf16.msra.mxu0 %v3465
        %4239 = vmatpush.bf16.msra.mxu0 %v3457
        %4240 = vmatpush.bf16.msra.mxu0 %v3449
        %4241 = vmatpush.bf16.msra.mxu0 %v3441
        %4242 = vmatmul.bf16.gmra.mxu0 %v2779
        %v4243 = vpop.f32.mrf.mxu0
        %v4244 = vadd.f32 %v2771, %v4243
        %v4245 = vpop.f32.mrf.mxu0
        %4246 = vdwg.mxu0
        %4247 = vmatpush.bf16.msra.mxu0 %v3561
        %4248 = vmatpush.bf16.msra.mxu0 %v3553
        %4249 = vmatpush.bf16.msra.mxu0 %v3545
        %4250 = vmatpush.bf16.msra.mxu0 %v3537
        %4251 = vmatpush.bf16.msra.mxu0 %v3529
        %4252 = vmatpush.bf16.msra.mxu0 %v3521
        %4253 = vmatpush.bf16.msra.mxu0 %v3513
        %4254 = vmatpush.bf16.msra.mxu0 %v3505
        %4255 = vmatmul.bf16.gmra.mxu0 %v2780
        %v4256 = vpop.f32.mrf.mxu0
        %v4257 = vadd.f32 %v4244, %v4256
        %v4258 = vpop.f32.mrf.mxu0
        %4259 = vdwg.mxu0
        %4260 = vmatpush.bf16.msra.mxu0 %v3625
        %4261 = vmatpush.bf16.msra.mxu0 %v3617
        %4262 = vmatpush.bf16.msra.mxu0 %v3609
        %4263 = vmatpush.bf16.msra.mxu0 %v3601
        %4264 = vmatpush.bf16.msra.mxu0 %v3593
        %4265 = vmatpush.bf16.msra.mxu0 %v3585
        %4266 = vmatpush.bf16.msra.mxu0 %v3577
        %4267 = vmatpush.bf16.msra.mxu0 %v3569
        %4268 = vmatmul.bf16.gmra.mxu0 %v2781
        %v4269 = vpop.f32.mrf.mxu0
        %v4270 = vadd.f32 %v4257, %v4269
        %v4271 = vpop.f32.mrf.mxu0
        %4272 = vdwg.mxu0
        %4273 = vmatpush.bf16.msra.mxu0 0
        %4274 = vmatpush.bf16.msra.mxu0 0
        %4275 = vmatpush.bf16.msra.mxu0 0
        %4276 = vmatpush.bf16.msra.mxu0 0
        %4277 = vmatpush.bf16.msra.mxu0 0
        %4278 = vmatpush.bf16.msra.mxu0 %v3649
        %4279 = vmatpush.bf16.msra.mxu0 %v3641
        %4280 = vmatpush.bf16.msra.mxu0 %v3633
        %4281 = vmatmul.bf16.gmra.mxu0 %v3868
        %v4282 = vpop.f32.mrf.mxu0
        %v4283 = vadd.f32 %v4270, %v4282
        %v4284 = vpop.f32.mrf.mxu0
        %4285 = vdwg.mxu0
        %4286 = vst [vmem:[%s339] sm:$0xff] %v3919
        %4287 = vst [vmem:[%s339 + $0x8] sm:$0xff] %v3971
        %4288 = vst [vmem:[%s339 + $0x10] sm:$0xff] %v4023
        %4289 = vst [vmem:[%s339 + $0x18] sm:$0xff] %v4075
        %4290 = vst [vmem:[%s339 + $0x20] sm:$0xff] %v4127
        %4291 = vst [vmem:[%s339 + $0x28] sm:$0xff] %v4179
        %4292 = vst [vmem:[%s339 + $0x30] sm:$0xff] %v4231
        %4293 = vst [vmem:[%s339 + $0x38] sm:$0xff] %v4283
        %s4294 = sand.u32 %s167, 1
        %s4295 = scalar_lea.sflag [#allocation6], %s4294
        %s4296 = sand.u32 %s167, 1
        %s4297 = smul.addr %s4296, 64
        %s4298 = scalar_lea.vmem [#allocation10], %s4297
        // Predicated region
        $region49: #{tpu_custom_call.1} parent=35 // pred_check
          %p4299 = pneg %p177
        $region50: #{tpu_custom_call.1} parent=35 // pred_check_branch
          %4301 = sbr.rel (%p4299) target = $region52
        $region51: #{tpu_custom_call.1} parent=35 // pred_region
          %s4302 = smul.u32 8, %s31
          %4304 = vsyncadd %s4295, 0
          %s4305 = smul.addr %s30, 8
          %s4306 = sadd.s32 %s4302, %s4305
          %s4307 = smul.addr %s29, 8
          %s4308 = sadd.s32 %s4306, %s4307
          %s4309 = smul.addr %s4308, 8
          %s4310 = scalar_lea.hbm %s4, %s4309
          %s4312 = sshll.u32 %s4298, 4
          %s4313 = int_to_ptr.vmem [resolvable:$true] %s4312
          %s4314 = sshll.u32 %s4310, 4
          %s4315 = int_to_ptr.hbm [resolvable:$true] %s4314
          %4317 = dma.vmem_to_hbm [thread:$0]  %s4313, 1024, %s4315, %s4295
        $region52: #{tpu_custom_call.1} parent=35 // pred_fallthru
          _
      $region36: #{tpu_custom_call.1} parent=5 // pred_fallthru
        _
      %p4318 = scmp.le.s32.totalorder 2, %s19
      // Predicated region
      $region53: #{tpu_custom_call.1} parent=5 // pred_check
        %p4319 = pneg %p4318
      $region54: #{tpu_custom_call.1} parent=5 // pred_check_branch
        %4321 = sbr.rel (%p4319) target = $region56
      $region55: #{tpu_custom_call.1} parent=5 // pred_region
        %s4322 = ssub.s32 %s19, 2
        // Predicated region
        $region57: #{tpu_custom_call.1} parent=55 // pred_check
          %p4323 = pneg %p183
        $region58: #{tpu_custom_call.1} parent=55 // pred_check_branch
          %4325 = sbr.rel (%p4323) target = $region60
        $region59: #{tpu_custom_call.1} parent=55 // pred_region
          %s4326 = sand.u32 %s168, 1
          %s4327 = scalar_lea.sflag [#allocation6], %s4326
          %s4328 = sand.u32 %s168, 1
          %s4329 = smul.addr %s4328, 64
          %s4330 = scalar_lea.vmem [#allocation10], %s4329
          %4332 = dma.done %s4327, 1024
        $region60: #{tpu_custom_call.1} parent=55 // pred_fallthru
          _
      $region56: #{tpu_custom_call.1} parent=5 // pred_fallthru
        _
    $region6: #{tpu_custom_call.1} parent=1 // loop_footer
      %s23 = sadd.s32 1, %s19
    $region7: #{tpu_custom_call.1} parent=1 // loop_footer_branch
      %18 = sbr.rel target = $region3
    $region8: #{tpu_custom_call.1} parent=1 // loop_exit
      _
    %4333 = vsyncpa [#allocation5], 1
    %s4334 = scalar_lea.sflag [#allocation5], 1
    %4335 = vsyncpa %s4334, 1
    %4336 = vsyncpa [#allocation8], 1
    %s4337 = scalar_lea.sflag [#allocation8], 1
    %4338 = vsyncpa %s4337, 1
    %4339 = vsyncpa [#allocation6], 1
    %s4340 = scalar_lea.sflag [#allocation6], 1
    %4341 = vsyncpa %s4340, 1

</llo_original>
